<compile_context>
chip_gen: v5e
topology: v5e:2x2
jax: 0.10.0
libtpu: 0.0.40
codegen_flags: <defaults>
</compile_context>

<pallas_src>
import functools

import jax
import jax.numpy as jnp
from jax import lax
from jax.experimental import pallas as pl
from jax.experimental.pallas import tpu as pltpu

MLP_HIDDEN = 256  # fixed by the module: nn.Linear(d_model, 256, bias=False)


def _layernorm(x, g, b, eps=1e-5):
    # The LayerNorm subclass casts to f32 internally; keep the math in f32.
    xf = x.astype(jnp.float32)
    mean = jnp.mean(xf, axis=-1, keepdims=True)
    var = jnp.mean((xf - mean) ** 2, axis=-1, keepdims=True)
    return (xf - mean) * lax.rsqrt(var + eps) * g + b


def prompt_attention_kernel(
    tok_ref, vis_ref,                    # (B_TILE, L, E) activation tiles (input dtype)
    ln1_g_ref, ln1_b_ref,                # (1, E) f32
    wq_ref, wk_ref, wv_ref,              # (E, E) bf16, x@W layout (1/sqrt(hd) folded into wq)
    bq_ref, bk_ref, bv_ref,              # (1, E) f32 (1/sqrt(hd) folded into bq)
    wo_ref, bo_ref,                      # (E, E) bf16, (1, E) f32
    ln2_g_ref, ln2_b_ref,                # (1, E) f32
    w_fc_ref, w_proj_ref,                # (E, 256) bf16, (256, E) bf16
    scales_ref,                          # SMEM (2,) f32 [scale1, scale2] (fp16-truncated)
    out_ref,                             # (B_TILE, L, E)
    *, n_heads,
):
    B, L, E = tok_ref.shape
    hd = E // n_heads
    M = B * L

    tok = tok_ref[...].astype(jnp.float32).reshape(M, E)   # query source = token_context
    vis = vis_ref[...].astype(jnp.float32).reshape(M, E)   # key/value source + residual

    g1, b1 = ln1_g_ref[...], ln1_b_ref[...]
    # ln_pa_1_visual applied to both the query (token) and key/value (visual) inputs.
    q_in = _layernorm(tok, g1, b1).astype(jnp.bfloat16)
    kv_in = _layernorm(vis, g1, b1).astype(jnp.bfloat16)

    # Projections: large-M (M = B*L) matmuls, bf16 operands, f32 accumulation.
    # The 1/sqrt(hd) scale is already folded into wq/bq at parameter-prep time.
    q = jnp.dot(q_in, wq_ref[...], preferred_element_type=jnp.float32) + bq_ref[...]
    k = jnp.dot(kv_in, wk_ref[...], preferred_element_type=jnp.float32) + bk_ref[...]
    v = jnp.dot(kv_in, wv_ref[...], preferred_element_type=jnp.float32) + bv_ref[...]

    q = q.astype(jnp.bfloat16)
    k = k.astype(jnp.bfloat16)
    v = v.astype(jnp.bfloat16)

    # Per-head attention (tiny FLOPs at L=8): 3-D dot_generals with a single
    # leading batch dim, which Mosaic lowers reliably.
    # TODO(synk): a single lax.dot_general with batch dims ((0,2),(0,2)) over a
    # (B, L, H, hd) reshape would batch all heads in one matmul, but
    # multi-batch-dim dot_general / lane-splitting reshapes are not reliably
    # lowered by Mosaic, so we keep a short Python loop over heads.
    head_outs = []
    for h in range(n_heads):
        sl = slice(h * hd, (h + 1) * hd)
        qh = q[:, sl].reshape(B, L, hd)
        kh = k[:, sl].reshape(B, L, hd)
        vh = v[:, sl].reshape(B, L, hd)

        s = lax.dot_general(qh, kh, (((2,), (2,)), ((0,), (0,))),
                            preferred_element_type=jnp.float32)        # (B, L, L)
        s = s - jnp.max(s, axis=-1, keepdims=True)
        p = jnp.exp(s)
        p = p * pl.reciprocal(jnp.sum(p, axis=-1, keepdims=True), approx=True)

        oh = lax.dot_general(p.astype(jnp.bfloat16), vh,
                             (((2,), (1,)), ((0,), (0,))),
                             preferred_element_type=jnp.float32)        # (B, L, hd)
        head_outs.append(oh)

    # Assemble all head outputs once, then a single full output projection
    # with K = E (full MXU contraction depth) instead of per-head K = hd.
    o = jnp.concatenate(head_outs, axis=-1).reshape(M, E)
    attn = jnp.dot(o.astype(jnp.bfloat16), wo_ref[...],
                   preferred_element_type=jnp.float32) + bo_ref[...]

    s1 = scales_ref[0]
    s2 = scales_ref[1]

    # residual 1:  scale1 * visual + (1 - scale1) * attn_out   (raw visual)
    x = s1 * vis + (1.0 - s1) * attn

    # MLP branch: ln -> Linear(E,256,no bias) -> QuickGELU -> Linear(256,E,no bias)
    x2 = _layernorm(x, ln2_g_ref[...], ln2_b_ref[...]).astype(jnp.bfloat16)
    hmid = jnp.dot(x2, w_fc_ref[...], preferred_element_type=jnp.float32)   # (M, 256)
    hmid = hmid * jax.nn.sigmoid(1.702 * hmid)                              # QuickGELU (f32)
    mlp = jnp.dot(hmid.astype(jnp.bfloat16), w_proj_ref[...],
                  preferred_element_type=jnp.float32)                        # (M, E)

    # residual 2
    out = s2 * x + (1.0 - s2) * mlp
    out_ref[...] = out.reshape(B, L, E).astype(out_ref.dtype)


def _min_grid_steps():
    """Keep >= 2 grid steps only on multi-TensorCore chips (v7x)."""
    try:
        kind = jax.devices()[0].device_kind.lower()
    except Exception:
        return 1
    return 2 if ("v7" in kind or "7x" in kind) else 1


def _choose_b_tile(N, L, max_rows=256):
    """Largest batch tile with M = b_tile*L <= max_rows (MXU rows) and one grid
    step per TensorCore; the wrapper pads N up to a multiple of b_tile."""
    steps = max(_min_grid_steps(), pl.cdiv(N * L, max_rows))
    steps = min(steps, N)
    return pl.cdiv(N, steps)


def prompt_attention(visual_context, token_context, params, *, n_heads, b_tile=None):
    """visual_context, token_context: (N, L, E) batch-first.

    `params` must come from prepare_kernel_params() (bf16 weights, folded q
    scale).  Output dtype follows visual_context.dtype.
    """
    N, L, E = visual_context.shape
    assert token_context.shape == (N, L, E)
    assert E % n_heads == 0

    if b_tile is None:
        b_tile = _choose_b_tile(N, L)
    n_pad = (-N) % b_tile
    if n_pad:
        pad = ((0, n_pad), (0, 0), (0, 0))
        visual_context = jnp.pad(visual_context, pad)
        token_context = jnp.pad(token_context, pad)
    n_total = N + n_pad

    per_tile = pl.BlockSpec((b_tile, L, E), lambda n: (n, 0, 0))
    # Grid-invariant weights / vectors: whole array resident in VMEM for the
    # entire kernel, single-buffered (no per-step DMA / double buffering).
    vmem = pl.BlockSpec(memory_space=pltpu.MemorySpace.VMEM)
    smem = pl.BlockSpec(memory_space=pltpu.MemorySpace.SMEM)

    kernel = functools.partial(prompt_attention_kernel, n_heads=n_heads)

    args = [
        token_context, visual_context,
        params["ln1_g"], params["ln1_b"],
        params["wq"], params["wk"], params["wv"],
        params["bq"], params["bk"], params["bv"],
        params["wo"], params["bo"],
        params["ln2_g"], params["ln2_b"],
        params["w_fc"], params["w_proj"],
        params["scales"],
    ]

    # VMEM budget: single-buffered bf16 weights + f32 vector params +
    # double-buffered activation tiles + headroom for f32 intermediates.
    itemsize = jnp.dtype(visual_context.dtype).itemsize
    rows = b_tile * L
    w_bytes = 2 * (4 * E * E + 2 * E * MLP_HIDDEN)          # bf16 matmul weights
    vec_bytes = 4 * (8 * E + 2)                             # f32 biases / LN params / scales
    io_bytes = 2 * 3 * itemsize * rows * E                  # double-buffered tok/vis/out tiles
    scratch_bytes = 4 * rows * (12 * E + 2 * MLP_HIDDEN)    # rough f32 intermediates
    vmem_limit = w_bytes + vec_bytes + io_bytes + scratch_bytes + (4 << 20)
    vmem_limit = int(min(max(vmem_limit, 16 << 20), 40 << 20))   # 40 MiB cap is v7x-safe

    out = pl.pallas_call(
        kernel,
        out_shape=jax.ShapeDtypeStruct((n_total, L, E), visual_context.dtype),
        grid=(n_total // b_tile,),
        in_specs=[
            per_tile, per_tile,
            vmem, vmem,
            vmem, vmem, vmem,
            vmem, vmem, vmem,
            vmem, vmem,
            vmem, vmem,
            vmem, vmem,
            smem,
        ],
        out_specs=per_tile,
        compiler_params=pltpu.CompilerParams(
            dimension_semantics=("parallel",),
            vmem_limit_bytes=vmem_limit,
        ),
    )(*args)
    return out[:N] if n_pad else out


def prompt_attention_seq_first(visual_context, token_context, params, *, n_heads, b_tile=None):
    """Convenience wrapper for the PyTorch nn.MultiheadAttention (L, N, E) layout."""
    vis = jnp.transpose(visual_context, (1, 0, 2))
    tok = jnp.transpose(token_context, (1, 0, 2))
    out = prompt_attention(vis, tok, params, n_heads=n_heads, b_tile=b_tile)
    return jnp.transpose(out, (1, 0, 2))


def prepare_kernel_params(P, n_heads):
    """One-time (outside the call path) parameter transform for the kernel:
    fold 1/sqrt(hd) into Wq/bq, cast matmul weights to bf16, reshape vector
    params to (1, E), and reproduce the PyTorch `scale.half()` truncation."""
    E = P["wq"].shape[0]
    hd = E // n_heads
    qs = 1.0 / (hd ** 0.5)
    bf16, f32 = jnp.bfloat16, jnp.float32
    return {
        "ln1_g": P["ln1_g"].reshape(1, E).astype(f32),
        "ln1_b": P["ln1_b"].reshape(1, E).astype(f32),
        "wq": (P["wq"] * qs).astype(bf16),
        "wk": P["wk"].astype(bf16),
        "wv": P["wv"].astype(bf16),
        "bq": (P["bq"] * qs).reshape(1, E).astype(f32),
        "bk": P["bk"].reshape(1, E).astype(f32),
        "bv": P["bv"].reshape(1, E).astype(f32),
        "wo": P["wo"].astype(bf16),
        "bo": P["bo"].reshape(1, E).astype(f32),
        "ln2_g": P["ln2_g"].reshape(1, E).astype(f32),
        "ln2_b": P["ln2_b"].reshape(1, E).astype(f32),
        "w_fc": P["w_fc"].astype(bf16),
        "w_proj": P["w_proj"].astype(bf16),
        "scales": jnp.asarray(P["scales"], jnp.float16).astype(f32),
    }


def make_params(key, d_model, mlp_hidden=MLP_HIDDEN):
    """Raw f32 parameters in x@W math layout (matches the PyTorch module)."""
    ks = jax.random.split(key, 10)
    E = d_model
    # nn.MultiheadAttention: in_proj_weight (3E, E), in_proj_bias (3E,),
    # out_proj weight (E, E), bias (E,). Linear weights stored (out, in);
    # transposed here so x @ W is the forward op.
    in_proj_w = jax.random.normal(ks[0], (3 * E, E), jnp.float32) * 0.02
    in_proj_b = jax.random.normal(ks[1], (3 * E,), jnp.float32) * 0.01
    out_proj_w = jax.random.normal(ks[2], (E, E), jnp.float32) * 0.02
    out_proj_b = jax.random.normal(ks[3], (E,), jnp.float32) * 0.01
    w_fc = jax.random.normal(ks[4], (mlp_hidden, E), jnp.float32) * 0.02    # c_fc1 (no bias)
    w_proj = jax.random.normal(ks[5], (E, mlp_hidden), jnp.float32) * 0.02  # c_proj (no bias)
    ln1_g = 1.0 + 0.1 * jax.random.normal(ks[6], (E,), jnp.float32)
    ln1_b = 0.1 * jax.random.normal(ks[7], (E,), jnp.float32)
    ln2_g = 1.0 + 0.1 * jax.random.normal(ks[8], (E,), jnp.float32)
    ln2_b = 0.1 * jax.random.normal(ks[9], (E,), jnp.float32)
    # scale1 = scale2 = 0.75 (nn.Parameter(0.75*ones(1))), fp16-truncated to
    # mimic `.half()` in the original forward (0.75 is exact in fp16).
    scales = jnp.asarray([0.75, 0.75], jnp.float16).astype(jnp.float32)
    return {
        "ln1_g": ln1_g, "ln1_b": ln1_b,
        "wq": in_proj_w[0 * E:1 * E].T, "wk": in_proj_w[1 * E:2 * E].T, "wv": in_proj_w[2 * E:3 * E].T,
        "bq": in_proj_b[0 * E:1 * E], "bk": in_proj_b[1 * E:2 * E], "bv": in_proj_b[2 * E:3 * E],
        "wo": out_proj_w.T, "bo": out_proj_b,
        "ln2_g": ln2_g, "ln2_b": ln2_b,
        "w_fc": w_fc.T, "w_proj": w_proj.T,
        "scales": scales,
    }


def reference_forward(vis_nle, tok_nle, P, n_heads):
    """Pure-JAX f32 reference over the (N, L, E) layout with the raw weights."""
    def ln(x, g, b, eps=1e-5):
        m = jnp.mean(x, -1, keepdims=True)
        v = jnp.mean((x - m) ** 2, -1, keepdims=True)
        return (x - m) / jnp.sqrt(v + eps) * g + b

    N, L, E = vis_nle.shape
    hd = E // n_heads
    q_in = ln(tok_nle, P["ln1_g"], P["ln1_b"])
    kv_in = ln(vis_nle, P["ln1_g"], P["ln1_b"])
    q = q_in @ P["wq"] + P["bq"]
    k = kv_in @ P["wk"] + P["bk"]
    v = kv_in @ P["wv"] + P["bv"]
    q = q.reshape(N, L, n_heads, hd).transpose(0, 2, 1, 3)
    k = k.reshape(N, L, n_heads, hd).transpose(0, 2, 1, 3)
    v = v.reshape(N, L, n_heads, hd).transpose(0, 2, 1, 3)
    s = jnp.einsum("nhqd,nhkd->nhqk", q, k) / jnp.sqrt(float(hd))
    p = jax.nn.softmax(s, axis=-1)
    a = jnp.einsum("nhqk,nhkd->nhqd", p, v)
    a = a.transpose(0, 2, 1, 3).reshape(N, L, E)
    a = a @ P["wo"] + P["bo"]
    s1, s2 = P["scales"][0], P["scales"][1]
    x = s1 * vis_nle + (1.0 - s1) * a
    x2 = ln(x, P["ln2_g"], P["ln2_b"])
    h = x2 @ P["w_fc"]
    h = h * jax.nn.sigmoid(1.702 * h)
    m = h @ P["w_proj"]
    return s2 * x + (1.0 - s2) * m


if __name__ == "__main__":
    # d_model must be a multiple of 64 (n_head = d_model // 64); use 128 -> 2 heads.
    # Inputs are batch-first (N, L, E) so no HBM transposes are needed.
    N, L, E = 16, 8, 128
    n_heads = E // 64

    key = jax.random.PRNGKey(0)
    k_vis, k_tok, k_par = jax.random.split(key, 3)
    visual_context = jax.random.normal(k_vis, (N, L, E), jnp.float32)
    token_context = jax.random.normal(k_tok, (N, L, E), jnp.float32)

    params = make_params(k_par, E)
    kparams = prepare_kernel_params(params, n_heads)   # one-time, outside the call path

    out = prompt_attention(visual_context, token_context, kparams, n_heads=n_heads)
    out = jax.block_until_ready(out)

    # Verify against the pure-f32 JAX reference; bf16 MXU operands in the
    # kernel => slightly loosened tolerance (expected, not a bug).
    ref = reference_forward(visual_context, token_context, params, n_heads)
    assert out.shape == (N, L, E)
    max_err = float(jnp.max(jnp.abs(out - ref)))
    assert jnp.allclose(out, ref, atol=2e-2, rtol=2e-2), max_err

    print("KERNEL_OK")
</pallas_src>

<mosaic_0001>
module attributes {stable_mosaic.version = 11 : i64} {
  func.func @prompt_attention_kernel(%arg0: i32, %arg1: memref<16x8x128xf32, #tpu.memory_space<vmem>>, %arg2: memref<16x8x128xf32, #tpu.memory_space<vmem>>, %arg3: memref<1x128xf32, #tpu.memory_space<vmem>>, %arg4: memref<1x128xf32, #tpu.memory_space<vmem>>, %arg5: memref<128x128xbf16, #tpu.memory_space<vmem>>, %arg6: memref<128x128xbf16, #tpu.memory_space<vmem>>, %arg7: memref<128x128xbf16, #tpu.memory_space<vmem>>, %arg8: memref<1x128xf32, #tpu.memory_space<vmem>>, %arg9: memref<1x128xf32, #tpu.memory_space<vmem>>, %arg10: memref<1x128xf32, #tpu.memory_space<vmem>>, %arg11: memref<128x128xbf16, #tpu.memory_space<vmem>>, %arg12: memref<1x128xf32, #tpu.memory_space<vmem>>, %arg13: memref<1x128xf32, #tpu.memory_space<vmem>>, %arg14: memref<1x128xf32, #tpu.memory_space<vmem>>, %arg15: memref<128x256xbf16, #tpu.memory_space<vmem>>, %arg16: memref<256x128xbf16, #tpu.memory_space<vmem>>, %arg17: memref<2xf32, #tpu.memory_space<smem>>, %arg18: memref<16x8x128xf32, #tpu.memory_space<vmem>>) attributes {dimension_semantics = [#tpu.dimension_semantics<parallel>], iteration_bounds = array<i64: 1>, scalar_prefetch = 0 : i64, scratch_operands = 0 : i64, tpu.core_type = #tpu.core_type<tc>, window_params = [{transform_indices = @transform_0, window_bounds = array<i64: 16, 8, 128>}, {transform_indices = @transform_1, window_bounds = array<i64: 16, 8, 128>}, {pipeline_mode = #tpu.pipeline_mode<synchronous>, transform_indices = @transform_2, window_bounds = array<i64: 1, 128>}, {pipeline_mode = #tpu.pipeline_mode<synchronous>, transform_indices = @transform_3, window_bounds = array<i64: 1, 128>}, {pipeline_mode = #tpu.pipeline_mode<synchronous>, transform_indices = @transform_4, window_bounds = array<i64: 128, 128>}, {pipeline_mode = #tpu.pipeline_mode<synchronous>, transform_indices = @transform_5, window_bounds = array<i64: 128, 128>}, {pipeline_mode = #tpu.pipeline_mode<synchronous>, transform_indices = @transform_6, window_bounds = array<i64: 128, 128>}, {pipeline_mode = #tpu.pipeline_mode<synchronous>, transform_indices = @transform_7, window_bounds = array<i64: 1, 128>}, {pipeline_mode = #tpu.pipeline_mode<synchronous>, transform_indices = @transform_8, window_bounds = array<i64: 1, 128>}, {pipeline_mode = #tpu.pipeline_mode<synchronous>, transform_indices = @transform_9, window_bounds = array<i64: 1, 128>}, {pipeline_mode = #tpu.pipeline_mode<synchronous>, transform_indices = @transform_10, window_bounds = array<i64: 128, 128>}, {pipeline_mode = #tpu.pipeline_mode<synchronous>, transform_indices = @transform_11, window_bounds = array<i64: 1, 128>}, {pipeline_mode = #tpu.pipeline_mode<synchronous>, transform_indices = @transform_12, window_bounds = array<i64: 1, 128>}, {pipeline_mode = #tpu.pipeline_mode<synchronous>, transform_indices = @transform_13, window_bounds = array<i64: 1, 128>}, {pipeline_mode = #tpu.pipeline_mode<synchronous>, transform_indices = @transform_14, window_bounds = array<i64: 128, 256>}, {pipeline_mode = #tpu.pipeline_mode<synchronous>, transform_indices = @transform_15, window_bounds = array<i64: 256, 128>}, {transform_indices = @transform_16, window_bounds = array<i64: 2>}, {transform_indices = @transform_17, window_bounds = array<i64: 16, 8, 128>}]} {
    %c0 = arith.constant 0 : index
    %c0_0 = arith.constant 0 : index
    %c0_1 = arith.constant 0 : index
    %0 = vector.load %arg1[%c0, %c0_0, %c0_1] : memref<16x8x128xf32, #tpu.memory_space<vmem>>, vector<16x8x128xf32>
    %1 = vector.shape_cast %0 : vector<16x8x128xf32> to vector<128x128xf32>
    %c0_2 = arith.constant 0 : index
    %c0_3 = arith.constant 0 : index
    %c0_4 = arith.constant 0 : index
    %2 = vector.load %arg2[%c0_2, %c0_3, %c0_4] : memref<16x8x128xf32, #tpu.memory_space<vmem>>, vector<16x8x128xf32>
    %3 = vector.shape_cast %2 : vector<16x8x128xf32> to vector<128x128xf32>
    %c0_5 = arith.constant 0 : index
    %c0_6 = arith.constant 0 : index
    %4 = vector.load %arg3[%c0_5, %c0_6] : memref<1x128xf32, #tpu.memory_space<vmem>>, vector<1x128xf32>
    %c0_7 = arith.constant 0 : index
    %c0_8 = arith.constant 0 : index
    %5 = vector.load %arg4[%c0_7, %c0_8] : memref<1x128xf32, #tpu.memory_space<vmem>>, vector<1x128xf32>
    %cst = arith.constant dense<0.000000e+00> : vector<128xf32>
    %6 = vector.multi_reduction <add>, %1, %cst [1] : vector<128x128xf32> to vector<128xf32>
    %7 = vector.shape_cast %6 : vector<128xf32> to vector<128x1xf32>
    %cst_9 = arith.constant 1.280000e+02 : f32
    %8 = vector.broadcast %cst_9 : f32 to vector<128x1xf32>
    %9 = arith.divf %7, %8 : vector<128x1xf32>
    %10 = vector.broadcast %9 : vector<128x1xf32> to vector<128x128xf32>
    %11 = arith.subf %1, %10 : vector<128x128xf32>
    %12 = arith.mulf %11, %11 : vector<128x128xf32>
    %cst_10 = arith.constant dense<0.000000e+00> : vector<128xf32>
    %13 = vector.multi_reduction <add>, %12, %cst_10 [1] : vector<128x128xf32> to vector<128xf32>
    %14 = vector.shape_cast %13 : vector<128xf32> to vector<128x1xf32>
    %cst_11 = arith.constant 1.280000e+02 : f32
    %15 = vector.broadcast %cst_11 : f32 to vector<128x1xf32>
    %16 = arith.divf %14, %15 : vector<128x1xf32>
    %17 = vector.broadcast %9 : vector<128x1xf32> to vector<128x128xf32>
    %18 = arith.subf %1, %17 : vector<128x128xf32>
    %cst_12 = arith.constant 9.99999974E-6 : f32
    %19 = vector.broadcast %cst_12 : f32 to vector<128x1xf32>
    %20 = arith.addf %16, %19 : vector<128x1xf32>
    %21 = math.rsqrt %20 : vector<128x1xf32>
    %22 = vector.broadcast %21 : vector<128x1xf32> to vector<128x128xf32>
    %23 = arith.mulf %18, %22 : vector<128x128xf32>
    %24 = vector.broadcast %4 : vector<1x128xf32> to vector<128x128xf32>
    %25 = arith.mulf %23, %24 : vector<128x128xf32>
    %26 = vector.broadcast %5 : vector<1x128xf32> to vector<128x128xf32>
    %27 = arith.addf %25, %26 : vector<128x128xf32>
    %28 = arith.truncf %27 : vector<128x128xf32> to vector<128x128xbf16>
    %cst_13 = arith.constant dense<0.000000e+00> : vector<128xf32>
    %29 = vector.multi_reduction <add>, %3, %cst_13 [1] : vector<128x128xf32> to vector<128xf32>
    %30 = vector.shape_cast %29 : vector<128xf32> to vector<128x1xf32>
    %cst_14 = arith.constant 1.280000e+02 : f32
    %31 = vector.broadcast %cst_14 : f32 to vector<128x1xf32>
    %32 = arith.divf %30, %31 : vector<128x1xf32>
    %33 = vector.broadcast %32 : vector<128x1xf32> to vector<128x128xf32>
    %34 = arith.subf %3, %33 : vector<128x128xf32>
    %35 = arith.mulf %34, %34 : vector<128x128xf32>
    %cst_15 = arith.constant dense<0.000000e+00> : vector<128xf32>
    %36 = vector.multi_reduction <add>, %35, %cst_15 [1] : vector<128x128xf32> to vector<128xf32>
    %37 = vector.shape_cast %36 : vector<128xf32> to vector<128x1xf32>
    %cst_16 = arith.constant 1.280000e+02 : f32
    %38 = vector.broadcast %cst_16 : f32 to vector<128x1xf32>
    %39 = arith.divf %37, %38 : vector<128x1xf32>
    %40 = vector.broadcast %32 : vector<128x1xf32> to vector<128x128xf32>
    %41 = arith.subf %3, %40 : vector<128x128xf32>
    %cst_17 = arith.constant 9.99999974E-6 : f32
    %42 = vector.broadcast %cst_17 : f32 to vector<128x1xf32>
    %43 = arith.addf %39, %42 : vector<128x1xf32>
    %44 = math.rsqrt %43 : vector<128x1xf32>
    %45 = vector.broadcast %44 : vector<128x1xf32> to vector<128x128xf32>
    %46 = arith.mulf %41, %45 : vector<128x128xf32>
    %47 = vector.broadcast %4 : vector<1x128xf32> to vector<128x128xf32>
    %48 = arith.mulf %46, %47 : vector<128x128xf32>
    %49 = vector.broadcast %5 : vector<1x128xf32> to vector<128x128xf32>
    %50 = arith.addf %48, %49 : vector<128x128xf32>
    %51 = arith.truncf %50 : vector<128x128xf32> to vector<128x128xbf16>
    %c0_18 = arith.constant 0 : index
    %c0_19 = arith.constant 0 : index
    %52 = vector.load %arg5[%c0_18, %c0_19] : memref<128x128xbf16, #tpu.memory_space<vmem>>, vector<128x128xbf16>
    %cst_20 = arith.constant dense<0.000000e+00> : vector<128x128xf32>
    %53 = tpu.matmul %28, %52, %cst_20 {dimension_numbers = #tpu.dot_dimension_numbers<[1], [0], [0], [1], [0, 0, 1, 1], [], []>} : vector<128x128xbf16>, vector<128x128xbf16>, vector<128x128xf32> -> vector<128x128xf32>
    %c0_21 = arith.constant 0 : index
    %c0_22 = arith.constant 0 : index
    %54 = vector.load %arg8[%c0_21, %c0_22] : memref<1x128xf32, #tpu.memory_space<vmem>>, vector<1x128xf32>
    %55 = vector.broadcast %54 : vector<1x128xf32> to vector<128x128xf32>
    %56 = arith.addf %53, %55 : vector<128x128xf32>
    %c0_23 = arith.constant 0 : index
    %c0_24 = arith.constant 0 : index
    %57 = vector.load %arg6[%c0_23, %c0_24] : memref<128x128xbf16, #tpu.memory_space<vmem>>, vector<128x128xbf16>
    %cst_25 = arith.constant dense<0.000000e+00> : vector<128x128xf32>
    %58 = tpu.matmul %51, %57, %cst_25 {dimension_numbers = #tpu.dot_dimension_numbers<[1], [0], [0], [1], [0, 0, 1, 1], [], []>} : vector<128x128xbf16>, vector<128x128xbf16>, vector<128x128xf32> -> vector<128x128xf32>
    %c0_26 = arith.constant 0 : index
    %c0_27 = arith.constant 0 : index
    %59 = vector.load %arg9[%c0_26, %c0_27] : memref<1x128xf32, #tpu.memory_space<vmem>>, vector<1x128xf32>
    %60 = vector.broadcast %59 : vector<1x128xf32> to vector<128x128xf32>
    %61 = arith.addf %58, %60 : vector<128x128xf32>
    %c0_28 = arith.constant 0 : index
    %c0_29 = arith.constant 0 : index
    %62 = vector.load %arg7[%c0_28, %c0_29] : memref<128x128xbf16, #tpu.memory_space<vmem>>, vector<128x128xbf16>
    %cst_30 = arith.constant dense<0.000000e+00> : vector<128x128xf32>
    %63 = tpu.matmul %51, %62, %cst_30 {dimension_numbers = #tpu.dot_dimension_numbers<[1], [0], [0], [1], [0, 0, 1, 1], [], []>} : vector<128x128xbf16>, vector<128x128xbf16>, vector<128x128xf32> -> vector<128x128xf32>
    %c0_31 = arith.constant 0 : index
    %c0_32 = arith.constant 0 : index
    %64 = vector.load %arg10[%c0_31, %c0_32] : memref<1x128xf32, #tpu.memory_space<vmem>>, vector<1x128xf32>
    %65 = vector.broadcast %64 : vector<1x128xf32> to vector<128x128xf32>
    %66 = arith.addf %63, %65 : vector<128x128xf32>
    %67 = arith.truncf %56 : vector<128x128xf32> to vector<128x128xbf16>
    %68 = arith.truncf %61 : vector<128x128xf32> to vector<128x128xbf16>
    %69 = arith.truncf %66 : vector<128x128xf32> to vector<128x128xbf16>
    %70 = vector.extract_strided_slice %67 {offsets = [0, 0], sizes = [128, 64], strides = [1, 1]} : vector<128x128xbf16> to vector<128x64xbf16>
    %71 = vector.shape_cast %70 : vector<128x64xbf16> to vector<16x8x64xbf16>
    %72 = vector.extract_strided_slice %68 {offsets = [0, 0], sizes = [128, 64], strides = [1, 1]} : vector<128x128xbf16> to vector<128x64xbf16>
    %73 = vector.shape_cast %72 : vector<128x64xbf16> to vector<16x8x64xbf16>
    %74 = vector.extract_strided_slice %69 {offsets = [0, 0], sizes = [128, 64], strides = [1, 1]} : vector<128x128xbf16> to vector<128x64xbf16>
    %75 = vector.shape_cast %74 : vector<128x64xbf16> to vector<16x8x64xbf16>
    %cst_33 = arith.constant dense<0.000000e+00> : vector<16x8x8xf32>
    %76 = tpu.matmul %71, %73, %cst_33 {dimension_numbers = #tpu.dot_dimension_numbers<[2], [2], [1], [1], [0, 0, 0, 1, 1, 1], [0], [0]>} : vector<16x8x64xbf16>, vector<16x8x64xbf16>, vector<16x8x8xf32> -> vector<16x8x8xf32>
    %cst_34 = arith.constant dense<0xFF800000> : vector<16x8xf32>
    %77 = vector.multi_reduction <maximumf>, %76, %cst_34 [2] : vector<16x8x8xf32> to vector<16x8xf32>
    %78 = vector.shape_cast %77 : vector<16x8xf32> to vector<16x8x1xf32>
    %79 = vector.broadcast %78 : vector<16x8x1xf32> to vector<16x8x8xf32>
    %80 = arith.subf %76, %79 : vector<16x8x8xf32>
    %81 = math.exp %80 : vector<16x8x8xf32>
    %cst_35 = arith.constant dense<0.000000e+00> : vector<16x8xf32>
    %82 = vector.multi_reduction <add>, %81, %cst_35 [2] : vector<16x8x8xf32> to vector<16x8xf32>
    %83 = vector.shape_cast %82 : vector<16x8xf32> to vector<16x8x1xf32>
    %84 = tpu.reciprocal %83 {approx = true} : vector<16x8x1xf32> -> vector<16x8x1xf32>
    %85 = vector.broadcast %84 : vector<16x8x1xf32> to vector<16x8x8xf32>
    %86 = arith.mulf %81, %85 : vector<16x8x8xf32>
    %87 = arith.truncf %86 : vector<16x8x8xf32> to vector<16x8x8xbf16>
    %cst_36 = arith.constant dense<0.000000e+00> : vector<16x8x64xf32>
    %88 = tpu.matmul %87, %75, %cst_36 {dimension_numbers = #tpu.dot_dimension_numbers<[2], [1], [1], [2], [0, 0, 0, 1, 1, 2], [0], [0]>} : vector<16x8x8xbf16>, vector<16x8x64xbf16>, vector<16x8x64xf32> -> vector<16x8x64xf32>
    %89 = vector.extract_strided_slice %67 {offsets = [0, 64], sizes = [128, 64], strides = [1, 1]} : vector<128x128xbf16> to vector<128x64xbf16>
    %90 = vector.shape_cast %89 : vector<128x64xbf16> to vector<16x8x64xbf16>
    %91 = vector.extract_strided_slice %68 {offsets = [0, 64], sizes = [128, 64], strides = [1, 1]} : vector<128x128xbf16> to vector<128x64xbf16>
    %92 = vector.shape_cast %91 : vector<128x64xbf16> to vector<16x8x64xbf16>
    %93 = vector.extract_strided_slice %69 {offsets = [0, 64], sizes = [128, 64], strides = [1, 1]} : vector<128x128xbf16> to vector<128x64xbf16>
    %94 = vector.shape_cast %93 : vector<128x64xbf16> to vector<16x8x64xbf16>
    %cst_37 = arith.constant dense<0.000000e+00> : vector<16x8x8xf32>
    %95 = tpu.matmul %90, %92, %cst_37 {dimension_numbers = #tpu.dot_dimension_numbers<[2], [2], [1], [1], [0, 0, 0, 1, 1, 1], [0], [0]>} : vector<16x8x64xbf16>, vector<16x8x64xbf16>, vector<16x8x8xf32> -> vector<16x8x8xf32>
    %cst_38 = arith.constant dense<0xFF800000> : vector<16x8xf32>
    %96 = vector.multi_reduction <maximumf>, %95, %cst_38 [2] : vector<16x8x8xf32> to vector<16x8xf32>
    %97 = vector.shape_cast %96 : vector<16x8xf32> to vector<16x8x1xf32>
    %98 = vector.broadcast %97 : vector<16x8x1xf32> to vector<16x8x8xf32>
    %99 = arith.subf %95, %98 : vector<16x8x8xf32>
    %100 = math.exp %99 : vector<16x8x8xf32>
    %cst_39 = arith.constant dense<0.000000e+00> : vector<16x8xf32>
    %101 = vector.multi_reduction <add>, %100, %cst_39 [2] : vector<16x8x8xf32> to vector<16x8xf32>
    %102 = vector.shape_cast %101 : vector<16x8xf32> to vector<16x8x1xf32>
    %103 = tpu.reciprocal %102 {approx = true} : vector<16x8x1xf32> -> vector<16x8x1xf32>
    %104 = vector.broadcast %103 : vector<16x8x1xf32> to vector<16x8x8xf32>
    %105 = arith.mulf %100, %104 : vector<16x8x8xf32>
    %106 = arith.truncf %105 : vector<16x8x8xf32> to vector<16x8x8xbf16>
    %cst_40 = arith.constant dense<0.000000e+00> : vector<16x8x64xf32>
    %107 = tpu.matmul %106, %94, %cst_40 {dimension_numbers = #tpu.dot_dimension_numbers<[2], [1], [1], [2], [0, 0, 0, 1, 1, 2], [0], [0]>} : vector<16x8x8xbf16>, vector<16x8x64xbf16>, vector<16x8x64xf32> -> vector<16x8x64xf32>
    %108 = tpu.concatenate %88, %107 in 2 : vector<16x8x64xf32>, vector<16x8x64xf32> -> vector<16x8x128xf32>
    %109 = vector.shape_cast %108 : vector<16x8x128xf32> to vector<128x128xf32>
    %110 = arith.truncf %109 : vector<128x128xf32> to vector<128x128xbf16>
    %c0_41 = arith.constant 0 : index
    %c0_42 = arith.constant 0 : index
    %111 = vector.load %arg11[%c0_41, %c0_42] : memref<128x128xbf16, #tpu.memory_space<vmem>>, vector<128x128xbf16>
    %cst_43 = arith.constant dense<0.000000e+00> : vector<128x128xf32>
    %112 = tpu.matmul %110, %111, %cst_43 {dimension_numbers = #tpu.dot_dimension_numbers<[1], [0], [0], [1], [0, 0, 1, 1], [], []>} : vector<128x128xbf16>, vector<128x128xbf16>, vector<128x128xf32> -> vector<128x128xf32>
    %c0_44 = arith.constant 0 : index
    %c0_45 = arith.constant 0 : index
    %113 = vector.load %arg12[%c0_44, %c0_45] : memref<1x128xf32, #tpu.memory_space<vmem>>, vector<1x128xf32>
    %114 = vector.broadcast %113 : vector<1x128xf32> to vector<128x128xf32>
    %115 = arith.addf %112, %114 : vector<128x128xf32>
    %c0_46 = arith.constant 0 : index
    %116 = memref.load %arg17[%c0_46] : memref<2xf32, #tpu.memory_space<smem>>
    %c1 = arith.constant 1 : index
    %117 = memref.load %arg17[%c1] : memref<2xf32, #tpu.memory_space<smem>>
    %118 = vector.broadcast %116 : f32 to vector<128x128xf32>
    %119 = arith.mulf %118, %3 : vector<128x128xf32>
    %cst_47 = arith.constant 1.000000e+00 : f32
    %120 = arith.subf %cst_47, %116 : f32
    %121 = vector.broadcast %120 : f32 to vector<128x128xf32>
    %122 = arith.mulf %121, %115 : vector<128x128xf32>
    %123 = arith.addf %119, %122 : vector<128x128xf32>
    %c0_48 = arith.constant 0 : index
    %c0_49 = arith.constant 0 : index
    %124 = vector.load %arg13[%c0_48, %c0_49] : memref<1x128xf32, #tpu.memory_space<vmem>>, vector<1x128xf32>
    %c0_50 = arith.constant 0 : index
    %c0_51 = arith.constant 0 : index
    %125 = vector.load %arg14[%c0_50, %c0_51] : memref<1x128xf32, #tpu.memory_space<vmem>>, vector<1x128xf32>
    %cst_52 = arith.constant dense<0.000000e+00> : vector<128xf32>
    %126 = vector.multi_reduction <add>, %123, %cst_52 [1] : vector<128x128xf32> to vector<128xf32>
    %127 = vector.shape_cast %126 : vector<128xf32> to vector<128x1xf32>
    %cst_53 = arith.constant 1.280000e+02 : f32
    %128 = vector.broadcast %cst_53 : f32 to vector<128x1xf32>
    %129 = arith.divf %127, %128 : vector<128x1xf32>
    %130 = vector.broadcast %129 : vector<128x1xf32> to vector<128x128xf32>
    %131 = arith.subf %123, %130 : vector<128x128xf32>
    %132 = arith.mulf %131, %131 : vector<128x128xf32>
    %cst_54 = arith.constant dense<0.000000e+00> : vector<128xf32>
    %133 = vector.multi_reduction <add>, %132, %cst_54 [1] : vector<128x128xf32> to vector<128xf32>
    %134 = vector.shape_cast %133 : vector<128xf32> to vector<128x1xf32>
    %cst_55 = arith.constant 1.280000e+02 : f32
    %135 = vector.broadcast %cst_55 : f32 to vector<128x1xf32>
    %136 = arith.divf %134, %135 : vector<128x1xf32>
    %137 = vector.broadcast %129 : vector<128x1xf32> to vector<128x128xf32>
    %138 = arith.subf %123, %137 : vector<128x128xf32>
    %cst_56 = arith.constant 9.99999974E-6 : f32
    %139 = vector.broadcast %cst_56 : f32 to vector<128x1xf32>
    %140 = arith.addf %136, %139 : vector<128x1xf32>
    %141 = math.rsqrt %140 : vector<128x1xf32>
    %142 = vector.broadcast %141 : vector<128x1xf32> to vector<128x128xf32>
    %143 = arith.mulf %138, %142 : vector<128x128xf32>
    %144 = vector.broadcast %124 : vector<1x128xf32> to vector<128x128xf32>
    %145 = arith.mulf %143, %144 : vector<128x128xf32>
    %146 = vector.broadcast %125 : vector<1x128xf32> to vector<128x128xf32>
    %147 = arith.addf %145, %146 : vector<128x128xf32>
    %148 = arith.truncf %147 : vector<128x128xf32> to vector<128x128xbf16>
    %c0_57 = arith.constant 0 : index
    %c0_58 = arith.constant 0 : index
    %149 = vector.load %arg15[%c0_57, %c0_58] : memref<128x256xbf16, #tpu.memory_space<vmem>>, vector<128x256xbf16>
    %cst_59 = arith.constant dense<0.000000e+00> : vector<128x256xf32>
    %150 = tpu.matmul %148, %149, %cst_59 {dimension_numbers = #tpu.dot_dimension_numbers<[1], [0], [0], [1], [0, 0, 1, 1], [], []>} : vector<128x128xbf16>, vector<128x256xbf16>, vector<128x256xf32> -> vector<128x256xf32>
    %cst_60 = arith.constant 1.702000e+00 : f32
    %151 = vector.broadcast %cst_60 : f32 to vector<128x256xf32>
    %152 = arith.mulf %151, %150 : vector<128x256xf32>
    %153 = arith.negf %152 : vector<128x256xf32>
    %154 = math.exp %153 : vector<128x256xf32>
    %cst_61 = arith.constant 1.000000e+00 : f32
    %155 = vector.broadcast %cst_61 : f32 to vector<128x256xf32>
    %156 = arith.addf %155, %154 : vector<128x256xf32>
    %157 = arith.divf %155, %156 : vector<128x256xf32>
    %158 = arith.mulf %150, %157 : vector<128x256xf32>
    %159 = arith.truncf %158 : vector<128x256xf32> to vector<128x256xbf16>
    %c0_62 = arith.constant 0 : index
    %c0_63 = arith.constant 0 : index
    %160 = vector.load %arg16[%c0_62, %c0_63] : memref<256x128xbf16, #tpu.memory_space<vmem>>, vector<256x128xbf16>
    %cst_64 = arith.constant dense<0.000000e+00> : vector<128x128xf32>
    %161 = tpu.matmul %159, %160, %cst_64 {dimension_numbers = #tpu.dot_dimension_numbers<[1], [0], [0], [1], [0, 0, 1, 1], [], []>} : vector<128x256xbf16>, vector<256x128xbf16>, vector<128x128xf32> -> vector<128x128xf32>
    %162 = vector.broadcast %117 : f32 to vector<128x128xf32>
    %163 = arith.mulf %162, %123 : vector<128x128xf32>
    %cst_65 = arith.constant 1.000000e+00 : f32
    %164 = arith.subf %cst_65, %117 : f32
    %165 = vector.broadcast %164 : f32 to vector<128x128xf32>
    %166 = arith.mulf %165, %161 : vector<128x128xf32>
    %167 = arith.addf %163, %166 : vector<128x128xf32>
    %168 = vector.shape_cast %167 : vector<128x128xf32> to vector<16x8x128xf32>
    %c0_66 = arith.constant 0 : index
    %c0_67 = arith.constant 0 : index
    %c0_68 = arith.constant 0 : index
    %169 = vector.load %arg18[%c0_66, %c0_67, %c0_68] : memref<16x8x128xf32, #tpu.memory_space<vmem>>, vector<16x8x128xf32>
    tpu.vector_store %arg18[%c0_66, %c0_67, %c0_68], %168 {strides = array<i32>} : memref<16x8x128xf32, #tpu.memory_space<vmem>>, vector<16x8x128xf32>,
    return
  }
  func.func @transform_0(%arg0: i32) -> (i32, i32, i32) {
    %c0_i32 = arith.constant 0 : i32
    %c0_i32_0 = arith.constant 0 : i32
    %c0_i32_1 = arith.constant 0 : i32
    return %arg0, %c0_i32, %c0_i32_0 : i32, i32, i32
  }
  func.func @transform_1(%arg0: i32) -> (i32, i32, i32) {
    %c0_i32 = arith.constant 0 : i32
    %c0_i32_0 = arith.constant 0 : i32
    %c0_i32_1 = arith.constant 0 : i32
    return %arg0, %c0_i32, %c0_i32_0 : i32, i32, i32
  }
  func.func @transform_2(%arg0: i32) -> (i32, i32) {
    %c0_i32 = arith.constant 0 : i32
    %c0_i32_0 = arith.constant 0 : i32
    %c0_i32_1 = arith.constant 0 : i32
    return %c0_i32, %c0_i32_0 : i32, i32
  }
  func.func @transform_3(%arg0: i32) -> (i32, i32) {
    %c0_i32 = arith.constant 0 : i32
    %c0_i32_0 = arith.constant 0 : i32
    %c0_i32_1 = arith.constant 0 : i32
    return %c0_i32, %c0_i32_0 : i32, i32
  }
  func.func @transform_4(%arg0: i32) -> (i32, i32) {
    %c0_i32 = arith.constant 0 : i32
    %c0_i32_0 = arith.constant 0 : i32
    %c0_i32_1 = arith.constant 0 : i32
    return %c0_i32, %c0_i32_0 : i32, i32
  }
  func.func @transform_5(%arg0: i32) -> (i32, i32) {
    %c0_i32 = arith.constant 0 : i32
    %c0_i32_0 = arith.constant 0 : i32
    %c0_i32_1 = arith.constant 0 : i32
    return %c0_i32, %c0_i32_0 : i32, i32
  }
  func.func @transform_6(%arg0: i32) -> (i32, i32) {
    %c0_i32 = arith.constant 0 : i32
    %c0_i32_0 = arith.constant 0 : i32
    %c0_i32_1 = arith.constant 0 : i32
    return %c0_i32, %c0_i32_0 : i32, i32
  }
  func.func @transform_7(%arg0: i32) -> (i32, i32) {
    %c0_i32 = arith.constant 0 : i32
    %c0_i32_0 = arith.constant 0 : i32
    %c0_i32_1 = arith.constant 0 : i32
    return %c0_i32, %c0_i32_0 : i32, i32
  }
  func.func @transform_8(%arg0: i32) -> (i32, i32) {
    %c0_i32 = arith.constant 0 : i32
    %c0_i32_0 = arith.constant 0 : i32
    %c0_i32_1 = arith.constant 0 : i32
    return %c0_i32, %c0_i32_0 : i32, i32
  }
  func.func @transform_9(%arg0: i32) -> (i32, i32) {
    %c0_i32 = arith.constant 0 : i32
    %c0_i32_0 = arith.constant 0 : i32
    %c0_i32_1 = arith.constant 0 : i32
    return %c0_i32, %c0_i32_0 : i32, i32
  }
  func.func @transform_10(%arg0: i32) -> (i32, i32) {
    %c0_i32 = arith.constant 0 : i32
    %c0_i32_0 = arith.constant 0 : i32
    %c0_i32_1 = arith.constant 0 : i32
    return %c0_i32, %c0_i32_0 : i32, i32
  }
  func.func @transform_11(%arg0: i32) -> (i32, i32) {
    %c0_i32 = arith.constant 0 : i32
    %c0_i32_0 = arith.constant 0 : i32
    %c0_i32_1 = arith.constant 0 : i32
    return %c0_i32, %c0_i32_0 : i32, i32
  }
  func.func @transform_12(%arg0: i32) -> (i32, i32) {
    %c0_i32 = arith.constant 0 : i32
    %c0_i32_0 = arith.constant 0 : i32
    %c0_i32_1 = arith.constant 0 : i32
    return %c0_i32, %c0_i32_0 : i32, i32
  }
  func.func @transform_13(%arg0: i32) -> (i32, i32) {
    %c0_i32 = arith.constant 0 : i32
    %c0_i32_0 = arith.constant 0 : i32
    %c0_i32_1 = arith.constant 0 : i32
    return %c0_i32, %c0_i32_0 : i32, i32
  }
  func.func @transform_14(%arg0: i32) -> (i32, i32) {
    %c0_i32 = arith.constant 0 : i32
    %c0_i32_0 = arith.constant 0 : i32
    %c0_i32_1 = arith.constant 0 : i32
    return %c0_i32, %c0_i32_0 : i32, i32
  }
  func.func @transform_15(%arg0: i32) -> (i32, i32) {
    %c0_i32 = arith.constant 0 : i32
    %c0_i32_0 = arith.constant 0 : i32
    %c0_i32_1 = arith.constant 0 : i32
    return %c0_i32, %c0_i32_0 : i32, i32
  }
  func.func @transform_16(%arg0: i32) -> i32 {
    %c0_i32 = arith.constant 0 : i32
    %c0_i32_0 = arith.constant 0 : i32
    return %c0_i32 : i32
  }
  func.func @transform_17(%arg0: i32) -> (i32, i32, i32) {
    %c0_i32 = arith.constant 0 : i32
    %c0_i32_0 = arith.constant 0 : i32
    %c0_i32_1 = arith.constant 0 : i32
    return %arg0, %c0_i32, %c0_i32_0 : i32, i32, i32
  }
}

</mosaic_0001>

<llo_original>
// kernel: tpu_custom_call.1
$region0: #{tpu_custom_call.1}
  #allocation0 [shape = 'u32[]', space=smem, size = 0x4, offset = 0x4, fixed_abs, tag = 'smem constant byte address 0x4 - core index']
  #allocation1 [shape = 'u32[72,128]{1,0:T(1,128)}', space=vmem, size = 0x9000, scoped, tag = 'internal scratch']
  %s0 = inlined_call_operand.hbm [shape: f32[16,8,128], index: 0, kind: input, shape index: {}]
  %s1 = inlined_call_operand.hbm [shape: f32[16,8,128], index: 1, kind: input, shape index: {}]
  %s2 = inlined_call_operand.vmem [shape: f32[1,128], index: 2, kind: input, shape index: {}]
  %s3 = inlined_call_operand.vmem [shape: f32[1,128], index: 3, kind: input, shape index: {}]
  %s4 = inlined_call_operand.hbm [shape: bf16[128,128], index: 4, kind: input, shape index: {}]
  %s5 = inlined_call_operand.hbm [shape: bf16[128,128], index: 5, kind: input, shape index: {}]
  %s6 = inlined_call_operand.hbm [shape: bf16[128,128], index: 6, kind: input, shape index: {}]
  %s7 = inlined_call_operand.vmem [shape: f32[1,128], index: 7, kind: input, shape index: {}]
  %s8 = inlined_call_operand.vmem [shape: f32[1,128], index: 8, kind: input, shape index: {}]
  %s9 = inlined_call_operand.vmem [shape: f32[1,128], index: 9, kind: input, shape index: {}]
  %s10 = inlined_call_operand.hbm [shape: bf16[128,128], index: 10, kind: input, shape index: {}]
  %s11 = inlined_call_operand.vmem [shape: f32[1,128], index: 11, kind: input, shape index: {}]
  %s12 = inlined_call_operand.vmem [shape: f32[1,128], index: 12, kind: input, shape index: {}]
  %s13 = inlined_call_operand.vmem [shape: f32[1,128], index: 13, kind: input, shape index: {}]
  %s14 = inlined_call_operand.hbm [shape: bf16[128,256], index: 14, kind: input, shape index: {}]
  %s15 = inlined_call_operand.hbm [shape: bf16[256,128], index: 15, kind: input, shape index: {}]
  %s16 = inlined_call_operand.vmem [shape: f32[2], index: 16, kind: input, shape index: {}]
  %s17 = inlined_call_operand.hbm [shape: f32[16,8,128], index: 17, kind: output, shape index: {}]
  %s18 = sld [smem:[#allocation0]]
  $region114: #{tpu_custom_call.1} parent=0
    _
  %s20 = ssub.s32 1, %s18
  %s21 = scalar_select 0, %s20, %s18
  $region1: #{tpu_custom_call.1} parent=0
    #allocation2 [shape = 'u8[65536]{0}', space=vmem, size = 0x10000, scoped, tag = 'input window, operand 0, single buffered']
    #allocation3 [shape = 's32[1]{0}', space=sflag, size = 0x4, scoped, tag = 'scoped memory for tpu_custom_call.1']
    #allocation4 [shape = 's32[1]{0}', space=sflag, size = 0x4, scoped, tag = 'scoped memory for tpu_custom_call.1']
    #allocation5 [shape = 's32[1]{0}', space=sflag, size = 0x4, scoped, tag = 'scoped memory for tpu_custom_call.1']
    #allocation6 [shape = 'u8[65536]{0}', space=vmem, size = 0x10000, scoped, tag = 'input window, operand 1, single buffered']
    #allocation7 [shape = 's32[1]{0}', space=sflag, size = 0x4, scoped, tag = 'scoped memory for tpu_custom_call.1']
    #allocation8 [shape = 'u8[32768]{0}', space=vmem, size = 0x8000, scoped, tag = 'input window, operand 4, single buffered']
    #allocation9 [shape = 'u8[32768]{0}', space=vmem, size = 0x8000, scoped, tag = 'input window, operand 5, single buffered']
    #allocation10 [shape = 's32[1]{0}', space=sflag, size = 0x4, scoped, tag = 'scoped memory for tpu_custom_call.1']
    #allocation11 [shape = 'u8[32768]{0}', space=vmem, size = 0x8000, scoped, tag = 'input window, operand 6, single buffered']
    #allocation12 [shape = 'u8[32768]{0}', space=vmem, size = 0x8000, scoped, tag = 'input window, operand 10, single buffered']
    #allocation13 [shape = 's32[1]{0}', space=sflag, size = 0x4, scoped, tag = 'scoped memory for tpu_custom_call.1']
    #allocation14 [shape = 'u8[65536]{0}', space=vmem, size = 0x10000, scoped, tag = 'input window, operand 14, single buffered']
    #allocation15 [shape = 'u8[65536]{0}', space=vmem, size = 0x10000, scoped, tag = 'input window, operand 15, single buffered']
    #allocation16 [shape = 's32[1]{0}', space=sflag, size = 0x4, scoped, tag = 'scoped memory for tpu_custom_call.1']
    #allocation17 [shape = 'u8[512]{0}', space=smem, size = 0x200, scoped, tag = 'input window, operand 16, single buffered']
    #allocation18 [shape = 'u8[65536]{0}', space=vmem, size = 0x10000, scoped, tag = 'output window, operand 0, single buffered']
    %22 = vsyncpa [#allocation3], 0
    %23 = vsyncpa [#allocation7], 0
    %24 = vsyncpa [#allocation10], 0
    %25 = vsyncpa [#allocation13], 0
    %26 = vsyncpa [#allocation16], 0
    %27 = vsyncpa [#allocation5], 0
    %28 = vsyncpa [#allocation4], 0
    // Predicated region
    $region2: #{tpu_custom_call.1} parent=1 // pred_check
      _
    $region3: #{tpu_custom_call.1} parent=1 // pred_check_branch
      %30 = sbr.rel (0) target = $region5
    $region4: #{tpu_custom_call.1} parent=1 // pred_region
      %32 = vsyncadd [#allocation3], 0
      %s33 = sshll.u32 %s0, 4
      %s34 = int_to_ptr.hbm [resolvable:$true] %s33
      %s35 = sshll.u32 [#allocation2], 4
      %s36 = int_to_ptr.vmem [resolvable:$true] %s35
      %41 = dma.hbm_to_vmem [thread:$0]  %s34, 2048, %s36, [#allocation3], 128, 128, 8
    $region5: #{tpu_custom_call.1} parent=1 // pred_fallthru
      _
    // Predicated region
    $region6: #{tpu_custom_call.1} parent=1 // pred_check
      _
    $region7: #{tpu_custom_call.1} parent=1 // pred_check_branch
      %43 = sbr.rel (0) target = $region9
    $region8: #{tpu_custom_call.1} parent=1 // pred_region
      %45 = vsyncadd [#allocation7], 0
      %s46 = sshll.u32 %s1, 4
      %s47 = int_to_ptr.hbm [resolvable:$true] %s46
      %s48 = sshll.u32 [#allocation6], 4
      %s49 = int_to_ptr.vmem [resolvable:$true] %s48
      %54 = dma.hbm_to_vmem [thread:$0]  %s47, 2048, %s49, [#allocation7], 128, 128, 8
    $region9: #{tpu_custom_call.1} parent=1 // pred_fallthru
      _
    // Predicated region
    $region10: #{tpu_custom_call.1} parent=1 // pred_check
      _
    $region11: #{tpu_custom_call.1} parent=1 // pred_check_branch
      %56 = sbr.rel (0) target = $region13
    $region12: #{tpu_custom_call.1} parent=1 // pred_region
      _
    $region13: #{tpu_custom_call.1} parent=1 // pred_fallthru
      _
    // Predicated region
    $region14: #{tpu_custom_call.1} parent=1 // pred_check
      _
    $region15: #{tpu_custom_call.1} parent=1 // pred_check_branch
      %58 = sbr.rel (0) target = $region17
    $region16: #{tpu_custom_call.1} parent=1 // pred_region
      _
    $region17: #{tpu_custom_call.1} parent=1 // pred_fallthru
      _
    // Predicated region
    $region18: #{tpu_custom_call.1} parent=1 // pred_check
      _
    $region19: #{tpu_custom_call.1} parent=1 // pred_check_branch
      %60 = sbr.rel (0) target = $region21
    $region20: #{tpu_custom_call.1} parent=1 // pred_region
      %62 = vsyncadd [#allocation7], 0
      %s63 = sshll.u32 %s4, 4
      %s64 = int_to_ptr.hbm [resolvable:$true] %s63
      %s65 = sshll.u32 [#allocation8], 4
      %s66 = int_to_ptr.vmem [resolvable:$true] %s65
      %71 = dma.hbm_to_vmem [thread:$0]  %s64, 1024, %s66, [#allocation7], 64, 64, 4
    $region21: #{tpu_custom_call.1} parent=1 // pred_fallthru
      _
    // Predicated region
    $region22: #{tpu_custom_call.1} parent=1 // pred_check
      _
    $region23: #{tpu_custom_call.1} parent=1 // pred_check_branch
      %73 = sbr.rel (0) target = $region25
    $region24: #{tpu_custom_call.1} parent=1 // pred_region
      %75 = vsyncadd [#allocation10], 0
      %s76 = sshll.u32 %s5, 4
      %s77 = int_to_ptr.hbm [resolvable:$true] %s76
      %s78 = sshll.u32 [#allocation9], 4
      %s79 = int_to_ptr.vmem [resolvable:$true] %s78
      %84 = dma.hbm_to_vmem [thread:$0]  %s77, 1024, %s79, [#allocation10], 64, 64, 4
    $region25: #{tpu_custom_call.1} parent=1 // pred_fallthru
      _
    // Predicated region
    $region26: #{tpu_custom_call.1} parent=1 // pred_check
      _
    $region27: #{tpu_custom_call.1} parent=1 // pred_check_branch
      %86 = sbr.rel (0) target = $region29
    $region28: #{tpu_custom_call.1} parent=1 // pred_region
      %88 = vsyncadd [#allocation10], 0
      %s89 = sshll.u32 %s6, 4
      %s90 = int_to_ptr.hbm [resolvable:$true] %s89
      %s91 = sshll.u32 [#allocation11], 4
      %s92 = int_to_ptr.vmem [resolvable:$true] %s91
      %97 = dma.hbm_to_vmem [thread:$0]  %s90, 1024, %s92, [#allocation10], 64, 64, 4
    $region29: #{tpu_custom_call.1} parent=1 // pred_fallthru
      _
    // Predicated region
    $region30: #{tpu_custom_call.1} parent=1 // pred_check
      _
    $region31: #{tpu_custom_call.1} parent=1 // pred_check_branch
      %99 = sbr.rel (0) target = $region33
    $region32: #{tpu_custom_call.1} parent=1 // pred_region
      _
    $region33: #{tpu_custom_call.1} parent=1 // pred_fallthru
      _
    // Predicated region
    $region34: #{tpu_custom_call.1} parent=1 // pred_check
      _
    $region35: #{tpu_custom_call.1} parent=1 // pred_check_branch
      %101 = sbr.rel (0) target = $region37
    $region36: #{tpu_custom_call.1} parent=1 // pred_region
      _
    $region37: #{tpu_custom_call.1} parent=1 // pred_fallthru
      _
    // Predicated region
    $region38: #{tpu_custom_call.1} parent=1 // pred_check
      _
    $region39: #{tpu_custom_call.1} parent=1 // pred_check_branch
      %103 = sbr.rel (0) target = $region41
    $region40: #{tpu_custom_call.1} parent=1 // pred_region
      _
    $region41: #{tpu_custom_call.1} parent=1 // pred_fallthru
      _
    // Predicated region
    $region42: #{tpu_custom_call.1} parent=1 // pred_check
      _
    $region43: #{tpu_custom_call.1} parent=1 // pred_check_branch
      %105 = sbr.rel (0) target = $region45
    $region44: #{tpu_custom_call.1} parent=1 // pred_region
      %107 = vsyncadd [#allocation13], 0
      %s108 = sshll.u32 %s10, 4
      %s109 = int_to_ptr.hbm [resolvable:$true] %s108
      %s110 = sshll.u32 [#allocation12], 4
      %s111 = int_to_ptr.vmem [resolvable:$true] %s110
      %116 = dma.hbm_to_vmem [thread:$0]  %s109, 1024, %s111, [#allocation13], 64, 64, 4
    $region45: #{tpu_custom_call.1} parent=1 // pred_fallthru
      _
    // Predicated region
    $region46: #{tpu_custom_call.1} parent=1 // pred_check
      _
    $region47: #{tpu_custom_call.1} parent=1 // pred_check_branch
      %118 = sbr.rel (0) target = $region49
    $region48: #{tpu_custom_call.1} parent=1 // pred_region
      _
    $region49: #{tpu_custom_call.1} parent=1 // pred_fallthru
      _
    // Predicated region
    $region50: #{tpu_custom_call.1} parent=1 // pred_check
      _
    $region51: #{tpu_custom_call.1} parent=1 // pred_check_branch
      %120 = sbr.rel (0) target = $region53
    $region52: #{tpu_custom_call.1} parent=1 // pred_region
      _
    $region53: #{tpu_custom_call.1} parent=1 // pred_fallthru
      _
    // Predicated region
    $region54: #{tpu_custom_call.1} parent=1 // pred_check
      _
    $region55: #{tpu_custom_call.1} parent=1 // pred_check_branch
      %122 = sbr.rel (0) target = $region57
    $region56: #{tpu_custom_call.1} parent=1 // pred_region
      _
    $region57: #{tpu_custom_call.1} parent=1 // pred_fallthru
      _
    // Predicated region
    $region58: #{tpu_custom_call.1} parent=1 // pred_check
      _
    $region59: #{tpu_custom_call.1} parent=1 // pred_check_branch
      %124 = sbr.rel (0) target = $region61
    $region60: #{tpu_custom_call.1} parent=1 // pred_region
      %126 = vsyncadd [#allocation13], 0
      %s127 = sshll.u32 %s14, 4
      %s128 = int_to_ptr.hbm [resolvable:$true] %s127
      %s129 = sshll.u32 [#allocation14], 4
      %s130 = int_to_ptr.vmem [resolvable:$true] %s129
      %135 = dma.hbm_to_vmem [thread:$0]  %s128, 2048, %s130, [#allocation13], 128, 128, 8
    $region61: #{tpu_custom_call.1} parent=1 // pred_fallthru
      _
    // Predicated region
    $region62: #{tpu_custom_call.1} parent=1 // pred_check
      _
    $region63: #{tpu_custom_call.1} parent=1 // pred_check_branch
      %137 = sbr.rel (0) target = $region65
    $region64: #{tpu_custom_call.1} parent=1 // pred_region
      %139 = vsyncadd [#allocation16], 0
      %s140 = sshll.u32 %s15, 4
      %s141 = int_to_ptr.hbm [resolvable:$true] %s140
      %s142 = sshll.u32 [#allocation15], 4
      %s143 = int_to_ptr.vmem [resolvable:$true] %s142
      %148 = dma.hbm_to_vmem [thread:$0]  %s141, 2048, %s143, [#allocation16], 64, 64, 4
    $region65: #{tpu_custom_call.1} parent=1 // pred_fallthru
      _
    // Predicated region
    $region66: #{tpu_custom_call.1} parent=1 // pred_check
      _
    $region67: #{tpu_custom_call.1} parent=1 // pred_check_branch
      %150 = sbr.rel (0) target = $region69
    $region68: #{tpu_custom_call.1} parent=1 // pred_region
      %152 = vsyncadd [#allocation5], 0
      %s154 = sshll.u32 %s16, 4
      %s155 = int_to_ptr.vmem [resolvable:$true] %s154
      %157 = dma.vmem_to_smem %s155, 16, [#allocation17], [#allocation5]
    $region69: #{tpu_custom_call.1} parent=1 // pred_fallthru
      _
    // Predicated region
    $region70: #{tpu_custom_call.1} parent=1 // pred_check
      _
    $region71: #{tpu_custom_call.1} parent=1 // pred_check_branch
      %159 = sbr.rel (0) target = $region73
    $region72: #{tpu_custom_call.1} parent=1 // pred_region
      %161 = dma.done [#allocation3], 2048
    $region73: #{tpu_custom_call.1} parent=1 // pred_fallthru
      _
    // Predicated region
    $region74: #{tpu_custom_call.1} parent=1 // pred_check
      _
    $region75: #{tpu_custom_call.1} parent=1 // pred_check_branch
      %163 = sbr.rel (0) target = $region77
    $region76: #{tpu_custom_call.1} parent=1 // pred_region
      %165 = dma.done [#allocation7], 2048
    $region77: #{tpu_custom_call.1} parent=1 // pred_fallthru
      _
    // Predicated region
    $region78: #{tpu_custom_call.1} parent=1 // pred_check
      _
    $region79: #{tpu_custom_call.1} parent=1 // pred_check_branch
      %167 = sbr.rel (0) target = $region81
    $region80: #{tpu_custom_call.1} parent=1 // pred_region
      %169 = dma.done [#allocation7], 1024
    $region81: #{tpu_custom_call.1} parent=1 // pred_fallthru
      _
    // Predicated region
    $region82: #{tpu_custom_call.1} parent=1 // pred_check
      _
    $region83: #{tpu_custom_call.1} parent=1 // pred_check_branch
      %171 = sbr.rel (0) target = $region85
    $region84: #{tpu_custom_call.1} parent=1 // pred_region
      %173 = dma.done [#allocation10], 1024
    $region85: #{tpu_custom_call.1} parent=1 // pred_fallthru
      _
    // Predicated region
    $region86: #{tpu_custom_call.1} parent=1 // pred_check
      _
    $region87: #{tpu_custom_call.1} parent=1 // pred_check_branch
      %175 = sbr.rel (0) target = $region89
    $region88: #{tpu_custom_call.1} parent=1 // pred_region
      %177 = dma.done [#allocation10], 1024
    $region89: #{tpu_custom_call.1} parent=1 // pred_fallthru
      _
    // Predicated region
    $region90: #{tpu_custom_call.1} parent=1 // pred_check
      _
    $region91: #{tpu_custom_call.1} parent=1 // pred_check_branch
      %179 = sbr.rel (0) target = $region93
    $region92: #{tpu_custom_call.1} parent=1 // pred_region
      %181 = dma.done [#allocation13], 1024
    $region93: #{tpu_custom_call.1} parent=1 // pred_fallthru
      _
    // Predicated region
    $region94: #{tpu_custom_call.1} parent=1 // pred_check
      _
    $region95: #{tpu_custom_call.1} parent=1 // pred_check_branch
      %183 = sbr.rel (0) target = $region97
    $region96: #{tpu_custom_call.1} parent=1 // pred_region
      %185 = dma.done [#allocation13], 2048
    $region97: #{tpu_custom_call.1} parent=1 // pred_fallthru
      _
    // Predicated region
    $region98: #{tpu_custom_call.1} parent=1 // pred_check
      _
    $region99: #{tpu_custom_call.1} parent=1 // pred_check_branch
      %187 = sbr.rel (0) target = $region101
    $region100: #{tpu_custom_call.1} parent=1 // pred_region
      %189 = dma.done [#allocation16], 2048
    $region101: #{tpu_custom_call.1} parent=1 // pred_fallthru
      _
    // Predicated region
    $region102: #{tpu_custom_call.1} parent=1 // pred_check
      _
    $region103: #{tpu_custom_call.1} parent=1 // pred_check_branch
      %191 = sbr.rel (0) target = $region105
    $region104: #{tpu_custom_call.1} parent=1 // pred_region
      %193 = dma.done [#allocation5], 16
    $region105: #{tpu_custom_call.1} parent=1 // pred_fallthru
      _
    %194 = sfence
    %v196 = vld [vmem:[#allocation2] sm:$0xff]
    %v197 = vld [vmem:[#allocation2 + $0x8] sm:$0xff]
    %v198 = vld [vmem:[#allocation2 + $0x10] sm:$0xff]
    %v199 = vld [vmem:[#allocation2 + $0x18] sm:$0xff]
    %v200 = vld [vmem:[#allocation2 + $0x20] sm:$0xff]
    %v201 = vld [vmem:[#allocation2 + $0x28] sm:$0xff]
    %v202 = vld [vmem:[#allocation2 + $0x30] sm:$0xff]
    %v203 = vld [vmem:[#allocation2 + $0x38] sm:$0xff]
    %v204 = vld [vmem:[#allocation2 + $0x40] sm:$0xff]
    %v205 = vld [vmem:[#allocation2 + $0x48] sm:$0xff]
    %v206 = vld [vmem:[#allocation2 + $0x50] sm:$0xff]
    %v207 = vld [vmem:[#allocation2 + $0x58] sm:$0xff]
    %v208 = vld [vmem:[#allocation2 + $0x60] sm:$0xff]
    %v209 = vld [vmem:[#allocation2 + $0x68] sm:$0xff]
    %v210 = vld [vmem:[#allocation2 + $0x70] sm:$0xff]
    %v211 = vld [vmem:[#allocation2 + $0x78] sm:$0xff]
    %v212 = vld [vmem:[#allocation6] sm:$0xff]
    %v213 = vld [vmem:[#allocation6 + $0x8] sm:$0xff]
    %v214 = vld [vmem:[#allocation6 + $0x10] sm:$0xff]
    %v215 = vld [vmem:[#allocation6 + $0x18] sm:$0xff]
    %v216 = vld [vmem:[#allocation6 + $0x20] sm:$0xff]
    %v217 = vld [vmem:[#allocation6 + $0x28] sm:$0xff]
    %v218 = vld [vmem:[#allocation6 + $0x30] sm:$0xff]
    %v219 = vld [vmem:[#allocation6 + $0x38] sm:$0xff]
    %v220 = vld [vmem:[#allocation6 + $0x40] sm:$0xff]
    %v221 = vld [vmem:[#allocation6 + $0x48] sm:$0xff]
    %v222 = vld [vmem:[#allocation6 + $0x50] sm:$0xff]
    %v223 = vld [vmem:[#allocation6 + $0x58] sm:$0xff]
    %v224 = vld [vmem:[#allocation6 + $0x60] sm:$0xff]
    %v225 = vld [vmem:[#allocation6 + $0x68] sm:$0xff]
    %v226 = vld [vmem:[#allocation6 + $0x70] sm:$0xff]
    %v227 = vld [vmem:[#allocation6 + $0x78] sm:$0xff]
    %v228 = vld [vmem:[%s2] sm:$0x1]
    %v229 = vld [vmem:[%s3] sm:$0x1]
    %230 = vadd.xlane.f32.xlu0 %v196
    %v231 = vpop.xlane.xlu0 %230
    %232 = vadd.xlane.f32.xlu0 %v197
    %v233 = vpop.xlane.xlu0 %232
    %234 = vadd.xlane.f32.xlu0 %v198
    %v235 = vpop.xlane.xlu0 %234
    %236 = vadd.xlane.f32.xlu0 %v199
    %v237 = vpop.xlane.xlu0 %236
    %238 = vadd.xlane.f32.xlu0 %v200
    %v239 = vpop.xlane.xlu0 %238
    %240 = vadd.xlane.f32.xlu0 %v201
    %v241 = vpop.xlane.xlu0 %240
    %242 = vadd.xlane.f32.xlu0 %v202
    %v243 = vpop.xlane.xlu0 %242
    %244 = vadd.xlane.f32.xlu0 %v203
    %v245 = vpop.xlane.xlu0 %244
    %246 = vadd.xlane.f32.xlu0 %v204
    %v247 = vpop.xlane.xlu0 %246
    %248 = vadd.xlane.f32.xlu0 %v205
    %v249 = vpop.xlane.xlu0 %248
    %250 = vadd.xlane.f32.xlu0 %v206
    %v251 = vpop.xlane.xlu0 %250
    %252 = vadd.xlane.f32.xlu0 %v207
    %v253 = vpop.xlane.xlu0 %252
    %254 = vadd.xlane.f32.xlu0 %v208
    %v255 = vpop.xlane.xlu0 %254
    %256 = vadd.xlane.f32.xlu0 %v209
    %v257 = vpop.xlane.xlu0 %256
    %258 = vadd.xlane.f32.xlu0 %v210
    %v259 = vpop.xlane.xlu0 %258
    %260 = vadd.xlane.f32.xlu0 %v211
    %v261 = vpop.xlane.xlu0 %260
    %v262 = vrcp.pop 128.0
    %v263 = vmul.f32 128.0, %v262
    %v264 = vsub.f32 1.0, %v263
    %v265 = vmul.f32 %v262, %v264
    %v266 = vadd.f32 %v262, %v265
    %vm267 = vweird.f32 %v262
    %v268 = vsel %vm267, %v262, %v266
    %v269 = vmul.f32 %v231, %v268
    %v270 = vmul.f32 %v233, %v268
    %v271 = vmul.f32 %v235, %v268
    %v272 = vmul.f32 %v237, %v268
    %v273 = vmul.f32 %v239, %v268
    %v274 = vmul.f32 %v241, %v268
    %v275 = vmul.f32 %v243, %v268
    %v276 = vmul.f32 %v245, %v268
    %v277 = vmul.f32 %v247, %v268
    %v278 = vmul.f32 %v249, %v268
    %v279 = vmul.f32 %v251, %v268
    %v280 = vmul.f32 %v253, %v268
    %v281 = vmul.f32 %v255, %v268
    %v282 = vmul.f32 %v257, %v268
    %v283 = vmul.f32 %v259, %v268
    %v284 = vmul.f32 %v261, %v268
    %v285 = vsub.f32 %v196, %v269
    %v286 = vsub.f32 %v197, %v270
    %v287 = vsub.f32 %v198, %v271
    %v288 = vsub.f32 %v199, %v272
    %v289 = vsub.f32 %v200, %v273
    %v290 = vsub.f32 %v201, %v274
    %v291 = vsub.f32 %v202, %v275
    %v292 = vsub.f32 %v203, %v276
    %v293 = vsub.f32 %v204, %v277
    %v294 = vsub.f32 %v205, %v278
    %v295 = vsub.f32 %v206, %v279
    %v296 = vsub.f32 %v207, %v280
    %v297 = vsub.f32 %v208, %v281
    %v298 = vsub.f32 %v209, %v282
    %v299 = vsub.f32 %v210, %v283
    %v300 = vsub.f32 %v211, %v284
    %v301 = vmul.f32 %v285, %v285
    %v302 = vmul.f32 %v286, %v286
    %v303 = vmul.f32 %v287, %v287
    %v304 = vmul.f32 %v288, %v288
    %v305 = vmul.f32 %v289, %v289
    %v306 = vmul.f32 %v290, %v290
    %v307 = vmul.f32 %v291, %v291
    %v308 = vmul.f32 %v292, %v292
    %v309 = vmul.f32 %v293, %v293
    %v310 = vmul.f32 %v294, %v294
    %v311 = vmul.f32 %v295, %v295
    %v312 = vmul.f32 %v296, %v296
    %v313 = vmul.f32 %v297, %v297
    %v314 = vmul.f32 %v298, %v298
    %v315 = vmul.f32 %v299, %v299
    %v316 = vmul.f32 %v300, %v300
    %317 = vadd.xlane.f32.xlu0 %v301
    %v318 = vpop.xlane.xlu0 %317
    %319 = vadd.xlane.f32.xlu0 %v302
    %v320 = vpop.xlane.xlu0 %319
    %321 = vadd.xlane.f32.xlu0 %v303
    %v322 = vpop.xlane.xlu0 %321
    %323 = vadd.xlane.f32.xlu0 %v304
    %v324 = vpop.xlane.xlu0 %323
    %325 = vadd.xlane.f32.xlu0 %v305
    %v326 = vpop.xlane.xlu0 %325
    %327 = vadd.xlane.f32.xlu0 %v306
    %v328 = vpop.xlane.xlu0 %327
    %329 = vadd.xlane.f32.xlu0 %v307
    %v330 = vpop.xlane.xlu0 %329
    %331 = vadd.xlane.f32.xlu0 %v308
    %v332 = vpop.xlane.xlu0 %331
    %333 = vadd.xlane.f32.xlu0 %v309
    %v334 = vpop.xlane.xlu0 %333
    %335 = vadd.xlane.f32.xlu0 %v310
    %v336 = vpop.xlane.xlu0 %335
    %337 = vadd.xlane.f32.xlu0 %v311
    %v338 = vpop.xlane.xlu0 %337
    %339 = vadd.xlane.f32.xlu0 %v312
    %v340 = vpop.xlane.xlu0 %339
    %341 = vadd.xlane.f32.xlu0 %v313
    %v342 = vpop.xlane.xlu0 %341
    %343 = vadd.xlane.f32.xlu0 %v314
    %v344 = vpop.xlane.xlu0 %343
    %345 = vadd.xlane.f32.xlu0 %v315
    %v346 = vpop.xlane.xlu0 %345
    %347 = vadd.xlane.f32.xlu0 %v316
    %v348 = vpop.xlane.xlu0 %347
    %v349 = vmul.f32 %v318, %v268
    %v350 = vmul.f32 %v320, %v268
    %v351 = vmul.f32 %v322, %v268
    %v352 = vmul.f32 %v324, %v268
    %v353 = vmul.f32 %v326, %v268
    %v354 = vmul.f32 %v328, %v268
    %v355 = vmul.f32 %v330, %v268
    %v356 = vmul.f32 %v332, %v268
    %v357 = vmul.f32 %v334, %v268
    %v358 = vmul.f32 %v336, %v268
    %v359 = vmul.f32 %v338, %v268
    %v360 = vmul.f32 %v340, %v268
    %v361 = vmul.f32 %v342, %v268
    %v362 = vmul.f32 %v344, %v268
    %v363 = vmul.f32 %v346, %v268
    %v364 = vmul.f32 %v348, %v268
    %v365 = vadd.f32 %v349, 1e-05
    %v366 = vadd.f32 %v350, 1e-05
    %v367 = vadd.f32 %v351, 1e-05
    %v368 = vadd.f32 %v352, 1e-05
    %v369 = vadd.f32 %v353, 1e-05
    %v370 = vadd.f32 %v354, 1e-05
    %v371 = vadd.f32 %v355, 1e-05
    %v372 = vadd.f32 %v356, 1e-05
    %v373 = vadd.f32 %v357, 1e-05
    %v374 = vadd.f32 %v358, 1e-05
    %v375 = vadd.f32 %v359, 1e-05
    %v376 = vadd.f32 %v360, 1e-05
    %v377 = vadd.f32 %v361, 1e-05
    %v378 = vadd.f32 %v362, 1e-05
    %v379 = vadd.f32 %v363, 1e-05
    %v380 = vadd.f32 %v364, 1e-05
    %v381 = vrsqrt.pop %v365
    %v382 = vmul.f32 %v381, %v365
    %v383 = vmul.f32 %v382, %v381
    %v384 = vmul.f32 0.5, %v383
    %v385 = vsub.f32 1.5, %v384
    %v386 = vmul.f32 %v381, %v385
    %vm387 = vweird.f32 %v365
    %vm388 = vweird.f32 %v381
    %vm389 = vmor %vm387, %vm388
    %v390 = vsel %vm389, %v381, %v386
    %v391 = vrsqrt.pop %v366
    %v392 = vmul.f32 %v391, %v366
    %v393 = vmul.f32 %v392, %v391
    %v394 = vmul.f32 0.5, %v393
    %v395 = vsub.f32 1.5, %v394
    %v396 = vmul.f32 %v391, %v395
    %vm397 = vweird.f32 %v366
    %vm398 = vweird.f32 %v391
    %vm399 = vmor %vm397, %vm398
    %v400 = vsel %vm399, %v391, %v396
    %v401 = vrsqrt.pop %v367
    %v402 = vmul.f32 %v401, %v367
    %v403 = vmul.f32 %v402, %v401
    %v404 = vmul.f32 0.5, %v403
    %v405 = vsub.f32 1.5, %v404
    %v406 = vmul.f32 %v401, %v405
    %vm407 = vweird.f32 %v367
    %vm408 = vweird.f32 %v401
    %vm409 = vmor %vm407, %vm408
    %v410 = vsel %vm409, %v401, %v406
    %v411 = vrsqrt.pop %v368
    %v412 = vmul.f32 %v411, %v368
    %v413 = vmul.f32 %v412, %v411
    %v414 = vmul.f32 0.5, %v413
    %v415 = vsub.f32 1.5, %v414
    %v416 = vmul.f32 %v411, %v415
    %vm417 = vweird.f32 %v368
    %vm418 = vweird.f32 %v411
    %vm419 = vmor %vm417, %vm418
    %v420 = vsel %vm419, %v411, %v416
    %v421 = vrsqrt.pop %v369
    %v422 = vmul.f32 %v421, %v369
    %v423 = vmul.f32 %v422, %v421
    %v424 = vmul.f32 0.5, %v423
    %v425 = vsub.f32 1.5, %v424
    %v426 = vmul.f32 %v421, %v425
    %vm427 = vweird.f32 %v369
    %vm428 = vweird.f32 %v421
    %vm429 = vmor %vm427, %vm428
    %v430 = vsel %vm429, %v421, %v426
    %v431 = vrsqrt.pop %v370
    %v432 = vmul.f32 %v431, %v370
    %v433 = vmul.f32 %v432, %v431
    %v434 = vmul.f32 0.5, %v433
    %v435 = vsub.f32 1.5, %v434
    %v436 = vmul.f32 %v431, %v435
    %vm437 = vweird.f32 %v370
    %vm438 = vweird.f32 %v431
    %vm439 = vmor %vm437, %vm438
    %v440 = vsel %vm439, %v431, %v436
    %v441 = vrsqrt.pop %v371
    %v442 = vmul.f32 %v441, %v371
    %v443 = vmul.f32 %v442, %v441
    %v444 = vmul.f32 0.5, %v443
    %v445 = vsub.f32 1.5, %v444
    %v446 = vmul.f32 %v441, %v445
    %vm447 = vweird.f32 %v371
    %vm448 = vweird.f32 %v441
    %vm449 = vmor %vm447, %vm448
    %v450 = vsel %vm449, %v441, %v446
    %v451 = vrsqrt.pop %v372
    %v452 = vmul.f32 %v451, %v372
    %v453 = vmul.f32 %v452, %v451
    %v454 = vmul.f32 0.5, %v453
    %v455 = vsub.f32 1.5, %v454
    %v456 = vmul.f32 %v451, %v455
    %vm457 = vweird.f32 %v372
    %vm458 = vweird.f32 %v451
    %vm459 = vmor %vm457, %vm458
    %v460 = vsel %vm459, %v451, %v456
    %v461 = vrsqrt.pop %v373
    %v462 = vmul.f32 %v461, %v373
    %v463 = vmul.f32 %v462, %v461
    %v464 = vmul.f32 0.5, %v463
    %v465 = vsub.f32 1.5, %v464
    %v466 = vmul.f32 %v461, %v465
    %vm467 = vweird.f32 %v373
    %vm468 = vweird.f32 %v461
    %vm469 = vmor %vm467, %vm468
    %v470 = vsel %vm469, %v461, %v466
    %v471 = vrsqrt.pop %v374
    %v472 = vmul.f32 %v471, %v374
    %v473 = vmul.f32 %v472, %v471
    %v474 = vmul.f32 0.5, %v473
    %v475 = vsub.f32 1.5, %v474
    %v476 = vmul.f32 %v471, %v475
    %vm477 = vweird.f32 %v374
    %vm478 = vweird.f32 %v471
    %vm479 = vmor %vm477, %vm478
    %v480 = vsel %vm479, %v471, %v476
    %v481 = vrsqrt.pop %v375
    %v482 = vmul.f32 %v481, %v375
    %v483 = vmul.f32 %v482, %v481
    %v484 = vmul.f32 0.5, %v483
    %v485 = vsub.f32 1.5, %v484
    %v486 = vmul.f32 %v481, %v485
    %vm487 = vweird.f32 %v375
    %vm488 = vweird.f32 %v481
    %vm489 = vmor %vm487, %vm488
    %v490 = vsel %vm489, %v481, %v486
    %v491 = vrsqrt.pop %v376
    %v492 = vmul.f32 %v491, %v376
    %v493 = vmul.f32 %v492, %v491
    %v494 = vmul.f32 0.5, %v493
    %v495 = vsub.f32 1.5, %v494
    %v496 = vmul.f32 %v491, %v495
    %vm497 = vweird.f32 %v376
    %vm498 = vweird.f32 %v491
    %vm499 = vmor %vm497, %vm498
    %v500 = vsel %vm499, %v491, %v496
    %v501 = vrsqrt.pop %v377
    %v502 = vmul.f32 %v501, %v377
    %v503 = vmul.f32 %v502, %v501
    %v504 = vmul.f32 0.5, %v503
    %v505 = vsub.f32 1.5, %v504
    %v506 = vmul.f32 %v501, %v505
    %vm507 = vweird.f32 %v377
    %vm508 = vweird.f32 %v501
    %vm509 = vmor %vm507, %vm508
    %v510 = vsel %vm509, %v501, %v506
    %v511 = vrsqrt.pop %v378
    %v512 = vmul.f32 %v511, %v378
    %v513 = vmul.f32 %v512, %v511
    %v514 = vmul.f32 0.5, %v513
    %v515 = vsub.f32 1.5, %v514
    %v516 = vmul.f32 %v511, %v515
    %vm517 = vweird.f32 %v378
    %vm518 = vweird.f32 %v511
    %vm519 = vmor %vm517, %vm518
    %v520 = vsel %vm519, %v511, %v516
    %v521 = vrsqrt.pop %v379
    %v522 = vmul.f32 %v521, %v379
    %v523 = vmul.f32 %v522, %v521
    %v524 = vmul.f32 0.5, %v523
    %v525 = vsub.f32 1.5, %v524
    %v526 = vmul.f32 %v521, %v525
    %vm527 = vweird.f32 %v379
    %vm528 = vweird.f32 %v521
    %vm529 = vmor %vm527, %vm528
    %v530 = vsel %vm529, %v521, %v526
    %v531 = vrsqrt.pop %v380
    %v532 = vmul.f32 %v531, %v380
    %v533 = vmul.f32 %v532, %v531
    %v534 = vmul.f32 0.5, %v533
    %v535 = vsub.f32 1.5, %v534
    %v536 = vmul.f32 %v531, %v535
    %vm537 = vweird.f32 %v380
    %vm538 = vweird.f32 %v531
    %vm539 = vmor %vm537, %vm538
    %v540 = vsel %vm539, %v531, %v536
    %v541 = vmul.f32 %v285, %v390
    %v542 = vmul.f32 %v286, %v400
    %v543 = vmul.f32 %v287, %v410
    %v544 = vmul.f32 %v288, %v420
    %v545 = vmul.f32 %v289, %v430
    %v546 = vmul.f32 %v290, %v440
    %v547 = vmul.f32 %v291, %v450
    %v548 = vmul.f32 %v292, %v460
    %v549 = vmul.f32 %v293, %v470
    %v550 = vmul.f32 %v294, %v480
    %v551 = vmul.f32 %v295, %v490
    %v552 = vmul.f32 %v296, %v500
    %v553 = vmul.f32 %v297, %v510
    %v554 = vmul.f32 %v298, %v520
    %v555 = vmul.f32 %v299, %v530
    %v556 = vmul.f32 %v300, %v540
    %v558 = vperm.slane %v228, 0
    %v560 = vmul.f32 %v541, %v558
    %v561 = vmul.f32 %v542, %v558
    %v562 = vmul.f32 %v543, %v558
    %v563 = vmul.f32 %v544, %v558
    %v564 = vmul.f32 %v545, %v558
    %v565 = vmul.f32 %v546, %v558
    %v566 = vmul.f32 %v547, %v558
    %v567 = vmul.f32 %v548, %v558
    %v568 = vmul.f32 %v549, %v558
    %v569 = vmul.f32 %v550, %v558
    %v570 = vmul.f32 %v551, %v558
    %v571 = vmul.f32 %v552, %v558
    %v572 = vmul.f32 %v553, %v558
    %v573 = vmul.f32 %v554, %v558
    %v574 = vmul.f32 %v555, %v558
    %v575 = vmul.f32 %v556, %v558
    %v577 = vperm.slane %v229, 0
    %v579 = vadd.f32 %v560, %v577
    %v580 = vadd.f32 %v561, %v577
    %v581 = vadd.f32 %v562, %v577
    %v582 = vadd.f32 %v563, %v577
    %v583 = vadd.f32 %v564, %v577
    %v584 = vadd.f32 %v565, %v577
    %v585 = vadd.f32 %v566, %v577
    %v586 = vadd.f32 %v567, %v577
    %v587 = vadd.f32 %v568, %v577
    %v588 = vadd.f32 %v569, %v577
    %v589 = vadd.f32 %v570, %v577
    %v590 = vadd.f32 %v571, %v577
    %v591 = vadd.f32 %v572, %v577
    %v592 = vadd.f32 %v573, %v577
    %v593 = vadd.f32 %v574, %v577
    %v594 = vadd.f32 %v575, %v577
    %v595 = vpack.c.bf16 %v580, %v579
    %v596 = vpack.c.bf16 %v582, %v581
    %v597 = vpack.c.bf16 %v584, %v583
    %v598 = vpack.c.bf16 %v586, %v585
    %v599 = vpack.c.bf16 %v588, %v587
    %v600 = vpack.c.bf16 %v590, %v589
    %v601 = vpack.c.bf16 %v592, %v591
    %v602 = vpack.c.bf16 %v594, %v593
    %603 = vadd.xlane.f32.xlu0 %v212
    %v604 = vpop.xlane.xlu0 %603
    %605 = vadd.xlane.f32.xlu0 %v213
    %v606 = vpop.xlane.xlu0 %605
    %607 = vadd.xlane.f32.xlu0 %v214
    %v608 = vpop.xlane.xlu0 %607
    %609 = vadd.xlane.f32.xlu0 %v215
    %v610 = vpop.xlane.xlu0 %609
    %611 = vadd.xlane.f32.xlu0 %v216
    %v612 = vpop.xlane.xlu0 %611
    %613 = vadd.xlane.f32.xlu0 %v217
    %v614 = vpop.xlane.xlu0 %613
    %615 = vadd.xlane.f32.xlu0 %v218
    %v616 = vpop.xlane.xlu0 %615
    %617 = vadd.xlane.f32.xlu0 %v219
    %v618 = vpop.xlane.xlu0 %617
    %619 = vadd.xlane.f32.xlu0 %v220
    %v620 = vpop.xlane.xlu0 %619
    %621 = vadd.xlane.f32.xlu0 %v221
    %v622 = vpop.xlane.xlu0 %621
    %623 = vadd.xlane.f32.xlu0 %v222
    %v624 = vpop.xlane.xlu0 %623
    %625 = vadd.xlane.f32.xlu0 %v223
    %v626 = vpop.xlane.xlu0 %625
    %627 = vadd.xlane.f32.xlu0 %v224
    %v628 = vpop.xlane.xlu0 %627
    %629 = vadd.xlane.f32.xlu0 %v225
    %v630 = vpop.xlane.xlu0 %629
    %631 = vadd.xlane.f32.xlu0 %v226
    %v632 = vpop.xlane.xlu0 %631
    %633 = vadd.xlane.f32.xlu0 %v227
    %v634 = vpop.xlane.xlu0 %633
    %v635 = vmul.f32 %v604, %v268
    %v636 = vmul.f32 %v606, %v268
    %v637 = vmul.f32 %v608, %v268
    %v638 = vmul.f32 %v610, %v268
    %v639 = vmul.f32 %v612, %v268
    %v640 = vmul.f32 %v614, %v268
    %v641 = vmul.f32 %v616, %v268
    %v642 = vmul.f32 %v618, %v268
    %v643 = vmul.f32 %v620, %v268
    %v644 = vmul.f32 %v622, %v268
    %v645 = vmul.f32 %v624, %v268
    %v646 = vmul.f32 %v626, %v268
    %v647 = vmul.f32 %v628, %v268
    %v648 = vmul.f32 %v630, %v268
    %v649 = vmul.f32 %v632, %v268
    %v650 = vmul.f32 %v634, %v268
    %v651 = vsub.f32 %v212, %v635
    %v652 = vsub.f32 %v213, %v636
    %v653 = vsub.f32 %v214, %v637
    %v654 = vsub.f32 %v215, %v638
    %v655 = vsub.f32 %v216, %v639
    %v656 = vsub.f32 %v217, %v640
    %v657 = vsub.f32 %v218, %v641
    %v658 = vsub.f32 %v219, %v642
    %v659 = vsub.f32 %v220, %v643
    %v660 = vsub.f32 %v221, %v644
    %v661 = vsub.f32 %v222, %v645
    %v662 = vsub.f32 %v223, %v646
    %v663 = vsub.f32 %v224, %v647
    %v664 = vsub.f32 %v225, %v648
    %v665 = vsub.f32 %v226, %v649
    %v666 = vsub.f32 %v227, %v650
    %v667 = vmul.f32 %v651, %v651
    %v668 = vmul.f32 %v652, %v652
    %v669 = vmul.f32 %v653, %v653
    %v670 = vmul.f32 %v654, %v654
    %v671 = vmul.f32 %v655, %v655
    %v672 = vmul.f32 %v656, %v656
    %v673 = vmul.f32 %v657, %v657
    %v674 = vmul.f32 %v658, %v658
    %v675 = vmul.f32 %v659, %v659
    %v676 = vmul.f32 %v660, %v660
    %v677 = vmul.f32 %v661, %v661
    %v678 = vmul.f32 %v662, %v662
    %v679 = vmul.f32 %v663, %v663
    %v680 = vmul.f32 %v664, %v664
    %v681 = vmul.f32 %v665, %v665
    %v682 = vmul.f32 %v666, %v666
    %683 = vadd.xlane.f32.xlu0 %v667
    %v684 = vpop.xlane.xlu0 %683
    %685 = vadd.xlane.f32.xlu0 %v668
    %v686 = vpop.xlane.xlu0 %685
    %687 = vadd.xlane.f32.xlu0 %v669
    %v688 = vpop.xlane.xlu0 %687
    %689 = vadd.xlane.f32.xlu0 %v670
    %v690 = vpop.xlane.xlu0 %689
    %691 = vadd.xlane.f32.xlu0 %v671
    %v692 = vpop.xlane.xlu0 %691
    %693 = vadd.xlane.f32.xlu0 %v672
    %v694 = vpop.xlane.xlu0 %693
    %695 = vadd.xlane.f32.xlu0 %v673
    %v696 = vpop.xlane.xlu0 %695
    %697 = vadd.xlane.f32.xlu0 %v674
    %v698 = vpop.xlane.xlu0 %697
    %699 = vadd.xlane.f32.xlu0 %v675
    %v700 = vpop.xlane.xlu0 %699
    %701 = vadd.xlane.f32.xlu0 %v676
    %v702 = vpop.xlane.xlu0 %701
    %703 = vadd.xlane.f32.xlu0 %v677
    %v704 = vpop.xlane.xlu0 %703
    %705 = vadd.xlane.f32.xlu0 %v678
    %v706 = vpop.xlane.xlu0 %705
    %707 = vadd.xlane.f32.xlu0 %v679
    %v708 = vpop.xlane.xlu0 %707
    %709 = vadd.xlane.f32.xlu0 %v680
    %v710 = vpop.xlane.xlu0 %709
    %711 = vadd.xlane.f32.xlu0 %v681
    %v712 = vpop.xlane.xlu0 %711
    %713 = vadd.xlane.f32.xlu0 %v682
    %v714 = vpop.xlane.xlu0 %713
    %v715 = vmul.f32 %v684, %v268
    %v716 = vmul.f32 %v686, %v268
    %v717 = vmul.f32 %v688, %v268
    %v718 = vmul.f32 %v690, %v268
    %v719 = vmul.f32 %v692, %v268
    %v720 = vmul.f32 %v694, %v268
    %v721 = vmul.f32 %v696, %v268
    %v722 = vmul.f32 %v698, %v268
    %v723 = vmul.f32 %v700, %v268
    %v724 = vmul.f32 %v702, %v268
    %v725 = vmul.f32 %v704, %v268
    %v726 = vmul.f32 %v706, %v268
    %v727 = vmul.f32 %v708, %v268
    %v728 = vmul.f32 %v710, %v268
    %v729 = vmul.f32 %v712, %v268
    %v730 = vmul.f32 %v714, %v268
    %v731 = vadd.f32 %v715, 1e-05
    %v732 = vadd.f32 %v716, 1e-05
    %v733 = vadd.f32 %v717, 1e-05
    %v734 = vadd.f32 %v718, 1e-05
    %v735 = vadd.f32 %v719, 1e-05
    %v736 = vadd.f32 %v720, 1e-05
    %v737 = vadd.f32 %v721, 1e-05
    %v738 = vadd.f32 %v722, 1e-05
    %v739 = vadd.f32 %v723, 1e-05
    %v740 = vadd.f32 %v724, 1e-05
    %v741 = vadd.f32 %v725, 1e-05
    %v742 = vadd.f32 %v726, 1e-05
    %v743 = vadd.f32 %v727, 1e-05
    %v744 = vadd.f32 %v728, 1e-05
    %v745 = vadd.f32 %v729, 1e-05
    %v746 = vadd.f32 %v730, 1e-05
    %v747 = vrsqrt.pop %v731
    %v748 = vmul.f32 %v747, %v731
    %v749 = vmul.f32 %v748, %v747
    %v750 = vmul.f32 0.5, %v749
    %v751 = vsub.f32 1.5, %v750
    %v752 = vmul.f32 %v747, %v751
    %vm753 = vweird.f32 %v731
    %vm754 = vweird.f32 %v747
    %vm755 = vmor %vm753, %vm754
    %v756 = vsel %vm755, %v747, %v752
    %v757 = vrsqrt.pop %v732
    %v758 = vmul.f32 %v757, %v732
    %v759 = vmul.f32 %v758, %v757
    %v760 = vmul.f32 0.5, %v759
    %v761 = vsub.f32 1.5, %v760
    %v762 = vmul.f32 %v757, %v761
    %vm763 = vweird.f32 %v732
    %vm764 = vweird.f32 %v757
    %vm765 = vmor %vm763, %vm764
    %v766 = vsel %vm765, %v757, %v762
    %v767 = vrsqrt.pop %v733
    %v768 = vmul.f32 %v767, %v733
    %v769 = vmul.f32 %v768, %v767
    %v770 = vmul.f32 0.5, %v769
    %v771 = vsub.f32 1.5, %v770
    %v772 = vmul.f32 %v767, %v771
    %vm773 = vweird.f32 %v733
    %vm774 = vweird.f32 %v767
    %vm775 = vmor %vm773, %vm774
    %v776 = vsel %vm775, %v767, %v772
    %v777 = vrsqrt.pop %v734
    %v778 = vmul.f32 %v777, %v734
    %v779 = vmul.f32 %v778, %v777
    %v780 = vmul.f32 0.5, %v779
    %v781 = vsub.f32 1.5, %v780
    %v782 = vmul.f32 %v777, %v781
    %vm783 = vweird.f32 %v734
    %vm784 = vweird.f32 %v777
    %vm785 = vmor %vm783, %vm784
    %v786 = vsel %vm785, %v777, %v782
    %v787 = vrsqrt.pop %v735
    %v788 = vmul.f32 %v787, %v735
    %v789 = vmul.f32 %v788, %v787
    %v790 = vmul.f32 0.5, %v789
    %v791 = vsub.f32 1.5, %v790
    %v792 = vmul.f32 %v787, %v791
    %vm793 = vweird.f32 %v735
    %vm794 = vweird.f32 %v787
    %vm795 = vmor %vm793, %vm794
    %v796 = vsel %vm795, %v787, %v792
    %v797 = vrsqrt.pop %v736
    %v798 = vmul.f32 %v797, %v736
    %v799 = vmul.f32 %v798, %v797
    %v800 = vmul.f32 0.5, %v799
    %v801 = vsub.f32 1.5, %v800
    %v802 = vmul.f32 %v797, %v801
    %vm803 = vweird.f32 %v736
    %vm804 = vweird.f32 %v797
    %vm805 = vmor %vm803, %vm804
    %v806 = vsel %vm805, %v797, %v802
    %v807 = vrsqrt.pop %v737
    %v808 = vmul.f32 %v807, %v737
    %v809 = vmul.f32 %v808, %v807
    %v810 = vmul.f32 0.5, %v809
    %v811 = vsub.f32 1.5, %v810
    %v812 = vmul.f32 %v807, %v811
    %vm813 = vweird.f32 %v737
    %vm814 = vweird.f32 %v807
    %vm815 = vmor %vm813, %vm814
    %v816 = vsel %vm815, %v807, %v812
    %v817 = vrsqrt.pop %v738
    %v818 = vmul.f32 %v817, %v738
    %v819 = vmul.f32 %v818, %v817
    %v820 = vmul.f32 0.5, %v819
    %v821 = vsub.f32 1.5, %v820
    %v822 = vmul.f32 %v817, %v821
    %vm823 = vweird.f32 %v738
    %vm824 = vweird.f32 %v817
    %vm825 = vmor %vm823, %vm824
    %v826 = vsel %vm825, %v817, %v822
    %v827 = vrsqrt.pop %v739
    %v828 = vmul.f32 %v827, %v739
    %v829 = vmul.f32 %v828, %v827
    %v830 = vmul.f32 0.5, %v829
    %v831 = vsub.f32 1.5, %v830
    %v832 = vmul.f32 %v827, %v831
    %vm833 = vweird.f32 %v739
    %vm834 = vweird.f32 %v827
    %vm835 = vmor %vm833, %vm834
    %v836 = vsel %vm835, %v827, %v832
    %v837 = vrsqrt.pop %v740
    %v838 = vmul.f32 %v837, %v740
    %v839 = vmul.f32 %v838, %v837
    %v840 = vmul.f32 0.5, %v839
    %v841 = vsub.f32 1.5, %v840
    %v842 = vmul.f32 %v837, %v841
    %vm843 = vweird.f32 %v740
    %vm844 = vweird.f32 %v837
    %vm845 = vmor %vm843, %vm844
    %v846 = vsel %vm845, %v837, %v842
    %v847 = vrsqrt.pop %v741
    %v848 = vmul.f32 %v847, %v741
    %v849 = vmul.f32 %v848, %v847
    %v850 = vmul.f32 0.5, %v849
    %v851 = vsub.f32 1.5, %v850
    %v852 = vmul.f32 %v847, %v851
    %vm853 = vweird.f32 %v741
    %vm854 = vweird.f32 %v847
    %vm855 = vmor %vm853, %vm854
    %v856 = vsel %vm855, %v847, %v852
    %v857 = vrsqrt.pop %v742
    %v858 = vmul.f32 %v857, %v742
    %v859 = vmul.f32 %v858, %v857
    %v860 = vmul.f32 0.5, %v859
    %v861 = vsub.f32 1.5, %v860
    %v862 = vmul.f32 %v857, %v861
    %vm863 = vweird.f32 %v742
    %vm864 = vweird.f32 %v857
    %vm865 = vmor %vm863, %vm864
    %v866 = vsel %vm865, %v857, %v862
    %v867 = vrsqrt.pop %v743
    %v868 = vmul.f32 %v867, %v743
    %v869 = vmul.f32 %v868, %v867
    %v870 = vmul.f32 0.5, %v869
    %v871 = vsub.f32 1.5, %v870
    %v872 = vmul.f32 %v867, %v871
    %vm873 = vweird.f32 %v743
    %vm874 = vweird.f32 %v867
    %vm875 = vmor %vm873, %vm874
    %v876 = vsel %vm875, %v867, %v872
    %v877 = vrsqrt.pop %v744
    %v878 = vmul.f32 %v877, %v744
    %v879 = vmul.f32 %v878, %v877
    %v880 = vmul.f32 0.5, %v879
    %v881 = vsub.f32 1.5, %v880
    %v882 = vmul.f32 %v877, %v881
    %vm883 = vweird.f32 %v744
    %vm884 = vweird.f32 %v877
    %vm885 = vmor %vm883, %vm884
    %v886 = vsel %vm885, %v877, %v882
    %v887 = vrsqrt.pop %v745
    %v888 = vmul.f32 %v887, %v745
    %v889 = vmul.f32 %v888, %v887
    %v890 = vmul.f32 0.5, %v889
    %v891 = vsub.f32 1.5, %v890
    %v892 = vmul.f32 %v887, %v891
    %vm893 = vweird.f32 %v745
    %vm894 = vweird.f32 %v887
    %vm895 = vmor %vm893, %vm894
    %v896 = vsel %vm895, %v887, %v892
    %v897 = vrsqrt.pop %v746
    %v898 = vmul.f32 %v897, %v746
    %v899 = vmul.f32 %v898, %v897
    %v900 = vmul.f32 0.5, %v899
    %v901 = vsub.f32 1.5, %v900
    %v902 = vmul.f32 %v897, %v901
    %vm903 = vweird.f32 %v746
    %vm904 = vweird.f32 %v897
    %vm905 = vmor %vm903, %vm904
    %v906 = vsel %vm905, %v897, %v902
    %v907 = vmul.f32 %v651, %v756
    %v908 = vmul.f32 %v652, %v766
    %v909 = vmul.f32 %v653, %v776
    %v910 = vmul.f32 %v654, %v786
    %v911 = vmul.f32 %v655, %v796
    %v912 = vmul.f32 %v656, %v806
    %v913 = vmul.f32 %v657, %v816
    %v914 = vmul.f32 %v658, %v826
    %v915 = vmul.f32 %v659, %v836
    %v916 = vmul.f32 %v660, %v846
    %v917 = vmul.f32 %v661, %v856
    %v918 = vmul.f32 %v662, %v866
    %v919 = vmul.f32 %v663, %v876
    %v920 = vmul.f32 %v664, %v886
    %v921 = vmul.f32 %v665, %v896
    %v922 = vmul.f32 %v666, %v906
    %v923 = vmul.f32 %v907, %v558
    %v924 = vmul.f32 %v908, %v558
    %v925 = vmul.f32 %v909, %v558
    %v926 = vmul.f32 %v910, %v558
    %v927 = vmul.f32 %v911, %v558
    %v928 = vmul.f32 %v912, %v558
    %v929 = vmul.f32 %v913, %v558
    %v930 = vmul.f32 %v914, %v558
    %v931 = vmul.f32 %v915, %v558
    %v932 = vmul.f32 %v916, %v558
    %v933 = vmul.f32 %v917, %v558
    %v934 = vmul.f32 %v918, %v558
    %v935 = vmul.f32 %v919, %v558
    %v936 = vmul.f32 %v920, %v558
    %v937 = vmul.f32 %v921, %v558
    %v938 = vmul.f32 %v922, %v558
    %v939 = vadd.f32 %v923, %v577
    %v940 = vadd.f32 %v924, %v577
    %v941 = vadd.f32 %v925, %v577
    %v942 = vadd.f32 %v926, %v577
    %v943 = vadd.f32 %v927, %v577
    %v944 = vadd.f32 %v928, %v577
    %v945 = vadd.f32 %v929, %v577
    %v946 = vadd.f32 %v930, %v577
    %v947 = vadd.f32 %v931, %v577
    %v948 = vadd.f32 %v932, %v577
    %v949 = vadd.f32 %v933, %v577
    %v950 = vadd.f32 %v934, %v577
    %v951 = vadd.f32 %v935, %v577
    %v952 = vadd.f32 %v936, %v577
    %v953 = vadd.f32 %v937, %v577
    %v954 = vadd.f32 %v938, %v577
    %v955 = vpack.c.bf16 %v940, %v939
    %v956 = vpack.c.bf16 %v942, %v941
    %v957 = vpack.c.bf16 %v944, %v943
    %v958 = vpack.c.bf16 %v946, %v945
    %v959 = vpack.c.bf16 %v948, %v947
    %v960 = vpack.c.bf16 %v950, %v949
    %v961 = vpack.c.bf16 %v952, %v951
    %v962 = vpack.c.bf16 %v954, %v953
    %v963 = vld [vmem:[#allocation8] sm:$0xf]
    %v964 = vld [vmem:[#allocation8 + $0x4] sm:$0xf]
    %v965 = vld [vmem:[#allocation8 + $0x8] sm:$0xf]
    %v966 = vld [vmem:[#allocation8 + $0xc] sm:$0xf]
    %v967 = vld [vmem:[#allocation8 + $0x10] sm:$0xf]
    %v968 = vld [vmem:[#allocation8 + $0x14] sm:$0xf]
    %v969 = vld [vmem:[#allocation8 + $0x18] sm:$0xf]
    %v970 = vld [vmem:[#allocation8 + $0x1c] sm:$0xf]
    %v971 = vld [vmem:[#allocation8 + $0x20] sm:$0xf]
    %v972 = vld [vmem:[#allocation8 + $0x24] sm:$0xf]
    %v973 = vld [vmem:[#allocation8 + $0x28] sm:$0xf]
    %v974 = vld [vmem:[#allocation8 + $0x2c] sm:$0xf]
    %v975 = vld [vmem:[#allocation8 + $0x30] sm:$0xf]
    %v976 = vld [vmem:[#allocation8 + $0x34] sm:$0xf]
    %v977 = vld [vmem:[#allocation8 + $0x38] sm:$0xf]
    %v978 = vld [vmem:[#allocation8 + $0x3c] sm:$0xf]
    %v979 = vld [vmem:[%s7] sm:$0x1]
    %v981 = vperm.slane %v979, 0
    %v999 = vunpack.c.l.b16 %v963
    %v1000 = vunpack.c.l.b16 %v964
    %v1001 = vunpack.c.l.b16 %v965
    %v1002 = vunpack.c.l.b16 %v966
    %v1003 = vunpack.c.l.b16 %v967
    %v1004 = vunpack.c.l.b16 %v968
    %v1005 = vunpack.c.l.b16 %v969
    %v1006 = vunpack.c.l.b16 %v970
    %v1007 = vunpack.c.l.b16 %v971
    %v1008 = vunpack.c.l.b16 %v972
    %v1009 = vunpack.c.l.b16 %v973
    %v1010 = vunpack.c.l.b16 %v974
    %v1011 = vunpack.c.l.b16 %v975
    %v1012 = vunpack.c.l.b16 %v976
    %v1013 = vunpack.c.l.b16 %v977
    %v1014 = vunpack.c.l.b16 %v978
    %v1015 = vpack.c.b16 %v1000, %v999
    %v1016 = vpack.c.b16 %v1002, %v1001
    %v1017 = vpack.c.b16 %v1004, %v1003
    %v1018 = vpack.c.b16 %v1006, %v1005
    %v1019 = vpack.c.b16 %v1008, %v1007
    %v1020 = vpack.c.b16 %v1010, %v1009
    %v1021 = vpack.c.b16 %v1012, %v1011
    %v1022 = vpack.c.b16 %v1014, %v1013
    %1031 = vmatpush.bf16.msra.mxu0 %v1022
    %1032 = vmatpush.bf16.msra.mxu0 %v1021
    %1033 = vmatpush.bf16.msra.mxu0 %v1020
    %1034 = vmatpush.bf16.msra.mxu0 %v1019
    %1035 = vmatpush.bf16.msra.mxu0 %v1018
    %1036 = vmatpush.bf16.msra.mxu0 %v1017
    %1037 = vmatpush.bf16.msra.mxu0 %v1016
    %1038 = vmatpush.bf16.msra.mxu0 %v1015
    %1039 = vmatmul.bf16.gmra.mxu0 %v595
    %v1040 = vpop.f32.mrf.mxu0
    %v1041 = vadd.f32 %v981, %v1040
    %v1042 = vpop.f32.mrf.mxu0
    %v1043 = vadd.f32 %v981, %v1042
    %1044 = vmatmul.bf16.gmra.mxu0 %v596
    %v1045 = vpop.f32.mrf.mxu0
    %v1046 = vadd.f32 %v981, %v1045
    %v1047 = vpop.f32.mrf.mxu0
    %v1048 = vadd.f32 %v981, %v1047
    %1049 = vmatmul.bf16.gmra.mxu0 %v597
    %v1050 = vpop.f32.mrf.mxu0
    %v1051 = vadd.f32 %v981, %v1050
    %v1052 = vpop.f32.mrf.mxu0
    %v1053 = vadd.f32 %v981, %v1052
    %1054 = vmatmul.bf16.gmra.mxu0 %v598
    %v1055 = vpop.f32.mrf.mxu0
    %v1056 = vadd.f32 %v981, %v1055
    %v1057 = vpop.f32.mrf.mxu0
    %v1058 = vadd.f32 %v981, %v1057
    %1059 = vmatmul.bf16.gmra.mxu0 %v599
    %v1060 = vpop.f32.mrf.mxu0
    %v1061 = vadd.f32 %v981, %v1060
    %v1062 = vpop.f32.mrf.mxu0
    %v1063 = vadd.f32 %v981, %v1062
    %1064 = vmatmul.bf16.gmra.mxu0 %v600
    %v1065 = vpop.f32.mrf.mxu0
    %v1066 = vadd.f32 %v981, %v1065
    %v1067 = vpop.f32.mrf.mxu0
    %v1068 = vadd.f32 %v981, %v1067
    %1069 = vmatmul.bf16.gmra.mxu0 %v601
    %v1070 = vpop.f32.mrf.mxu0
    %v1071 = vadd.f32 %v981, %v1070
    %v1072 = vpop.f32.mrf.mxu0
    %v1073 = vadd.f32 %v981, %v1072
    %1074 = vmatmul.bf16.gmra.mxu0 %v602
    %v1075 = vpop.f32.mrf.mxu0
    %v1076 = vadd.f32 %v981, %v1075
    %v1077 = vpop.f32.mrf.mxu0
    %v1078 = vadd.f32 %v981, %v1077
    %1079 = vdwg.mxu0
    %v1080 = vld [vmem:[#allocation9] sm:$0xf]
    %v1081 = vld [vmem:[#allocation9 + $0x4] sm:$0xf]
    %v1082 = vld [vmem:[#allocation9 + $0x8] sm:$0xf]
    %v1083 = vld [vmem:[#allocation9 + $0xc] sm:$0xf]
    %v1084 = vld [vmem:[#allocation9 + $0x10] sm:$0xf]
    %v1085 = vld [vmem:[#allocation9 + $0x14] sm:$0xf]
    %v1086 = vld [vmem:[#allocation9 + $0x18] sm:$0xf]
    %v1087 = vld [vmem:[#allocation9 + $0x1c] sm:$0xf]
    %v1088 = vld [vmem:[#allocation9 + $0x20] sm:$0xf]
    %v1089 = vld [vmem:[#allocation9 + $0x24] sm:$0xf]
    %v1090 = vld [vmem:[#allocation9 + $0x28] sm:$0xf]
    %v1091 = vld [vmem:[#allocation9 + $0x2c] sm:$0xf]
    %v1092 = vld [vmem:[#allocation9 + $0x30] sm:$0xf]
    %v1093 = vld [vmem:[#allocation9 + $0x34] sm:$0xf]
    %v1094 = vld [vmem:[#allocation9 + $0x38] sm:$0xf]
    %v1095 = vld [vmem:[#allocation9 + $0x3c] sm:$0xf]
    %v1096 = vld [vmem:[%s8] sm:$0x1]
    %v1098 = vperm.slane %v1096, 0
    %v1116 = vunpack.c.l.b16 %v1080
    %v1117 = vunpack.c.l.b16 %v1081
    %v1118 = vunpack.c.l.b16 %v1082
    %v1119 = vunpack.c.l.b16 %v1083
    %v1120 = vunpack.c.l.b16 %v1084
    %v1121 = vunpack.c.l.b16 %v1085
    %v1122 = vunpack.c.l.b16 %v1086
    %v1123 = vunpack.c.l.b16 %v1087
    %v1124 = vunpack.c.l.b16 %v1088
    %v1125 = vunpack.c.l.b16 %v1089
    %v1126 = vunpack.c.l.b16 %v1090
    %v1127 = vunpack.c.l.b16 %v1091
    %v1128 = vunpack.c.l.b16 %v1092
    %v1129 = vunpack.c.l.b16 %v1093
    %v1130 = vunpack.c.l.b16 %v1094
    %v1131 = vunpack.c.l.b16 %v1095
    %v1132 = vpack.c.b16 %v1117, %v1116
    %v1133 = vpack.c.b16 %v1119, %v1118
    %v1134 = vpack.c.b16 %v1121, %v1120
    %v1135 = vpack.c.b16 %v1123, %v1122
    %v1136 = vpack.c.b16 %v1125, %v1124
    %v1137 = vpack.c.b16 %v1127, %v1126
    %v1138 = vpack.c.b16 %v1129, %v1128
    %v1139 = vpack.c.b16 %v1131, %v1130
    %1148 = vmatpush.bf16.msra.mxu0 %v1139
    %1149 = vmatpush.bf16.msra.mxu0 %v1138
    %1150 = vmatpush.bf16.msra.mxu0 %v1137
    %1151 = vmatpush.bf16.msra.mxu0 %v1136
    %1152 = vmatpush.bf16.msra.mxu0 %v1135
    %1153 = vmatpush.bf16.msra.mxu0 %v1134
    %1154 = vmatpush.bf16.msra.mxu0 %v1133
    %1155 = vmatpush.bf16.msra.mxu0 %v1132
    %1156 = vmatmul.bf16.gmra.mxu0 %v955
    %v1157 = vpop.f32.mrf.mxu0
    %v1158 = vadd.f32 %v1098, %v1157
    %v1159 = vpop.f32.mrf.mxu0
    %v1160 = vadd.f32 %v1098, %v1159
    %1161 = vmatmul.bf16.gmra.mxu0 %v956
    %v1162 = vpop.f32.mrf.mxu0
    %v1163 = vadd.f32 %v1098, %v1162
    %v1164 = vpop.f32.mrf.mxu0
    %v1165 = vadd.f32 %v1098, %v1164
    %1166 = vmatmul.bf16.gmra.mxu0 %v957
    %v1167 = vpop.f32.mrf.mxu0
    %v1168 = vadd.f32 %v1098, %v1167
    %v1169 = vpop.f32.mrf.mxu0
    %v1170 = vadd.f32 %v1098, %v1169
    %1171 = vmatmul.bf16.gmra.mxu0 %v958
    %v1172 = vpop.f32.mrf.mxu0
    %v1173 = vadd.f32 %v1098, %v1172
    %v1174 = vpop.f32.mrf.mxu0
    %v1175 = vadd.f32 %v1098, %v1174
    %1176 = vmatmul.bf16.gmra.mxu0 %v959
    %v1177 = vpop.f32.mrf.mxu0
    %v1178 = vadd.f32 %v1098, %v1177
    %v1179 = vpop.f32.mrf.mxu0
    %v1180 = vadd.f32 %v1098, %v1179
    %1181 = vmatmul.bf16.gmra.mxu0 %v960
    %v1182 = vpop.f32.mrf.mxu0
    %v1183 = vadd.f32 %v1098, %v1182
    %v1184 = vpop.f32.mrf.mxu0
    %v1185 = vadd.f32 %v1098, %v1184
    %1186 = vmatmul.bf16.gmra.mxu0 %v961
    %v1187 = vpop.f32.mrf.mxu0
    %v1188 = vadd.f32 %v1098, %v1187
    %v1189 = vpop.f32.mrf.mxu0
    %v1190 = vadd.f32 %v1098, %v1189
    %1191 = vmatmul.bf16.gmra.mxu0 %v962
    %v1192 = vpop.f32.mrf.mxu0
    %v1193 = vadd.f32 %v1098, %v1192
    %v1194 = vpop.f32.mrf.mxu0
    %v1195 = vadd.f32 %v1098, %v1194
    %1196 = vdwg.mxu0
    %v1197 = vld [vmem:[#allocation11] sm:$0xf]
    %v1198 = vld [vmem:[#allocation11 + $0x4] sm:$0xf]
    %v1199 = vld [vmem:[#allocation11 + $0x8] sm:$0xf]
    %v1200 = vld [vmem:[#allocation11 + $0xc] sm:$0xf]
    %v1201 = vld [vmem:[#allocation11 + $0x10] sm:$0xf]
    %v1202 = vld [vmem:[#allocation11 + $0x14] sm:$0xf]
    %v1203 = vld [vmem:[#allocation11 + $0x18] sm:$0xf]
    %v1204 = vld [vmem:[#allocation11 + $0x1c] sm:$0xf]
    %v1205 = vld [vmem:[#allocation11 + $0x20] sm:$0xf]
    %v1206 = vld [vmem:[#allocation11 + $0x24] sm:$0xf]
    %v1207 = vld [vmem:[#allocation11 + $0x28] sm:$0xf]
    %v1208 = vld [vmem:[#allocation11 + $0x2c] sm:$0xf]
    %v1209 = vld [vmem:[#allocation11 + $0x30] sm:$0xf]
    %v1210 = vld [vmem:[#allocation11 + $0x34] sm:$0xf]
    %v1211 = vld [vmem:[#allocation11 + $0x38] sm:$0xf]
    %v1212 = vld [vmem:[#allocation11 + $0x3c] sm:$0xf]
    %v1213 = vld [vmem:[%s9] sm:$0x1]
    %v1215 = vperm.slane %v1213, 0
    %v1233 = vunpack.c.l.b16 %v1197
    %v1234 = vunpack.c.l.b16 %v1198
    %v1235 = vunpack.c.l.b16 %v1199
    %v1236 = vunpack.c.l.b16 %v1200
    %v1237 = vunpack.c.l.b16 %v1201
    %v1238 = vunpack.c.l.b16 %v1202
    %v1239 = vunpack.c.l.b16 %v1203
    %v1240 = vunpack.c.l.b16 %v1204
    %v1241 = vunpack.c.l.b16 %v1205
    %v1242 = vunpack.c.l.b16 %v1206
    %v1243 = vunpack.c.l.b16 %v1207
    %v1244 = vunpack.c.l.b16 %v1208
    %v1245 = vunpack.c.l.b16 %v1209
    %v1246 = vunpack.c.l.b16 %v1210
    %v1247 = vunpack.c.l.b16 %v1211
    %v1248 = vunpack.c.l.b16 %v1212
    %v1249 = vpack.c.b16 %v1234, %v1233
    %v1250 = vpack.c.b16 %v1236, %v1235
    %v1251 = vpack.c.b16 %v1238, %v1237
    %v1252 = vpack.c.b16 %v1240, %v1239
    %v1253 = vpack.c.b16 %v1242, %v1241
    %v1254 = vpack.c.b16 %v1244, %v1243
    %v1255 = vpack.c.b16 %v1246, %v1245
    %v1256 = vpack.c.b16 %v1248, %v1247
    %1265 = vmatpush.bf16.msra.mxu0 %v1256
    %1266 = vmatpush.bf16.msra.mxu0 %v1255
    %1267 = vmatpush.bf16.msra.mxu0 %v1254
    %1268 = vmatpush.bf16.msra.mxu0 %v1253
    %1269 = vmatpush.bf16.msra.mxu0 %v1252
    %1270 = vmatpush.bf16.msra.mxu0 %v1251
    %1271 = vmatpush.bf16.msra.mxu0 %v1250
    %1272 = vmatpush.bf16.msra.mxu0 %v1249
    %1273 = vmatmul.bf16.gmra.mxu0 %v955
    %v1274 = vpop.f32.mrf.mxu0
    %v1275 = vadd.f32 %v1215, %v1274
    %v1276 = vpop.f32.mrf.mxu0
    %v1277 = vadd.f32 %v1215, %v1276
    %1278 = vmatmul.bf16.gmra.mxu0 %v956
    %v1279 = vpop.f32.mrf.mxu0
    %v1280 = vadd.f32 %v1215, %v1279
    %v1281 = vpop.f32.mrf.mxu0
    %v1282 = vadd.f32 %v1215, %v1281
    %1283 = vmatmul.bf16.gmra.mxu0 %v957
    %v1284 = vpop.f32.mrf.mxu0
    %v1285 = vadd.f32 %v1215, %v1284
    %v1286 = vpop.f32.mrf.mxu0
    %v1287 = vadd.f32 %v1215, %v1286
    %1288 = vmatmul.bf16.gmra.mxu0 %v958
    %v1289 = vpop.f32.mrf.mxu0
    %v1290 = vadd.f32 %v1215, %v1289
    %v1291 = vpop.f32.mrf.mxu0
    %v1292 = vadd.f32 %v1215, %v1291
    %1293 = vmatmul.bf16.gmra.mxu0 %v959
    %v1294 = vpop.f32.mrf.mxu0
    %v1295 = vadd.f32 %v1215, %v1294
    %v1296 = vpop.f32.mrf.mxu0
    %v1297 = vadd.f32 %v1215, %v1296
    %1298 = vmatmul.bf16.gmra.mxu0 %v960
    %v1299 = vpop.f32.mrf.mxu0
    %v1300 = vadd.f32 %v1215, %v1299
    %v1301 = vpop.f32.mrf.mxu0
    %v1302 = vadd.f32 %v1215, %v1301
    %1303 = vmatmul.bf16.gmra.mxu0 %v961
    %v1304 = vpop.f32.mrf.mxu0
    %v1305 = vadd.f32 %v1215, %v1304
    %v1306 = vpop.f32.mrf.mxu0
    %v1307 = vadd.f32 %v1215, %v1306
    %1308 = vmatmul.bf16.gmra.mxu0 %v962
    %v1309 = vpop.f32.mrf.mxu0
    %v1310 = vadd.f32 %v1215, %v1309
    %v1311 = vpop.f32.mrf.mxu0
    %v1312 = vadd.f32 %v1215, %v1311
    %1313 = vdwg.mxu0
    %v1314 = vpack.c.bf16 %v1041, %v1041
    %v1315 = vpack.c.bf16 %v1043, %v1043
    %v1316 = vpack.c.bf16 %v1046, %v1046
    %v1317 = vpack.c.bf16 %v1048, %v1048
    %v1318 = vpack.c.bf16 %v1051, %v1051
    %v1319 = vpack.c.bf16 %v1053, %v1053
    %v1320 = vpack.c.bf16 %v1056, %v1056
    %v1321 = vpack.c.bf16 %v1058, %v1058
    %v1322 = vpack.c.bf16 %v1061, %v1061
    %v1323 = vpack.c.bf16 %v1063, %v1063
    %v1324 = vpack.c.bf16 %v1066, %v1066
    %v1325 = vpack.c.bf16 %v1068, %v1068
    %v1326 = vpack.c.bf16 %v1071, %v1071
    %v1327 = vpack.c.bf16 %v1073, %v1073
    %v1328 = vpack.c.bf16 %v1076, %v1076
    %v1329 = vpack.c.bf16 %v1078, %v1078
    %v1330 = vpack.c.bf16 %v1158, %v1158
    %v1331 = vpack.c.bf16 %v1160, %v1160
    %v1332 = vpack.c.bf16 %v1163, %v1163
    %v1333 = vpack.c.bf16 %v1165, %v1165
    %v1334 = vpack.c.bf16 %v1168, %v1168
    %v1335 = vpack.c.bf16 %v1170, %v1170
    %v1336 = vpack.c.bf16 %v1173, %v1173
    %v1337 = vpack.c.bf16 %v1175, %v1175
    %v1338 = vpack.c.bf16 %v1178, %v1178
    %v1339 = vpack.c.bf16 %v1180, %v1180
    %v1340 = vpack.c.bf16 %v1183, %v1183
    %v1341 = vpack.c.bf16 %v1185, %v1185
    %v1342 = vpack.c.bf16 %v1188, %v1188
    %v1343 = vpack.c.bf16 %v1190, %v1190
    %v1344 = vpack.c.bf16 %v1193, %v1193
    %v1345 = vpack.c.bf16 %v1195, %v1195
    %v1346 = vpack.c.bf16 %v1275, %v1275
    %v1347 = vpack.c.bf16 %v1277, %v1277
    %v1348 = vpack.c.bf16 %v1280, %v1280
    %v1349 = vpack.c.bf16 %v1282, %v1282
    %v1350 = vpack.c.bf16 %v1285, %v1285
    %v1351 = vpack.c.bf16 %v1287, %v1287
    %v1352 = vpack.c.bf16 %v1290, %v1290
    %v1353 = vpack.c.bf16 %v1292, %v1292
    %v1354 = vpack.c.bf16 %v1295, %v1295
    %v1355 = vpack.c.bf16 %v1297, %v1297
    %v1356 = vpack.c.bf16 %v1300, %v1300
    %v1357 = vpack.c.bf16 %v1302, %v1302
    %v1358 = vpack.c.bf16 %v1305, %v1305
    %v1359 = vpack.c.bf16 %v1307, %v1307
    %v1360 = vpack.c.bf16 %v1310, %v1310
    %v1361 = vpack.c.bf16 %v1312, %v1312
    %vm1362 = vcmask 523264
    %v1364 = vsel %vm1362, %v1314, 0
    %v1367 = vsel %vm1362, %v1330, 0
    %1369 = vmatpush.bf16.xpose.msra.mxu0 0
    %1370 = vmatpush.bf16.xpose.msra.mxu0 0
    %1371 = vmatpush.bf16.xpose.msra.mxu0 0
    %1372 = vmatpush.bf16.xpose.msra.mxu0 0
    %1373 = vmatpush.bf16.xpose.msra.mxu0 0
    %1374 = vmatpush.bf16.xpose.msra.mxu0 0
    %1375 = vmatpush.bf16.xpose.msra.mxu0 0
    %1376 = vmatpush.bf16.xpose.msra.mxu0 %v1367
    %1377 = vmatmul.bf16.gmra.mxu0 %v1364
    %v1378 = vpop.f32.mrf.mxu0
    %v1379 = vadd.f32 0.0, %v1378
    %v1380 = vpop.f32.mrf.mxu0
    %1381 = vdwg.mxu0
    %v1383 = vsel %vm1362, %v1315, 0
    %v1386 = vsel %vm1362, %v1331, 0
    %1388 = vmatpush.bf16.xpose.msra.mxu0 0
    %1389 = vmatpush.bf16.xpose.msra.mxu0 0
    %1390 = vmatpush.bf16.xpose.msra.mxu0 0
    %1391 = vmatpush.bf16.xpose.msra.mxu0 0
    %1392 = vmatpush.bf16.xpose.msra.mxu0 0
    %1393 = vmatpush.bf16.xpose.msra.mxu0 0
    %1394 = vmatpush.bf16.xpose.msra.mxu0 0
    %1395 = vmatpush.bf16.xpose.msra.mxu0 %v1386
    %1396 = vmatmul.bf16.gmra.mxu0 %v1383
    %v1397 = vpop.f32.mrf.mxu0
    %v1398 = vadd.f32 0.0, %v1397
    %v1399 = vpop.f32.mrf.mxu0
    %1400 = vdwg.mxu0
    %v1402 = vsel %vm1362, %v1316, 0
    %v1405 = vsel %vm1362, %v1332, 0
    %1407 = vmatpush.bf16.xpose.msra.mxu0 0
    %1408 = vmatpush.bf16.xpose.msra.mxu0 0
    %1409 = vmatpush.bf16.xpose.msra.mxu0 0
    %1410 = vmatpush.bf16.xpose.msra.mxu0 0
    %1411 = vmatpush.bf16.xpose.msra.mxu0 0
    %1412 = vmatpush.bf16.xpose.msra.mxu0 0
    %1413 = vmatpush.bf16.xpose.msra.mxu0 0
    %1414 = vmatpush.bf16.xpose.msra.mxu0 %v1405
    %1415 = vmatmul.bf16.gmra.mxu0 %v1402
    %v1416 = vpop.f32.mrf.mxu0
    %v1417 = vadd.f32 0.0, %v1416
    %v1418 = vpop.f32.mrf.mxu0
    %1419 = vdwg.mxu0
    %v1421 = vsel %vm1362, %v1317, 0
    %v1424 = vsel %vm1362, %v1333, 0
    %1426 = vmatpush.bf16.xpose.msra.mxu0 0
    %1427 = vmatpush.bf16.xpose.msra.mxu0 0
    %1428 = vmatpush.bf16.xpose.msra.mxu0 0
    %1429 = vmatpush.bf16.xpose.msra.mxu0 0
    %1430 = vmatpush.bf16.xpose.msra.mxu0 0
    %1431 = vmatpush.bf16.xpose.msra.mxu0 0
    %1432 = vmatpush.bf16.xpose.msra.mxu0 0
    %1433 = vmatpush.bf16.xpose.msra.mxu0 %v1424
    %1434 = vmatmul.bf16.gmra.mxu0 %v1421
    %v1435 = vpop.f32.mrf.mxu0
    %v1436 = vadd.f32 0.0, %v1435
    %v1437 = vpop.f32.mrf.mxu0
    %1438 = vdwg.mxu0
    %v1440 = vsel %vm1362, %v1318, 0
    %v1443 = vsel %vm1362, %v1334, 0
    %1445 = vmatpush.bf16.xpose.msra.mxu0 0
    %1446 = vmatpush.bf16.xpose.msra.mxu0 0
    %1447 = vmatpush.bf16.xpose.msra.mxu0 0
    %1448 = vmatpush.bf16.xpose.msra.mxu0 0
    %1449 = vmatpush.bf16.xpose.msra.mxu0 0
    %1450 = vmatpush.bf16.xpose.msra.mxu0 0
    %1451 = vmatpush.bf16.xpose.msra.mxu0 0
    %1452 = vmatpush.bf16.xpose.msra.mxu0 %v1443
    %1453 = vmatmul.bf16.gmra.mxu0 %v1440
    %v1454 = vpop.f32.mrf.mxu0
    %v1455 = vadd.f32 0.0, %v1454
    %v1456 = vpop.f32.mrf.mxu0
    %1457 = vdwg.mxu0
    %v1459 = vsel %vm1362, %v1319, 0
    %v1462 = vsel %vm1362, %v1335, 0
    %1464 = vmatpush.bf16.xpose.msra.mxu0 0
    %1465 = vmatpush.bf16.xpose.msra.mxu0 0
    %1466 = vmatpush.bf16.xpose.msra.mxu0 0
    %1467 = vmatpush.bf16.xpose.msra.mxu0 0
    %1468 = vmatpush.bf16.xpose.msra.mxu0 0
    %1469 = vmatpush.bf16.xpose.msra.mxu0 0
    %1470 = vmatpush.bf16.xpose.msra.mxu0 0
    %1471 = vmatpush.bf16.xpose.msra.mxu0 %v1462
    %1472 = vmatmul.bf16.gmra.mxu0 %v1459
    %v1473 = vpop.f32.mrf.mxu0
    %v1474 = vadd.f32 0.0, %v1473
    %v1475 = vpop.f32.mrf.mxu0
    %1476 = vdwg.mxu0
    %v1478 = vsel %vm1362, %v1320, 0
    %v1481 = vsel %vm1362, %v1336, 0
    %1483 = vmatpush.bf16.xpose.msra.mxu0 0
    %1484 = vmatpush.bf16.xpose.msra.mxu0 0
    %1485 = vmatpush.bf16.xpose.msra.mxu0 0
    %1486 = vmatpush.bf16.xpose.msra.mxu0 0
    %1487 = vmatpush.bf16.xpose.msra.mxu0 0
    %1488 = vmatpush.bf16.xpose.msra.mxu0 0
    %1489 = vmatpush.bf16.xpose.msra.mxu0 0
    %1490 = vmatpush.bf16.xpose.msra.mxu0 %v1481
    %1491 = vmatmul.bf16.gmra.mxu0 %v1478
    %v1492 = vpop.f32.mrf.mxu0
    %v1493 = vadd.f32 0.0, %v1492
    %v1494 = vpop.f32.mrf.mxu0
    %1495 = vdwg.mxu0
    %v1497 = vsel %vm1362, %v1321, 0
    %v1500 = vsel %vm1362, %v1337, 0
    %1502 = vmatpush.bf16.xpose.msra.mxu0 0
    %1503 = vmatpush.bf16.xpose.msra.mxu0 0
    %1504 = vmatpush.bf16.xpose.msra.mxu0 0
    %1505 = vmatpush.bf16.xpose.msra.mxu0 0
    %1506 = vmatpush.bf16.xpose.msra.mxu0 0
    %1507 = vmatpush.bf16.xpose.msra.mxu0 0
    %1508 = vmatpush.bf16.xpose.msra.mxu0 0
    %1509 = vmatpush.bf16.xpose.msra.mxu0 %v1500
    %1510 = vmatmul.bf16.gmra.mxu0 %v1497
    %v1511 = vpop.f32.mrf.mxu0
    %v1512 = vadd.f32 0.0, %v1511
    %v1513 = vpop.f32.mrf.mxu0
    %1514 = vdwg.mxu0
    %v1516 = vsel %vm1362, %v1322, 0
    %v1519 = vsel %vm1362, %v1338, 0
    %1521 = vmatpush.bf16.xpose.msra.mxu0 0
    %1522 = vmatpush.bf16.xpose.msra.mxu0 0
    %1523 = vmatpush.bf16.xpose.msra.mxu0 0
    %1524 = vmatpush.bf16.xpose.msra.mxu0 0
    %1525 = vmatpush.bf16.xpose.msra.mxu0 0
    %1526 = vmatpush.bf16.xpose.msra.mxu0 0
    %1527 = vmatpush.bf16.xpose.msra.mxu0 0
    %1528 = vmatpush.bf16.xpose.msra.mxu0 %v1519
    %1529 = vmatmul.bf16.gmra.mxu0 %v1516
    %v1530 = vpop.f32.mrf.mxu0
    %v1531 = vadd.f32 0.0, %v1530
    %v1532 = vpop.f32.mrf.mxu0
    %1533 = vdwg.mxu0
    %v1535 = vsel %vm1362, %v1323, 0
    %v1538 = vsel %vm1362, %v1339, 0
    %1540 = vmatpush.bf16.xpose.msra.mxu0 0
    %1541 = vmatpush.bf16.xpose.msra.mxu0 0
    %1542 = vmatpush.bf16.xpose.msra.mxu0 0
    %1543 = vmatpush.bf16.xpose.msra.mxu0 0
    %1544 = vmatpush.bf16.xpose.msra.mxu0 0
    %1545 = vmatpush.bf16.xpose.msra.mxu0 0
    %1546 = vmatpush.bf16.xpose.msra.mxu0 0
    %1547 = vmatpush.bf16.xpose.msra.mxu0 %v1538
    %1548 = vmatmul.bf16.gmra.mxu0 %v1535
    %v1549 = vpop.f32.mrf.mxu0
    %v1550 = vadd.f32 0.0, %v1549
    %v1551 = vpop.f32.mrf.mxu0
    %1552 = vdwg.mxu0
    %v1554 = vsel %vm1362, %v1324, 0
    %v1557 = vsel %vm1362, %v1340, 0
    %1559 = vmatpush.bf16.xpose.msra.mxu0 0
    %1560 = vmatpush.bf16.xpose.msra.mxu0 0
    %1561 = vmatpush.bf16.xpose.msra.mxu0 0
    %1562 = vmatpush.bf16.xpose.msra.mxu0 0
    %1563 = vmatpush.bf16.xpose.msra.mxu0 0
    %1564 = vmatpush.bf16.xpose.msra.mxu0 0
    %1565 = vmatpush.bf16.xpose.msra.mxu0 0
    %1566 = vmatpush.bf16.xpose.msra.mxu0 %v1557
    %1567 = vmatmul.bf16.gmra.mxu0 %v1554
    %v1568 = vpop.f32.mrf.mxu0
    %v1569 = vadd.f32 0.0, %v1568
    %v1570 = vpop.f32.mrf.mxu0
    %1571 = vdwg.mxu0
    %v1573 = vsel %vm1362, %v1325, 0
    %v1576 = vsel %vm1362, %v1341, 0
    %1578 = vmatpush.bf16.xpose.msra.mxu0 0
    %1579 = vmatpush.bf16.xpose.msra.mxu0 0
    %1580 = vmatpush.bf16.xpose.msra.mxu0 0
    %1581 = vmatpush.bf16.xpose.msra.mxu0 0
    %1582 = vmatpush.bf16.xpose.msra.mxu0 0
    %1583 = vmatpush.bf16.xpose.msra.mxu0 0
    %1584 = vmatpush.bf16.xpose.msra.mxu0 0
    %1585 = vmatpush.bf16.xpose.msra.mxu0 %v1576
    %1586 = vmatmul.bf16.gmra.mxu0 %v1573
    %v1587 = vpop.f32.mrf.mxu0
    %v1588 = vadd.f32 0.0, %v1587
    %v1589 = vpop.f32.mrf.mxu0
    %1590 = vdwg.mxu0
    %v1592 = vsel %vm1362, %v1326, 0
    %v1595 = vsel %vm1362, %v1342, 0
    %1597 = vmatpush.bf16.xpose.msra.mxu0 0
    %1598 = vmatpush.bf16.xpose.msra.mxu0 0
    %1599 = vmatpush.bf16.xpose.msra.mxu0 0
    %1600 = vmatpush.bf16.xpose.msra.mxu0 0
    %1601 = vmatpush.bf16.xpose.msra.mxu0 0
    %1602 = vmatpush.bf16.xpose.msra.mxu0 0
    %1603 = vmatpush.bf16.xpose.msra.mxu0 0
    %1604 = vmatpush.bf16.xpose.msra.mxu0 %v1595
    %1605 = vmatmul.bf16.gmra.mxu0 %v1592
    %v1606 = vpop.f32.mrf.mxu0
    %v1607 = vadd.f32 0.0, %v1606
    %v1608 = vpop.f32.mrf.mxu0
    %1609 = vdwg.mxu0
    %v1611 = vsel %vm1362, %v1327, 0
    %v1614 = vsel %vm1362, %v1343, 0
    %1616 = vmatpush.bf16.xpose.msra.mxu0 0
    %1617 = vmatpush.bf16.xpose.msra.mxu0 0
    %1618 = vmatpush.bf16.xpose.msra.mxu0 0
    %1619 = vmatpush.bf16.xpose.msra.mxu0 0
    %1620 = vmatpush.bf16.xpose.msra.mxu0 0
    %1621 = vmatpush.bf16.xpose.msra.mxu0 0
    %1622 = vmatpush.bf16.xpose.msra.mxu0 0
    %1623 = vmatpush.bf16.xpose.msra.mxu0 %v1614
    %1624 = vmatmul.bf16.gmra.mxu0 %v1611
    %v1625 = vpop.f32.mrf.mxu0
    %v1626 = vadd.f32 0.0, %v1625
    %v1627 = vpop.f32.mrf.mxu0
    %1628 = vdwg.mxu0
    %v1630 = vsel %vm1362, %v1328, 0
    %v1633 = vsel %vm1362, %v1344, 0
    %1635 = vmatpush.bf16.xpose.msra.mxu0 0
    %1636 = vmatpush.bf16.xpose.msra.mxu0 0
    %1637 = vmatpush.bf16.xpose.msra.mxu0 0
    %1638 = vmatpush.bf16.xpose.msra.mxu0 0
    %1639 = vmatpush.bf16.xpose.msra.mxu0 0
    %1640 = vmatpush.bf16.xpose.msra.mxu0 0
    %1641 = vmatpush.bf16.xpose.msra.mxu0 0
    %1642 = vmatpush.bf16.xpose.msra.mxu0 %v1633
    %1643 = vmatmul.bf16.gmra.mxu0 %v1630
    %v1644 = vpop.f32.mrf.mxu0
    %v1645 = vadd.f32 0.0, %v1644
    %v1646 = vpop.f32.mrf.mxu0
    %1647 = vdwg.mxu0
    %v1649 = vsel %vm1362, %v1329, 0
    %v1652 = vsel %vm1362, %v1345, 0
    %1654 = vmatpush.bf16.xpose.msra.mxu0 0
    %1655 = vmatpush.bf16.xpose.msra.mxu0 0
    %1656 = vmatpush.bf16.xpose.msra.mxu0 0
    %1657 = vmatpush.bf16.xpose.msra.mxu0 0
    %1658 = vmatpush.bf16.xpose.msra.mxu0 0
    %1659 = vmatpush.bf16.xpose.msra.mxu0 0
    %1660 = vmatpush.bf16.xpose.msra.mxu0 0
    %1661 = vmatpush.bf16.xpose.msra.mxu0 %v1652
    %1662 = vmatmul.bf16.gmra.mxu0 %v1649
    %v1663 = vpop.f32.mrf.mxu0
    %v1664 = vadd.f32 0.0, %v1663
    %v1665 = vpop.f32.mrf.mxu0
    %1666 = vdwg.mxu0
    %vm1667 = vcmask 64512
    %v1668 = vsel %vm1667, %v1379, -inf
    %1669 = vmax.xlane.f32.xlu0 %v1668
    %v1670 = vpop.xlane.xlu0 %1669
    %v1671 = vsel %vm1667, %v1398, -inf
    %1672 = vmax.xlane.f32.xlu0 %v1671
    %v1673 = vpop.xlane.xlu0 %1672
    %v1674 = vsel %vm1667, %v1417, -inf
    %1675 = vmax.xlane.f32.xlu0 %v1674
    %v1676 = vpop.xlane.xlu0 %1675
    %v1677 = vsel %vm1667, %v1436, -inf
    %1678 = vmax.xlane.f32.xlu0 %v1677
    %v1679 = vpop.xlane.xlu0 %1678
    %v1680 = vsel %vm1667, %v1455, -inf
    %1681 = vmax.xlane.f32.xlu0 %v1680
    %v1682 = vpop.xlane.xlu0 %1681
    %v1683 = vsel %vm1667, %v1474, -inf
    %1684 = vmax.xlane.f32.xlu0 %v1683
    %v1685 = vpop.xlane.xlu0 %1684
    %v1686 = vsel %vm1667, %v1493, -inf
    %1687 = vmax.xlane.f32.xlu0 %v1686
    %v1688 = vpop.xlane.xlu0 %1687
    %v1689 = vsel %vm1667, %v1512, -inf
    %1690 = vmax.xlane.f32.xlu0 %v1689
    %v1691 = vpop.xlane.xlu0 %1690
    %v1692 = vsel %vm1667, %v1531, -inf
    %1693 = vmax.xlane.f32.xlu0 %v1692
    %v1694 = vpop.xlane.xlu0 %1693
    %v1695 = vsel %vm1667, %v1550, -inf
    %1696 = vmax.xlane.f32.xlu0 %v1695
    %v1697 = vpop.xlane.xlu0 %1696
    %v1698 = vsel %vm1667, %v1569, -inf
    %1699 = vmax.xlane.f32.xlu0 %v1698
    %v1700 = vpop.xlane.xlu0 %1699
    %v1701 = vsel %vm1667, %v1588, -inf
    %1702 = vmax.xlane.f32.xlu0 %v1701
    %v1703 = vpop.xlane.xlu0 %1702
    %v1704 = vsel %vm1667, %v1607, -inf
    %1705 = vmax.xlane.f32.xlu0 %v1704
    %v1706 = vpop.xlane.xlu0 %1705
    %v1707 = vsel %vm1667, %v1626, -inf
    %1708 = vmax.xlane.f32.xlu0 %v1707
    %v1709 = vpop.xlane.xlu0 %1708
    %v1710 = vsel %vm1667, %v1645, -inf
    %1711 = vmax.xlane.f32.xlu0 %v1710
    %v1712 = vpop.xlane.xlu0 %1711
    %v1713 = vsel %vm1667, %v1664, -inf
    %1714 = vmax.xlane.f32.xlu0 %v1713
    %v1715 = vpop.xlane.xlu0 %1714
    %v1716 = vsub.f32 %v1379, %v1670
    %v1717 = vsub.f32 %v1398, %v1673
    %v1718 = vsub.f32 %v1417, %v1676
    %v1719 = vsub.f32 %v1436, %v1679
    %v1720 = vsub.f32 %v1455, %v1682
    %v1721 = vsub.f32 %v1474, %v1685
    %v1722 = vsub.f32 %v1493, %v1688
    %v1723 = vsub.f32 %v1512, %v1691
    %v1724 = vsub.f32 %v1531, %v1694
    %v1725 = vsub.f32 %v1550, %v1697
    %v1726 = vsub.f32 %v1569, %v1700
    %v1727 = vsub.f32 %v1588, %v1703
    %v1728 = vsub.f32 %v1607, %v1706
    %v1729 = vsub.f32 %v1626, %v1709
    %v1730 = vsub.f32 %v1645, %v1712
    %v1731 = vsub.f32 %v1664, %v1715
    %v1732 = vmul.f32 %v1716, 1.442695
    %v1733 = vpow.pop %v1732
    %v1734 = vmul.f32 %v1717, 1.442695
    %v1735 = vpow.pop %v1734
    %v1736 = vmul.f32 %v1718, 1.442695
    %v1737 = vpow.pop %v1736
    %v1738 = vmul.f32 %v1719, 1.442695
    %v1739 = vpow.pop %v1738
    %v1740 = vmul.f32 %v1720, 1.442695
    %v1741 = vpow.pop %v1740
    %v1742 = vmul.f32 %v1721, 1.442695
    %v1743 = vpow.pop %v1742
    %v1744 = vmul.f32 %v1722, 1.442695
    %v1745 = vpow.pop %v1744
    %v1746 = vmul.f32 %v1723, 1.442695
    %v1747 = vpow.pop %v1746
    %v1748 = vmul.f32 %v1724, 1.442695
    %v1749 = vpow.pop %v1748
    %v1750 = vmul.f32 %v1725, 1.442695
    %v1751 = vpow.pop %v1750
    %v1752 = vmul.f32 %v1726, 1.442695
    %v1753 = vpow.pop %v1752
    %v1754 = vmul.f32 %v1727, 1.442695
    %v1755 = vpow.pop %v1754
    %v1756 = vmul.f32 %v1728, 1.442695
    %v1757 = vpow.pop %v1756
    %v1758 = vmul.f32 %v1729, 1.442695
    %v1759 = vpow.pop %v1758
    %v1760 = vmul.f32 %v1730, 1.442695
    %v1761 = vpow.pop %v1760
    %v1762 = vmul.f32 %v1731, 1.442695
    %v1763 = vpow.pop %v1762
    %v1764 = vsel %vm1667, %v1733, 0.0
    %1765 = vadd.xlane.f32.xlu0 %v1764
    %v1766 = vpop.xlane.xlu0 %1765
    %v1767 = vsel %vm1667, %v1735, 0.0
    %1768 = vadd.xlane.f32.xlu0 %v1767
    %v1769 = vpop.xlane.xlu0 %1768
    %v1770 = vsel %vm1667, %v1737, 0.0
    %1771 = vadd.xlane.f32.xlu0 %v1770
    %v1772 = vpop.xlane.xlu0 %1771
    %v1773 = vsel %vm1667, %v1739, 0.0
    %1774 = vadd.xlane.f32.xlu0 %v1773
    %v1775 = vpop.xlane.xlu0 %1774
    %v1776 = vsel %vm1667, %v1741, 0.0
    %1777 = vadd.xlane.f32.xlu0 %v1776
    %v1778 = vpop.xlane.xlu0 %1777
    %v1779 = vsel %vm1667, %v1743, 0.0
    %1780 = vadd.xlane.f32.xlu0 %v1779
    %v1781 = vpop.xlane.xlu0 %1780
    %v1782 = vsel %vm1667, %v1745, 0.0
    %1783 = vadd.xlane.f32.xlu0 %v1782
    %v1784 = vpop.xlane.xlu0 %1783
    %v1785 = vsel %vm1667, %v1747, 0.0
    %1786 = vadd.xlane.f32.xlu0 %v1785
    %v1787 = vpop.xlane.xlu0 %1786
    %v1788 = vsel %vm1667, %v1749, 0.0
    %1789 = vadd.xlane.f32.xlu0 %v1788
    %v1790 = vpop.xlane.xlu0 %1789
    %v1791 = vsel %vm1667, %v1751, 0.0
    %1792 = vadd.xlane.f32.xlu0 %v1791
    %v1793 = vpop.xlane.xlu0 %1792
    %v1794 = vsel %vm1667, %v1753, 0.0
    %1795 = vadd.xlane.f32.xlu0 %v1794
    %v1796 = vpop.xlane.xlu0 %1795
    %v1797 = vsel %vm1667, %v1755, 0.0
    %1798 = vadd.xlane.f32.xlu0 %v1797
    %v1799 = vpop.xlane.xlu0 %1798
    %v1800 = vsel %vm1667, %v1757, 0.0
    %1801 = vadd.xlane.f32.xlu0 %v1800
    %v1802 = vpop.xlane.xlu0 %1801
    %v1803 = vsel %vm1667, %v1759, 0.0
    %1804 = vadd.xlane.f32.xlu0 %v1803
    %v1805 = vpop.xlane.xlu0 %1804
    %v1806 = vsel %vm1667, %v1761, 0.0
    %1807 = vadd.xlane.f32.xlu0 %v1806
    %v1808 = vpop.xlane.xlu0 %1807
    %v1809 = vsel %vm1667, %v1763, 0.0
    %1810 = vadd.xlane.f32.xlu0 %v1809
    %v1811 = vpop.xlane.xlu0 %1810
    %v1812 = vrcp.pop %v1766
    %v1813 = vrcp.pop %v1769
    %v1814 = vrcp.pop %v1772
    %v1815 = vrcp.pop %v1775
    %v1816 = vrcp.pop %v1778
    %v1817 = vrcp.pop %v1781
    %v1818 = vrcp.pop %v1784
    %v1819 = vrcp.pop %v1787
    %v1820 = vrcp.pop %v1790
    %v1821 = vrcp.pop %v1793
    %v1822 = vrcp.pop %v1796
    %v1823 = vrcp.pop %v1799
    %v1824 = vrcp.pop %v1802
    %v1825 = vrcp.pop %v1805
    %v1826 = vrcp.pop %v1808
    %v1827 = vrcp.pop %v1811
    %v1828 = vmul.f32 %v1733, %v1812
    %v1829 = vmul.f32 %v1735, %v1813
    %v1830 = vmul.f32 %v1737, %v1814
    %v1831 = vmul.f32 %v1739, %v1815
    %v1832 = vmul.f32 %v1741, %v1816
    %v1833 = vmul.f32 %v1743, %v1817
    %v1834 = vmul.f32 %v1745, %v1818
    %v1835 = vmul.f32 %v1747, %v1819
    %v1836 = vmul.f32 %v1749, %v1820
    %v1837 = vmul.f32 %v1751, %v1821
    %v1838 = vmul.f32 %v1753, %v1822
    %v1839 = vmul.f32 %v1755, %v1823
    %v1840 = vmul.f32 %v1757, %v1824
    %v1841 = vmul.f32 %v1759, %v1825
    %v1842 = vmul.f32 %v1761, %v1826
    %v1843 = vmul.f32 %v1763, %v1827
    %v1844 = vpack.c.bf16 %v1828, %v1828
    %v1845 = vpack.c.bf16 %v1829, %v1829
    %v1846 = vpack.c.bf16 %v1830, %v1830
    %v1847 = vpack.c.bf16 %v1831, %v1831
    %v1848 = vpack.c.bf16 %v1832, %v1832
    %v1849 = vpack.c.bf16 %v1833, %v1833
    %v1850 = vpack.c.bf16 %v1834, %v1834
    %v1851 = vpack.c.bf16 %v1835, %v1835
    %v1852 = vpack.c.bf16 %v1836, %v1836
    %v1853 = vpack.c.bf16 %v1837, %v1837
    %v1854 = vpack.c.bf16 %v1838, %v1838
    %v1855 = vpack.c.bf16 %v1839, %v1839
    %v1856 = vpack.c.bf16 %v1840, %v1840
    %v1857 = vpack.c.bf16 %v1841, %v1841
    %v1858 = vpack.c.bf16 %v1842, %v1842
    %v1859 = vpack.c.bf16 %v1843, %v1843
    %v1861 = vsel %vm1667, %v1844, 0
    %vm1863 = vcmask 1043456
    %v1865 = vsel %vm1863, %v1346, 0
    %1867 = vmatpush.bf16.msra.mxu0 0
    %1868 = vmatpush.bf16.msra.mxu0 0
    %1869 = vmatpush.bf16.msra.mxu0 0
    %1870 = vmatpush.bf16.msra.mxu0 0
    %1871 = vmatpush.bf16.msra.mxu0 0
    %1872 = vmatpush.bf16.msra.mxu0 0
    %1873 = vmatpush.bf16.msra.mxu0 0
    %1874 = vmatpush.bf16.msra.mxu0 %v1865
    %1875 = vmatmul.bf16.gmra.mxu0 %v1861
    %v1876 = vpop.f32.mrf.mxu0
    %v1877 = vadd.f32 0.0, %v1876
    %v1878 = vpop.f32.mrf.mxu0
    %1879 = vdwg.mxu0
    %v1881 = vsel %vm1667, %v1845, 0
    %v1884 = vsel %vm1863, %v1347, 0
    %1886 = vmatpush.bf16.msra.mxu0 0
    %1887 = vmatpush.bf16.msra.mxu0 0
    %1888 = vmatpush.bf16.msra.mxu0 0
    %1889 = vmatpush.bf16.msra.mxu0 0
    %1890 = vmatpush.bf16.msra.mxu0 0
    %1891 = vmatpush.bf16.msra.mxu0 0
    %1892 = vmatpush.bf16.msra.mxu0 0
    %1893 = vmatpush.bf16.msra.mxu0 %v1884
    %1894 = vmatmul.bf16.gmra.mxu0 %v1881
    %v1895 = vpop.f32.mrf.mxu0
    %v1896 = vadd.f32 0.0, %v1895
    %v1897 = vpop.f32.mrf.mxu0
    %1898 = vdwg.mxu0
    %v1900 = vsel %vm1667, %v1846, 0
    %v1903 = vsel %vm1863, %v1348, 0
    %1905 = vmatpush.bf16.msra.mxu0 0
    %1906 = vmatpush.bf16.msra.mxu0 0
    %1907 = vmatpush.bf16.msra.mxu0 0
    %1908 = vmatpush.bf16.msra.mxu0 0
    %1909 = vmatpush.bf16.msra.mxu0 0
    %1910 = vmatpush.bf16.msra.mxu0 0
    %1911 = vmatpush.bf16.msra.mxu0 0
    %1912 = vmatpush.bf16.msra.mxu0 %v1903
    %1913 = vmatmul.bf16.gmra.mxu0 %v1900
    %v1914 = vpop.f32.mrf.mxu0
    %v1915 = vadd.f32 0.0, %v1914
    %v1916 = vpop.f32.mrf.mxu0
    %1917 = vdwg.mxu0
    %v1919 = vsel %vm1667, %v1847, 0
    %v1922 = vsel %vm1863, %v1349, 0
    %1924 = vmatpush.bf16.msra.mxu0 0
    %1925 = vmatpush.bf16.msra.mxu0 0
    %1926 = vmatpush.bf16.msra.mxu0 0
    %1927 = vmatpush.bf16.msra.mxu0 0
    %1928 = vmatpush.bf16.msra.mxu0 0
    %1929 = vmatpush.bf16.msra.mxu0 0
    %1930 = vmatpush.bf16.msra.mxu0 0
    %1931 = vmatpush.bf16.msra.mxu0 %v1922
    %1932 = vmatmul.bf16.gmra.mxu0 %v1919
    %v1933 = vpop.f32.mrf.mxu0
    %v1934 = vadd.f32 0.0, %v1933
    %v1935 = vpop.f32.mrf.mxu0
    %1936 = vdwg.mxu0
    %v1938 = vsel %vm1667, %v1848, 0
    %v1941 = vsel %vm1863, %v1350, 0
    %1943 = vmatpush.bf16.msra.mxu0 0
    %1944 = vmatpush.bf16.msra.mxu0 0
    %1945 = vmatpush.bf16.msra.mxu0 0
    %1946 = vmatpush.bf16.msra.mxu0 0
    %1947 = vmatpush.bf16.msra.mxu0 0
    %1948 = vmatpush.bf16.msra.mxu0 0
    %1949 = vmatpush.bf16.msra.mxu0 0
    %1950 = vmatpush.bf16.msra.mxu0 %v1941
    %1951 = vmatmul.bf16.gmra.mxu0 %v1938
    %v1952 = vpop.f32.mrf.mxu0
    %v1953 = vadd.f32 0.0, %v1952
    %v1954 = vpop.f32.mrf.mxu0
    %1955 = vdwg.mxu0
    %v1957 = vsel %vm1667, %v1849, 0
    %v1960 = vsel %vm1863, %v1351, 0
    %1962 = vmatpush.bf16.msra.mxu0 0
    %1963 = vmatpush.bf16.msra.mxu0 0
    %1964 = vmatpush.bf16.msra.mxu0 0
    %1965 = vmatpush.bf16.msra.mxu0 0
    %1966 = vmatpush.bf16.msra.mxu0 0
    %1967 = vmatpush.bf16.msra.mxu0 0
    %1968 = vmatpush.bf16.msra.mxu0 0
    %1969 = vmatpush.bf16.msra.mxu0 %v1960
    %1970 = vmatmul.bf16.gmra.mxu0 %v1957
    %v1971 = vpop.f32.mrf.mxu0
    %v1972 = vadd.f32 0.0, %v1971
    %v1973 = vpop.f32.mrf.mxu0
    %1974 = vdwg.mxu0
    %v1976 = vsel %vm1667, %v1850, 0
    %v1979 = vsel %vm1863, %v1352, 0
    %1981 = vmatpush.bf16.msra.mxu0 0
    %1982 = vmatpush.bf16.msra.mxu0 0
    %1983 = vmatpush.bf16.msra.mxu0 0
    %1984 = vmatpush.bf16.msra.mxu0 0
    %1985 = vmatpush.bf16.msra.mxu0 0
    %1986 = vmatpush.bf16.msra.mxu0 0
    %1987 = vmatpush.bf16.msra.mxu0 0
    %1988 = vmatpush.bf16.msra.mxu0 %v1979
    %1989 = vmatmul.bf16.gmra.mxu0 %v1976
    %v1990 = vpop.f32.mrf.mxu0
    %v1991 = vadd.f32 0.0, %v1990
    %v1992 = vpop.f32.mrf.mxu0
    %1993 = vdwg.mxu0
    %v1995 = vsel %vm1667, %v1851, 0
    %v1998 = vsel %vm1863, %v1353, 0
    %2000 = vmatpush.bf16.msra.mxu0 0
    %2001 = vmatpush.bf16.msra.mxu0 0
    %2002 = vmatpush.bf16.msra.mxu0 0
    %2003 = vmatpush.bf16.msra.mxu0 0
    %2004 = vmatpush.bf16.msra.mxu0 0
    %2005 = vmatpush.bf16.msra.mxu0 0
    %2006 = vmatpush.bf16.msra.mxu0 0
    %2007 = vmatpush.bf16.msra.mxu0 %v1998
    %2008 = vmatmul.bf16.gmra.mxu0 %v1995
    %v2009 = vpop.f32.mrf.mxu0
    %v2010 = vadd.f32 0.0, %v2009
    %v2011 = vpop.f32.mrf.mxu0
    %2012 = vdwg.mxu0
    %v2014 = vsel %vm1667, %v1852, 0
    %v2017 = vsel %vm1863, %v1354, 0
    %2019 = vmatpush.bf16.msra.mxu0 0
    %2020 = vmatpush.bf16.msra.mxu0 0
    %2021 = vmatpush.bf16.msra.mxu0 0
    %2022 = vmatpush.bf16.msra.mxu0 0
    %2023 = vmatpush.bf16.msra.mxu0 0
    %2024 = vmatpush.bf16.msra.mxu0 0
    %2025 = vmatpush.bf16.msra.mxu0 0
    %2026 = vmatpush.bf16.msra.mxu0 %v2017
    %2027 = vmatmul.bf16.gmra.mxu0 %v2014
    %v2028 = vpop.f32.mrf.mxu0
    %v2029 = vadd.f32 0.0, %v2028
    %v2030 = vpop.f32.mrf.mxu0
    %2031 = vdwg.mxu0
    %v2033 = vsel %vm1667, %v1853, 0
    %v2036 = vsel %vm1863, %v1355, 0
    %2038 = vmatpush.bf16.msra.mxu0 0
    %2039 = vmatpush.bf16.msra.mxu0 0
    %2040 = vmatpush.bf16.msra.mxu0 0
    %2041 = vmatpush.bf16.msra.mxu0 0
    %2042 = vmatpush.bf16.msra.mxu0 0
    %2043 = vmatpush.bf16.msra.mxu0 0
    %2044 = vmatpush.bf16.msra.mxu0 0
    %2045 = vmatpush.bf16.msra.mxu0 %v2036
    %2046 = vmatmul.bf16.gmra.mxu0 %v2033
    %v2047 = vpop.f32.mrf.mxu0
    %v2048 = vadd.f32 0.0, %v2047
    %v2049 = vpop.f32.mrf.mxu0
    %2050 = vdwg.mxu0
    %v2052 = vsel %vm1667, %v1854, 0
    %v2055 = vsel %vm1863, %v1356, 0
    %2057 = vmatpush.bf16.msra.mxu0 0
    %2058 = vmatpush.bf16.msra.mxu0 0
    %2059 = vmatpush.bf16.msra.mxu0 0
    %2060 = vmatpush.bf16.msra.mxu0 0
    %2061 = vmatpush.bf16.msra.mxu0 0
    %2062 = vmatpush.bf16.msra.mxu0 0
    %2063 = vmatpush.bf16.msra.mxu0 0
    %2064 = vmatpush.bf16.msra.mxu0 %v2055
    %2065 = vmatmul.bf16.gmra.mxu0 %v2052
    %v2066 = vpop.f32.mrf.mxu0
    %v2067 = vadd.f32 0.0, %v2066
    %v2068 = vpop.f32.mrf.mxu0
    %2069 = vdwg.mxu0
    %v2071 = vsel %vm1667, %v1855, 0
    %v2074 = vsel %vm1863, %v1357, 0
    %2076 = vmatpush.bf16.msra.mxu0 0
    %2077 = vmatpush.bf16.msra.mxu0 0
    %2078 = vmatpush.bf16.msra.mxu0 0
    %2079 = vmatpush.bf16.msra.mxu0 0
    %2080 = vmatpush.bf16.msra.mxu0 0
    %2081 = vmatpush.bf16.msra.mxu0 0
    %2082 = vmatpush.bf16.msra.mxu0 0
    %2083 = vmatpush.bf16.msra.mxu0 %v2074
    %2084 = vmatmul.bf16.gmra.mxu0 %v2071
    %v2085 = vpop.f32.mrf.mxu0
    %v2086 = vadd.f32 0.0, %v2085
    %v2087 = vpop.f32.mrf.mxu0
    %2088 = vdwg.mxu0
    %v2090 = vsel %vm1667, %v1856, 0
    %v2093 = vsel %vm1863, %v1358, 0
    %2095 = vmatpush.bf16.msra.mxu0 0
    %2096 = vmatpush.bf16.msra.mxu0 0
    %2097 = vmatpush.bf16.msra.mxu0 0
    %2098 = vmatpush.bf16.msra.mxu0 0
    %2099 = vmatpush.bf16.msra.mxu0 0
    %2100 = vmatpush.bf16.msra.mxu0 0
    %2101 = vmatpush.bf16.msra.mxu0 0
    %2102 = vmatpush.bf16.msra.mxu0 %v2093
    %2103 = vmatmul.bf16.gmra.mxu0 %v2090
    %v2104 = vpop.f32.mrf.mxu0
    %v2105 = vadd.f32 0.0, %v2104
    %v2106 = vpop.f32.mrf.mxu0
    %2107 = vdwg.mxu0
    %v2109 = vsel %vm1667, %v1857, 0
    %v2112 = vsel %vm1863, %v1359, 0
    %2114 = vmatpush.bf16.msra.mxu0 0
    %2115 = vmatpush.bf16.msra.mxu0 0
    %2116 = vmatpush.bf16.msra.mxu0 0
    %2117 = vmatpush.bf16.msra.mxu0 0
    %2118 = vmatpush.bf16.msra.mxu0 0
    %2119 = vmatpush.bf16.msra.mxu0 0
    %2120 = vmatpush.bf16.msra.mxu0 0
    %2121 = vmatpush.bf16.msra.mxu0 %v2112
    %2122 = vmatmul.bf16.gmra.mxu0 %v2109
    %v2123 = vpop.f32.mrf.mxu0
    %v2124 = vadd.f32 0.0, %v2123
    %v2125 = vpop.f32.mrf.mxu0
    %2126 = vdwg.mxu0
    %v2128 = vsel %vm1667, %v1858, 0
    %v2131 = vsel %vm1863, %v1360, 0
    %2133 = vmatpush.bf16.msra.mxu0 0
    %2134 = vmatpush.bf16.msra.mxu0 0
    %2135 = vmatpush.bf16.msra.mxu0 0
    %2136 = vmatpush.bf16.msra.mxu0 0
    %2137 = vmatpush.bf16.msra.mxu0 0
    %2138 = vmatpush.bf16.msra.mxu0 0
    %2139 = vmatpush.bf16.msra.mxu0 0
    %2140 = vmatpush.bf16.msra.mxu0 %v2131
    %2141 = vmatmul.bf16.gmra.mxu0 %v2128
    %v2142 = vpop.f32.mrf.mxu0
    %v2143 = vadd.f32 0.0, %v2142
    %v2144 = vpop.f32.mrf.mxu0
    %2145 = vdwg.mxu0
    %v2147 = vsel %vm1667, %v1859, 0
    %v2150 = vsel %vm1863, %v1361, 0
    %2152 = vmatpush.bf16.msra.mxu0 0
    %2153 = vmatpush.bf16.msra.mxu0 0
    %2154 = vmatpush.bf16.msra.mxu0 0
    %2155 = vmatpush.bf16.msra.mxu0 0
    %2156 = vmatpush.bf16.msra.mxu0 0
    %2157 = vmatpush.bf16.msra.mxu0 0
    %2158 = vmatpush.bf16.msra.mxu0 0
    %2159 = vmatpush.bf16.msra.mxu0 %v2150
    %2160 = vmatmul.bf16.gmra.mxu0 %v2147
    %v2161 = vpop.f32.mrf.mxu0
    %v2162 = vadd.f32 0.0, %v2161
    %v2163 = vpop.f32.mrf.mxu0
    %2164 = vdwg.mxu0
    %v2166 = vunpack.c.l.b16 %v1314
    %v2167 = vpack.c.b16 %v2166, %v2166
    %2168 = vrot.lane.b32.xlu0 %v2167, 64
    %v2169 = vpop.permute.xlu0 %2168
    %v2171 = vunpack.c.l.b16 %v1330
    %v2172 = vpack.c.b16 %v2171, %v2171
    %2173 = vrot.lane.b32.xlu0 %v2172, 64
    %v2174 = vpop.permute.xlu0 %2173
    %v2176 = vsel %vm1362, %v2169, 0
    %v2179 = vsel %vm1362, %v2174, 0
    %2181 = vmatpush.bf16.xpose.msra.mxu0 0
    %2182 = vmatpush.bf16.xpose.msra.mxu0 0
    %2183 = vmatpush.bf16.xpose.msra.mxu0 0
    %2184 = vmatpush.bf16.xpose.msra.mxu0 0
    %2185 = vmatpush.bf16.xpose.msra.mxu0 0
    %2186 = vmatpush.bf16.xpose.msra.mxu0 0
    %2187 = vmatpush.bf16.xpose.msra.mxu0 0
    %2188 = vmatpush.bf16.xpose.msra.mxu0 %v2179
    %2189 = vmatmul.bf16.gmra.mxu0 %v2176
    %v2190 = vpop.f32.mrf.mxu0
    %v2191 = vadd.f32 0.0, %v2190
    %v2192 = vpop.f32.mrf.mxu0
    %2193 = vdwg.mxu0
    %v2195 = vunpack.c.l.b16 %v1315
    %v2196 = vpack.c.b16 %v2195, %v2195
    %2197 = vrot.lane.b32.xlu0 %v2196, 64
    %v2198 = vpop.permute.xlu0 %2197
    %v2200 = vunpack.c.l.b16 %v1331
    %v2201 = vpack.c.b16 %v2200, %v2200
    %2202 = vrot.lane.b32.xlu0 %v2201, 64
    %v2203 = vpop.permute.xlu0 %2202
    %v2205 = vsel %vm1362, %v2198, 0
    %v2208 = vsel %vm1362, %v2203, 0
    %2210 = vmatpush.bf16.xpose.msra.mxu0 0
    %2211 = vmatpush.bf16.xpose.msra.mxu0 0
    %2212 = vmatpush.bf16.xpose.msra.mxu0 0
    %2213 = vmatpush.bf16.xpose.msra.mxu0 0
    %2214 = vmatpush.bf16.xpose.msra.mxu0 0
    %2215 = vmatpush.bf16.xpose.msra.mxu0 0
    %2216 = vmatpush.bf16.xpose.msra.mxu0 0
    %2217 = vmatpush.bf16.xpose.msra.mxu0 %v2208
    %2218 = vmatmul.bf16.gmra.mxu0 %v2205
    %v2219 = vpop.f32.mrf.mxu0
    %v2220 = vadd.f32 0.0, %v2219
    %v2221 = vpop.f32.mrf.mxu0
    %2222 = vdwg.mxu0
    %v2224 = vunpack.c.l.b16 %v1316
    %v2225 = vpack.c.b16 %v2224, %v2224
    %2226 = vrot.lane.b32.xlu0 %v2225, 64
    %v2227 = vpop.permute.xlu0 %2226
    %v2229 = vunpack.c.l.b16 %v1332
    %v2230 = vpack.c.b16 %v2229, %v2229
    %2231 = vrot.lane.b32.xlu0 %v2230, 64
    %v2232 = vpop.permute.xlu0 %2231
    %v2234 = vsel %vm1362, %v2227, 0
    %v2237 = vsel %vm1362, %v2232, 0
    %2239 = vmatpush.bf16.xpose.msra.mxu0 0
    %2240 = vmatpush.bf16.xpose.msra.mxu0 0
    %2241 = vmatpush.bf16.xpose.msra.mxu0 0
    %2242 = vmatpush.bf16.xpose.msra.mxu0 0
    %2243 = vmatpush.bf16.xpose.msra.mxu0 0
    %2244 = vmatpush.bf16.xpose.msra.mxu0 0
    %2245 = vmatpush.bf16.xpose.msra.mxu0 0
    %2246 = vmatpush.bf16.xpose.msra.mxu0 %v2237
    %2247 = vmatmul.bf16.gmra.mxu0 %v2234
    %v2248 = vpop.f32.mrf.mxu0
    %v2249 = vadd.f32 0.0, %v2248
    %v2250 = vpop.f32.mrf.mxu0
    %2251 = vdwg.mxu0
    %v2253 = vunpack.c.l.b16 %v1317
    %v2254 = vpack.c.b16 %v2253, %v2253
    %2255 = vrot.lane.b32.xlu0 %v2254, 64
    %v2256 = vpop.permute.xlu0 %2255
    %v2258 = vunpack.c.l.b16 %v1333
    %v2259 = vpack.c.b16 %v2258, %v2258
    %2260 = vrot.lane.b32.xlu0 %v2259, 64
    %v2261 = vpop.permute.xlu0 %2260
    %v2263 = vsel %vm1362, %v2256, 0
    %v2266 = vsel %vm1362, %v2261, 0
    %2268 = vmatpush.bf16.xpose.msra.mxu0 0
    %2269 = vmatpush.bf16.xpose.msra.mxu0 0
    %2270 = vmatpush.bf16.xpose.msra.mxu0 0
    %2271 = vmatpush.bf16.xpose.msra.mxu0 0
    %2272 = vmatpush.bf16.xpose.msra.mxu0 0
    %2273 = vmatpush.bf16.xpose.msra.mxu0 0
    %2274 = vmatpush.bf16.xpose.msra.mxu0 0
    %2275 = vmatpush.bf16.xpose.msra.mxu0 %v2266
    %2276 = vmatmul.bf16.gmra.mxu0 %v2263
    %v2277 = vpop.f32.mrf.mxu0
    %v2278 = vadd.f32 0.0, %v2277
    %v2279 = vpop.f32.mrf.mxu0
    %2280 = vdwg.mxu0
    %v2282 = vunpack.c.l.b16 %v1318
    %v2283 = vpack.c.b16 %v2282, %v2282
    %2284 = vrot.lane.b32.xlu0 %v2283, 64
    %v2285 = vpop.permute.xlu0 %2284
    %v2287 = vunpack.c.l.b16 %v1334
    %v2288 = vpack.c.b16 %v2287, %v2287
    %2289 = vrot.lane.b32.xlu0 %v2288, 64
    %v2290 = vpop.permute.xlu0 %2289
    %v2292 = vsel %vm1362, %v2285, 0
    %v2295 = vsel %vm1362, %v2290, 0
    %2297 = vmatpush.bf16.xpose.msra.mxu0 0
    %2298 = vmatpush.bf16.xpose.msra.mxu0 0
    %2299 = vmatpush.bf16.xpose.msra.mxu0 0
    %2300 = vmatpush.bf16.xpose.msra.mxu0 0
    %2301 = vmatpush.bf16.xpose.msra.mxu0 0
    %2302 = vmatpush.bf16.xpose.msra.mxu0 0
    %2303 = vmatpush.bf16.xpose.msra.mxu0 0
    %2304 = vmatpush.bf16.xpose.msra.mxu0 %v2295
    %2305 = vmatmul.bf16.gmra.mxu0 %v2292
    %v2306 = vpop.f32.mrf.mxu0
    %v2307 = vadd.f32 0.0, %v2306
    %v2308 = vpop.f32.mrf.mxu0
    %2309 = vdwg.mxu0
    %v2311 = vunpack.c.l.b16 %v1319
    %v2312 = vpack.c.b16 %v2311, %v2311
    %2313 = vrot.lane.b32.xlu0 %v2312, 64
    %v2314 = vpop.permute.xlu0 %2313
    %v2316 = vunpack.c.l.b16 %v1335
    %v2317 = vpack.c.b16 %v2316, %v2316
    %2318 = vrot.lane.b32.xlu0 %v2317, 64
    %v2319 = vpop.permute.xlu0 %2318
    %v2321 = vsel %vm1362, %v2314, 0
    %v2324 = vsel %vm1362, %v2319, 0
    %2326 = vmatpush.bf16.xpose.msra.mxu0 0
    %2327 = vmatpush.bf16.xpose.msra.mxu0 0
    %2328 = vmatpush.bf16.xpose.msra.mxu0 0
    %2329 = vmatpush.bf16.xpose.msra.mxu0 0
    %2330 = vmatpush.bf16.xpose.msra.mxu0 0
    %2331 = vmatpush.bf16.xpose.msra.mxu0 0
    %2332 = vmatpush.bf16.xpose.msra.mxu0 0
    %2333 = vmatpush.bf16.xpose.msra.mxu0 %v2324
    %2334 = vmatmul.bf16.gmra.mxu0 %v2321
    %v2335 = vpop.f32.mrf.mxu0
    %v2336 = vadd.f32 0.0, %v2335
    %v2337 = vpop.f32.mrf.mxu0
    %2338 = vdwg.mxu0
    %v2340 = vunpack.c.l.b16 %v1320
    %v2341 = vpack.c.b16 %v2340, %v2340
    %2342 = vrot.lane.b32.xlu0 %v2341, 64
    %v2343 = vpop.permute.xlu0 %2342
    %v2345 = vunpack.c.l.b16 %v1336
    %v2346 = vpack.c.b16 %v2345, %v2345
    %2347 = vrot.lane.b32.xlu0 %v2346, 64
    %v2348 = vpop.permute.xlu0 %2347
    %v2350 = vsel %vm1362, %v2343, 0
    %v2353 = vsel %vm1362, %v2348, 0
    %2355 = vmatpush.bf16.xpose.msra.mxu0 0
    %2356 = vmatpush.bf16.xpose.msra.mxu0 0
    %2357 = vmatpush.bf16.xpose.msra.mxu0 0
    %2358 = vmatpush.bf16.xpose.msra.mxu0 0
    %2359 = vmatpush.bf16.xpose.msra.mxu0 0
    %2360 = vmatpush.bf16.xpose.msra.mxu0 0
    %2361 = vmatpush.bf16.xpose.msra.mxu0 0
    %2362 = vmatpush.bf16.xpose.msra.mxu0 %v2353
    %2363 = vmatmul.bf16.gmra.mxu0 %v2350
    %v2364 = vpop.f32.mrf.mxu0
    %v2365 = vadd.f32 0.0, %v2364
    %v2366 = vpop.f32.mrf.mxu0
    %2367 = vdwg.mxu0
    %v2369 = vunpack.c.l.b16 %v1321
    %v2370 = vpack.c.b16 %v2369, %v2369
    %2371 = vrot.lane.b32.xlu0 %v2370, 64
    %v2372 = vpop.permute.xlu0 %2371
    %v2374 = vunpack.c.l.b16 %v1337
    %v2375 = vpack.c.b16 %v2374, %v2374
    %2376 = vrot.lane.b32.xlu0 %v2375, 64
    %v2377 = vpop.permute.xlu0 %2376
    %v2379 = vsel %vm1362, %v2372, 0
    %v2382 = vsel %vm1362, %v2377, 0
    %2384 = vmatpush.bf16.xpose.msra.mxu0 0
    %2385 = vmatpush.bf16.xpose.msra.mxu0 0
    %2386 = vmatpush.bf16.xpose.msra.mxu0 0
    %2387 = vmatpush.bf16.xpose.msra.mxu0 0
    %2388 = vmatpush.bf16.xpose.msra.mxu0 0
    %2389 = vmatpush.bf16.xpose.msra.mxu0 0
    %2390 = vmatpush.bf16.xpose.msra.mxu0 0
    %2391 = vmatpush.bf16.xpose.msra.mxu0 %v2382
    %2392 = vmatmul.bf16.gmra.mxu0 %v2379
    %v2393 = vpop.f32.mrf.mxu0
    %v2394 = vadd.f32 0.0, %v2393
    %v2395 = vpop.f32.mrf.mxu0
    %2396 = vdwg.mxu0
    %v2398 = vunpack.c.l.b16 %v1322
    %v2399 = vpack.c.b16 %v2398, %v2398
    %2400 = vrot.lane.b32.xlu0 %v2399, 64
    %v2401 = vpop.permute.xlu0 %2400
    %v2403 = vunpack.c.l.b16 %v1338
    %v2404 = vpack.c.b16 %v2403, %v2403
    %2405 = vrot.lane.b32.xlu0 %v2404, 64
    %v2406 = vpop.permute.xlu0 %2405
    %v2408 = vsel %vm1362, %v2401, 0
    %v2411 = vsel %vm1362, %v2406, 0
    %2413 = vmatpush.bf16.xpose.msra.mxu0 0
    %2414 = vmatpush.bf16.xpose.msra.mxu0 0
    %2415 = vmatpush.bf16.xpose.msra.mxu0 0
    %2416 = vmatpush.bf16.xpose.msra.mxu0 0
    %2417 = vmatpush.bf16.xpose.msra.mxu0 0
    %2418 = vmatpush.bf16.xpose.msra.mxu0 0
    %2419 = vmatpush.bf16.xpose.msra.mxu0 0
    %2420 = vmatpush.bf16.xpose.msra.mxu0 %v2411
    %2421 = vmatmul.bf16.gmra.mxu0 %v2408
    %v2422 = vpop.f32.mrf.mxu0
    %v2423 = vadd.f32 0.0, %v2422
    %v2424 = vpop.f32.mrf.mxu0
    %2425 = vdwg.mxu0
    %v2427 = vunpack.c.l.b16 %v1323
    %v2428 = vpack.c.b16 %v2427, %v2427
    %2429 = vrot.lane.b32.xlu0 %v2428, 64
    %v2430 = vpop.permute.xlu0 %2429
    %v2432 = vunpack.c.l.b16 %v1339
    %v2433 = vpack.c.b16 %v2432, %v2432
    %2434 = vrot.lane.b32.xlu0 %v2433, 64
    %v2435 = vpop.permute.xlu0 %2434
    %v2437 = vsel %vm1362, %v2430, 0
    %v2440 = vsel %vm1362, %v2435, 0
    %2442 = vmatpush.bf16.xpose.msra.mxu0 0
    %2443 = vmatpush.bf16.xpose.msra.mxu0 0
    %2444 = vmatpush.bf16.xpose.msra.mxu0 0
    %2445 = vmatpush.bf16.xpose.msra.mxu0 0
    %2446 = vmatpush.bf16.xpose.msra.mxu0 0
    %2447 = vmatpush.bf16.xpose.msra.mxu0 0
    %2448 = vmatpush.bf16.xpose.msra.mxu0 0
    %2449 = vmatpush.bf16.xpose.msra.mxu0 %v2440
    %2450 = vmatmul.bf16.gmra.mxu0 %v2437
    %v2451 = vpop.f32.mrf.mxu0
    %v2452 = vadd.f32 0.0, %v2451
    %v2453 = vpop.f32.mrf.mxu0
    %2454 = vdwg.mxu0
    %v2456 = vunpack.c.l.b16 %v1324
    %v2457 = vpack.c.b16 %v2456, %v2456
    %2458 = vrot.lane.b32.xlu0 %v2457, 64
    %v2459 = vpop.permute.xlu0 %2458
    %v2461 = vunpack.c.l.b16 %v1340
    %v2462 = vpack.c.b16 %v2461, %v2461
    %2463 = vrot.lane.b32.xlu0 %v2462, 64
    %v2464 = vpop.permute.xlu0 %2463
    %v2466 = vsel %vm1362, %v2459, 0
    %v2469 = vsel %vm1362, %v2464, 0
    %2471 = vmatpush.bf16.xpose.msra.mxu0 0
    %2472 = vmatpush.bf16.xpose.msra.mxu0 0
    %2473 = vmatpush.bf16.xpose.msra.mxu0 0
    %2474 = vmatpush.bf16.xpose.msra.mxu0 0
    %2475 = vmatpush.bf16.xpose.msra.mxu0 0
    %2476 = vmatpush.bf16.xpose.msra.mxu0 0
    %2477 = vmatpush.bf16.xpose.msra.mxu0 0
    %2478 = vmatpush.bf16.xpose.msra.mxu0 %v2469
    %2479 = vmatmul.bf16.gmra.mxu0 %v2466
    %v2480 = vpop.f32.mrf.mxu0
    %v2481 = vadd.f32 0.0, %v2480
    %v2482 = vpop.f32.mrf.mxu0
    %2483 = vdwg.mxu0
    %v2485 = vunpack.c.l.b16 %v1325
    %v2486 = vpack.c.b16 %v2485, %v2485
    %2487 = vrot.lane.b32.xlu0 %v2486, 64
    %v2488 = vpop.permute.xlu0 %2487
    %v2490 = vunpack.c.l.b16 %v1341
    %v2491 = vpack.c.b16 %v2490, %v2490
    %2492 = vrot.lane.b32.xlu0 %v2491, 64
    %v2493 = vpop.permute.xlu0 %2492
    %v2495 = vsel %vm1362, %v2488, 0
    %v2498 = vsel %vm1362, %v2493, 0
    %2500 = vmatpush.bf16.xpose.msra.mxu0 0
    %2501 = vmatpush.bf16.xpose.msra.mxu0 0
    %2502 = vmatpush.bf16.xpose.msra.mxu0 0
    %2503 = vmatpush.bf16.xpose.msra.mxu0 0
    %2504 = vmatpush.bf16.xpose.msra.mxu0 0
    %2505 = vmatpush.bf16.xpose.msra.mxu0 0
    %2506 = vmatpush.bf16.xpose.msra.mxu0 0
    %2507 = vmatpush.bf16.xpose.msra.mxu0 %v2498
    %2508 = vmatmul.bf16.gmra.mxu0 %v2495
    %v2509 = vpop.f32.mrf.mxu0
    %v2510 = vadd.f32 0.0, %v2509
    %v2511 = vpop.f32.mrf.mxu0
    %2512 = vdwg.mxu0
    %v2514 = vunpack.c.l.b16 %v1326
    %v2515 = vpack.c.b16 %v2514, %v2514
    %2516 = vrot.lane.b32.xlu0 %v2515, 64
    %v2517 = vpop.permute.xlu0 %2516
    %v2519 = vunpack.c.l.b16 %v1342
    %v2520 = vpack.c.b16 %v2519, %v2519
    %2521 = vrot.lane.b32.xlu0 %v2520, 64
    %v2522 = vpop.permute.xlu0 %2521
    %v2524 = vsel %vm1362, %v2517, 0
    %v2527 = vsel %vm1362, %v2522, 0
    %2529 = vmatpush.bf16.xpose.msra.mxu0 0
    %2530 = vmatpush.bf16.xpose.msra.mxu0 0
    %2531 = vmatpush.bf16.xpose.msra.mxu0 0
    %2532 = vmatpush.bf16.xpose.msra.mxu0 0
    %2533 = vmatpush.bf16.xpose.msra.mxu0 0
    %2534 = vmatpush.bf16.xpose.msra.mxu0 0
    %2535 = vmatpush.bf16.xpose.msra.mxu0 0
    %2536 = vmatpush.bf16.xpose.msra.mxu0 %v2527
    %2537 = vmatmul.bf16.gmra.mxu0 %v2524
    %v2538 = vpop.f32.mrf.mxu0
    %v2539 = vadd.f32 0.0, %v2538
    %v2540 = vpop.f32.mrf.mxu0
    %2541 = vdwg.mxu0
    %v2543 = vunpack.c.l.b16 %v1327
    %v2544 = vpack.c.b16 %v2543, %v2543
    %2545 = vrot.lane.b32.xlu0 %v2544, 64
    %v2546 = vpop.permute.xlu0 %2545
    %v2548 = vunpack.c.l.b16 %v1343
    %v2549 = vpack.c.b16 %v2548, %v2548
    %2550 = vrot.lane.b32.xlu0 %v2549, 64
    %v2551 = vpop.permute.xlu0 %2550
    %v2553 = vsel %vm1362, %v2546, 0
    %v2556 = vsel %vm1362, %v2551, 0
    %2558 = vmatpush.bf16.xpose.msra.mxu0 0
    %2559 = vmatpush.bf16.xpose.msra.mxu0 0
    %2560 = vmatpush.bf16.xpose.msra.mxu0 0
    %2561 = vmatpush.bf16.xpose.msra.mxu0 0
    %2562 = vmatpush.bf16.xpose.msra.mxu0 0
    %2563 = vmatpush.bf16.xpose.msra.mxu0 0
    %2564 = vmatpush.bf16.xpose.msra.mxu0 0
    %2565 = vmatpush.bf16.xpose.msra.mxu0 %v2556
    %2566 = vmatmul.bf16.gmra.mxu0 %v2553
    %v2567 = vpop.f32.mrf.mxu0
    %v2568 = vadd.f32 0.0, %v2567
    %v2569 = vpop.f32.mrf.mxu0
    %2570 = vdwg.mxu0
    %v2572 = vunpack.c.l.b16 %v1328
    %v2573 = vpack.c.b16 %v2572, %v2572
    %2574 = vrot.lane.b32.xlu0 %v2573, 64
    %v2575 = vpop.permute.xlu0 %2574
    %v2577 = vunpack.c.l.b16 %v1344
    %v2578 = vpack.c.b16 %v2577, %v2577
    %2579 = vrot.lane.b32.xlu0 %v2578, 64
    %v2580 = vpop.permute.xlu0 %2579
    %v2582 = vsel %vm1362, %v2575, 0
    %v2585 = vsel %vm1362, %v2580, 0
    %2587 = vmatpush.bf16.xpose.msra.mxu0 0
    %2588 = vmatpush.bf16.xpose.msra.mxu0 0
    %2589 = vmatpush.bf16.xpose.msra.mxu0 0
    %2590 = vmatpush.bf16.xpose.msra.mxu0 0
    %2591 = vmatpush.bf16.xpose.msra.mxu0 0
    %2592 = vmatpush.bf16.xpose.msra.mxu0 0
    %2593 = vmatpush.bf16.xpose.msra.mxu0 0
    %2594 = vmatpush.bf16.xpose.msra.mxu0 %v2585
    %2595 = vmatmul.bf16.gmra.mxu0 %v2582
    %v2596 = vpop.f32.mrf.mxu0
    %v2597 = vadd.f32 0.0, %v2596
    %v2598 = vpop.f32.mrf.mxu0
    %2599 = vdwg.mxu0
    %v2601 = vunpack.c.l.b16 %v1329
    %v2602 = vpack.c.b16 %v2601, %v2601
    %2603 = vrot.lane.b32.xlu0 %v2602, 64
    %v2604 = vpop.permute.xlu0 %2603
    %v2606 = vunpack.c.l.b16 %v1345
    %v2607 = vpack.c.b16 %v2606, %v2606
    %2608 = vrot.lane.b32.xlu0 %v2607, 64
    %v2609 = vpop.permute.xlu0 %2608
    %v2611 = vsel %vm1362, %v2604, 0
    %v2614 = vsel %vm1362, %v2609, 0
    %2616 = vmatpush.bf16.xpose.msra.mxu0 0
    %2617 = vmatpush.bf16.xpose.msra.mxu0 0
    %2618 = vmatpush.bf16.xpose.msra.mxu0 0
    %2619 = vmatpush.bf16.xpose.msra.mxu0 0
    %2620 = vmatpush.bf16.xpose.msra.mxu0 0
    %2621 = vmatpush.bf16.xpose.msra.mxu0 0
    %2622 = vmatpush.bf16.xpose.msra.mxu0 0
    %2623 = vmatpush.bf16.xpose.msra.mxu0 %v2614
    %2624 = vmatmul.bf16.gmra.mxu0 %v2611
    %v2625 = vpop.f32.mrf.mxu0
    %v2626 = vadd.f32 0.0, %v2625
    %v2627 = vpop.f32.mrf.mxu0
    %2628 = vdwg.mxu0
    %v2629 = vsel %vm1667, %v2191, -inf
    %2630 = vmax.xlane.f32.xlu0 %v2629
    %v2631 = vpop.xlane.xlu0 %2630
    %v2632 = vsel %vm1667, %v2220, -inf
    %2633 = vmax.xlane.f32.xlu0 %v2632
    %v2634 = vpop.xlane.xlu0 %2633
    %v2635 = vsel %vm1667, %v2249, -inf
    %2636 = vmax.xlane.f32.xlu0 %v2635
    %v2637 = vpop.xlane.xlu0 %2636
    %v2638 = vsel %vm1667, %v2278, -inf
    %2639 = vmax.xlane.f32.xlu0 %v2638
    %v2640 = vpop.xlane.xlu0 %2639
    %v2641 = vsel %vm1667, %v2307, -inf
    %2642 = vmax.xlane.f32.xlu0 %v2641
    %v2643 = vpop.xlane.xlu0 %2642
    %v2644 = vsel %vm1667, %v2336, -inf
    %2645 = vmax.xlane.f32.xlu0 %v2644
    %v2646 = vpop.xlane.xlu0 %2645
    %v2647 = vsel %vm1667, %v2365, -inf
    %2648 = vmax.xlane.f32.xlu0 %v2647
    %v2649 = vpop.xlane.xlu0 %2648
    %v2650 = vsel %vm1667, %v2394, -inf
    %2651 = vmax.xlane.f32.xlu0 %v2650
    %v2652 = vpop.xlane.xlu0 %2651
    %v2653 = vsel %vm1667, %v2423, -inf
    %2654 = vmax.xlane.f32.xlu0 %v2653
    %v2655 = vpop.xlane.xlu0 %2654
    %v2656 = vsel %vm1667, %v2452, -inf
    %2657 = vmax.xlane.f32.xlu0 %v2656
    %v2658 = vpop.xlane.xlu0 %2657
    %v2659 = vsel %vm1667, %v2481, -inf
    %2660 = vmax.xlane.f32.xlu0 %v2659
    %v2661 = vpop.xlane.xlu0 %2660
    %v2662 = vsel %vm1667, %v2510, -inf
    %2663 = vmax.xlane.f32.xlu0 %v2662
    %v2664 = vpop.xlane.xlu0 %2663
    %v2665 = vsel %vm1667, %v2539, -inf
    %2666 = vmax.xlane.f32.xlu0 %v2665
    %v2667 = vpop.xlane.xlu0 %2666
    %v2668 = vsel %vm1667, %v2568, -inf
    %2669 = vmax.xlane.f32.xlu0 %v2668
    %v2670 = vpop.xlane.xlu0 %2669
    %v2671 = vsel %vm1667, %v2597, -inf
    %2672 = vmax.xlane.f32.xlu0 %v2671
    %v2673 = vpop.xlane.xlu0 %2672
    %v2674 = vsel %vm1667, %v2626, -inf
    %2675 = vmax.xlane.f32.xlu0 %v2674
    %v2676 = vpop.xlane.xlu0 %2675
    %v2677 = vsub.f32 %v2191, %v2631
    %v2678 = vsub.f32 %v2220, %v2634
    %v2679 = vsub.f32 %v2249, %v2637
    %v2680 = vsub.f32 %v2278, %v2640
    %v2681 = vsub.f32 %v2307, %v2643
    %v2682 = vsub.f32 %v2336, %v2646
    %v2683 = vsub.f32 %v2365, %v2649
    %v2684 = vsub.f32 %v2394, %v2652
    %v2685 = vsub.f32 %v2423, %v2655
    %v2686 = vsub.f32 %v2452, %v2658
    %v2687 = vsub.f32 %v2481, %v2661
    %v2688 = vsub.f32 %v2510, %v2664
    %v2689 = vsub.f32 %v2539, %v2667
    %v2690 = vsub.f32 %v2568, %v2670
    %v2691 = vsub.f32 %v2597, %v2673
    %v2692 = vsub.f32 %v2626, %v2676
    %v2693 = vmul.f32 %v2677, 1.442695
    %v2694 = vpow.pop %v2693
    %v2695 = vmul.f32 %v2678, 1.442695
    %v2696 = vpow.pop %v2695
    %v2697 = vmul.f32 %v2679, 1.442695
    %v2698 = vpow.pop %v2697
    %v2699 = vmul.f32 %v2680, 1.442695
    %v2700 = vpow.pop %v2699
    %v2701 = vmul.f32 %v2681, 1.442695
    %v2702 = vpow.pop %v2701
    %v2703 = vmul.f32 %v2682, 1.442695
    %v2704 = vpow.pop %v2703
    %v2705 = vmul.f32 %v2683, 1.442695
    %v2706 = vpow.pop %v2705
    %v2707 = vmul.f32 %v2684, 1.442695
    %v2708 = vpow.pop %v2707
    %v2709 = vmul.f32 %v2685, 1.442695
    %v2710 = vpow.pop %v2709
    %v2711 = vmul.f32 %v2686, 1.442695
    %v2712 = vpow.pop %v2711
    %v2713 = vmul.f32 %v2687, 1.442695
    %v2714 = vpow.pop %v2713
    %v2715 = vmul.f32 %v2688, 1.442695
    %v2716 = vpow.pop %v2715
    %v2717 = vmul.f32 %v2689, 1.442695
    %v2718 = vpow.pop %v2717
    %v2719 = vmul.f32 %v2690, 1.442695
    %v2720 = vpow.pop %v2719
    %v2721 = vmul.f32 %v2691, 1.442695
    %v2722 = vpow.pop %v2721
    %v2723 = vmul.f32 %v2692, 1.442695
    %v2724 = vpow.pop %v2723
    %v2725 = vsel %vm1667, %v2694, 0.0
    %2726 = vadd.xlane.f32.xlu0 %v2725
    %v2727 = vpop.xlane.xlu0 %2726
    %v2728 = vsel %vm1667, %v2696, 0.0
    %2729 = vadd.xlane.f32.xlu0 %v2728
    %v2730 = vpop.xlane.xlu0 %2729
    %v2731 = vsel %vm1667, %v2698, 0.0
    %2732 = vadd.xlane.f32.xlu0 %v2731
    %v2733 = vpop.xlane.xlu0 %2732
    %v2734 = vsel %vm1667, %v2700, 0.0
    %2735 = vadd.xlane.f32.xlu0 %v2734
    %v2736 = vpop.xlane.xlu0 %2735
    %v2737 = vsel %vm1667, %v2702, 0.0
    %2738 = vadd.xlane.f32.xlu0 %v2737
    %v2739 = vpop.xlane.xlu0 %2738
    %v2740 = vsel %vm1667, %v2704, 0.0
    %2741 = vadd.xlane.f32.xlu0 %v2740
    %v2742 = vpop.xlane.xlu0 %2741
    %v2743 = vsel %vm1667, %v2706, 0.0
    %2744 = vadd.xlane.f32.xlu0 %v2743
    %v2745 = vpop.xlane.xlu0 %2744
    %v2746 = vsel %vm1667, %v2708, 0.0
    %2747 = vadd.xlane.f32.xlu0 %v2746
    %v2748 = vpop.xlane.xlu0 %2747
    %v2749 = vsel %vm1667, %v2710, 0.0
    %2750 = vadd.xlane.f32.xlu0 %v2749
    %v2751 = vpop.xlane.xlu0 %2750
    %v2752 = vsel %vm1667, %v2712, 0.0
    %2753 = vadd.xlane.f32.xlu0 %v2752
    %v2754 = vpop.xlane.xlu0 %2753
    %v2755 = vsel %vm1667, %v2714, 0.0
    %2756 = vadd.xlane.f32.xlu0 %v2755
    %v2757 = vpop.xlane.xlu0 %2756
    %v2758 = vsel %vm1667, %v2716, 0.0
    %2759 = vadd.xlane.f32.xlu0 %v2758
    %v2760 = vpop.xlane.xlu0 %2759
    %v2761 = vsel %vm1667, %v2718, 0.0
    %2762 = vadd.xlane.f32.xlu0 %v2761
    %v2763 = vpop.xlane.xlu0 %2762
    %v2764 = vsel %vm1667, %v2720, 0.0
    %2765 = vadd.xlane.f32.xlu0 %v2764
    %v2766 = vpop.xlane.xlu0 %2765
    %v2767 = vsel %vm1667, %v2722, 0.0
    %2768 = vadd.xlane.f32.xlu0 %v2767
    %v2769 = vpop.xlane.xlu0 %2768
    %v2770 = vsel %vm1667, %v2724, 0.0
    %2771 = vadd.xlane.f32.xlu0 %v2770
    %v2772 = vpop.xlane.xlu0 %2771
    %v2773 = vrcp.pop %v2727
    %v2774 = vrcp.pop %v2730
    %v2775 = vrcp.pop %v2733
    %v2776 = vrcp.pop %v2736
    %v2777 = vrcp.pop %v2739
    %v2778 = vrcp.pop %v2742
    %v2779 = vrcp.pop %v2745
    %v2780 = vrcp.pop %v2748
    %v2781 = vrcp.pop %v2751
    %v2782 = vrcp.pop %v2754
    %v2783 = vrcp.pop %v2757
    %v2784 = vrcp.pop %v2760
    %v2785 = vrcp.pop %v2763
    %v2786 = vrcp.pop %v2766
    %v2787 = vrcp.pop %v2769
    %v2788 = vrcp.pop %v2772
    %v2789 = vmul.f32 %v2694, %v2773
    %v2790 = vmul.f32 %v2696, %v2774
    %v2791 = vmul.f32 %v2698, %v2775
    %v2792 = vmul.f32 %v2700, %v2776
    %v2793 = vmul.f32 %v2702, %v2777
    %v2794 = vmul.f32 %v2704, %v2778
    %v2795 = vmul.f32 %v2706, %v2779
    %v2796 = vmul.f32 %v2708, %v2780
    %v2797 = vmul.f32 %v2710, %v2781
    %v2798 = vmul.f32 %v2712, %v2782
    %v2799 = vmul.f32 %v2714, %v2783
    %v2800 = vmul.f32 %v2716, %v2784
    %v2801 = vmul.f32 %v2718, %v2785
    %v2802 = vmul.f32 %v2720, %v2786
    %v2803 = vmul.f32 %v2722, %v2787
    %v2804 = vmul.f32 %v2724, %v2788
    %v2805 = vpack.c.bf16 %v2789, %v2789
    %v2806 = vpack.c.bf16 %v2790, %v2790
    %v2807 = vpack.c.bf16 %v2791, %v2791
    %v2808 = vpack.c.bf16 %v2792, %v2792
    %v2809 = vpack.c.bf16 %v2793, %v2793
    %v2810 = vpack.c.bf16 %v2794, %v2794
    %v2811 = vpack.c.bf16 %v2795, %v2795
    %v2812 = vpack.c.bf16 %v2796, %v2796
    %v2813 = vpack.c.bf16 %v2797, %v2797
    %v2814 = vpack.c.bf16 %v2798, %v2798
    %v2815 = vpack.c.bf16 %v2799, %v2799
    %v2816 = vpack.c.bf16 %v2800, %v2800
    %v2817 = vpack.c.bf16 %v2801, %v2801
    %v2818 = vpack.c.bf16 %v2802, %v2802
    %v2819 = vpack.c.bf16 %v2803, %v2803
    %v2820 = vpack.c.bf16 %v2804, %v2804
    %v2822 = vunpack.c.l.b16 %v1346
    %v2823 = vpack.c.b16 %v2822, %v2822
    %2824 = vrot.lane.b32.xlu0 %v2823, 64
    %v2825 = vpop.permute.xlu0 %2824
    %v2827 = vsel %vm1667, %v2805, 0
    %v2830 = vsel %vm1863, %v2825, 0
    %2832 = vmatpush.bf16.msra.mxu0 0
    %2833 = vmatpush.bf16.msra.mxu0 0
    %2834 = vmatpush.bf16.msra.mxu0 0
    %2835 = vmatpush.bf16.msra.mxu0 0
    %2836 = vmatpush.bf16.msra.mxu0 0
    %2837 = vmatpush.bf16.msra.mxu0 0
    %2838 = vmatpush.bf16.msra.mxu0 0
    %2839 = vmatpush.bf16.msra.mxu0 %v2830
    %2840 = vmatmul.bf16.gmra.mxu0 %v2827
    %v2841 = vpop.f32.mrf.mxu0
    %v2842 = vadd.f32 0.0, %v2841
    %v2843 = vpop.f32.mrf.mxu0
    %2844 = vdwg.mxu0
    %v2846 = vunpack.c.l.b16 %v1347
    %v2847 = vpack.c.b16 %v2846, %v2846
    %2848 = vrot.lane.b32.xlu0 %v2847, 64
    %v2849 = vpop.permute.xlu0 %2848
    %v2851 = vsel %vm1667, %v2806, 0
    %v2854 = vsel %vm1863, %v2849, 0
    %2856 = vmatpush.bf16.msra.mxu0 0
    %2857 = vmatpush.bf16.msra.mxu0 0
    %2858 = vmatpush.bf16.msra.mxu0 0
    %2859 = vmatpush.bf16.msra.mxu0 0
    %2860 = vmatpush.bf16.msra.mxu0 0
    %2861 = vmatpush.bf16.msra.mxu0 0
    %2862 = vmatpush.bf16.msra.mxu0 0
    %2863 = vmatpush.bf16.msra.mxu0 %v2854
    %2864 = vmatmul.bf16.gmra.mxu0 %v2851
    %v2865 = vpop.f32.mrf.mxu0
    %v2866 = vadd.f32 0.0, %v2865
    %v2867 = vpop.f32.mrf.mxu0
    %2868 = vdwg.mxu0
    %v2870 = vunpack.c.l.b16 %v1348
    %v2871 = vpack.c.b16 %v2870, %v2870
    %2872 = vrot.lane.b32.xlu0 %v2871, 64
    %v2873 = vpop.permute.xlu0 %2872
    %v2875 = vsel %vm1667, %v2807, 0
    %v2878 = vsel %vm1863, %v2873, 0
    %2880 = vmatpush.bf16.msra.mxu0 0
    %2881 = vmatpush.bf16.msra.mxu0 0
    %2882 = vmatpush.bf16.msra.mxu0 0
    %2883 = vmatpush.bf16.msra.mxu0 0
    %2884 = vmatpush.bf16.msra.mxu0 0
    %2885 = vmatpush.bf16.msra.mxu0 0
    %2886 = vmatpush.bf16.msra.mxu0 0
    %2887 = vmatpush.bf16.msra.mxu0 %v2878
    %2888 = vmatmul.bf16.gmra.mxu0 %v2875
    %v2889 = vpop.f32.mrf.mxu0
    %v2890 = vadd.f32 0.0, %v2889
    %v2891 = vpop.f32.mrf.mxu0
    %2892 = vdwg.mxu0
    %v2894 = vunpack.c.l.b16 %v1349
    %v2895 = vpack.c.b16 %v2894, %v2894
    %2896 = vrot.lane.b32.xlu0 %v2895, 64
    %v2897 = vpop.permute.xlu0 %2896
    %v2899 = vsel %vm1667, %v2808, 0
    %v2902 = vsel %vm1863, %v2897, 0
    %2904 = vmatpush.bf16.msra.mxu0 0
    %2905 = vmatpush.bf16.msra.mxu0 0
    %2906 = vmatpush.bf16.msra.mxu0 0
    %2907 = vmatpush.bf16.msra.mxu0 0
    %2908 = vmatpush.bf16.msra.mxu0 0
    %2909 = vmatpush.bf16.msra.mxu0 0
    %2910 = vmatpush.bf16.msra.mxu0 0
    %2911 = vmatpush.bf16.msra.mxu0 %v2902
    %2912 = vmatmul.bf16.gmra.mxu0 %v2899
    %v2913 = vpop.f32.mrf.mxu0
    %v2914 = vadd.f32 0.0, %v2913
    %v2915 = vpop.f32.mrf.mxu0
    %2916 = vdwg.mxu0
    %v2918 = vunpack.c.l.b16 %v1350
    %v2919 = vpack.c.b16 %v2918, %v2918
    %2920 = vrot.lane.b32.xlu0 %v2919, 64
    %v2921 = vpop.permute.xlu0 %2920
    %v2923 = vsel %vm1667, %v2809, 0
    %v2926 = vsel %vm1863, %v2921, 0
    %2928 = vmatpush.bf16.msra.mxu0 0
    %2929 = vmatpush.bf16.msra.mxu0 0
    %2930 = vmatpush.bf16.msra.mxu0 0
    %2931 = vmatpush.bf16.msra.mxu0 0
    %2932 = vmatpush.bf16.msra.mxu0 0
    %2933 = vmatpush.bf16.msra.mxu0 0
    %2934 = vmatpush.bf16.msra.mxu0 0
    %2935 = vmatpush.bf16.msra.mxu0 %v2926
    %2936 = vmatmul.bf16.gmra.mxu0 %v2923
    %v2937 = vpop.f32.mrf.mxu0
    %v2938 = vadd.f32 0.0, %v2937
    %v2939 = vpop.f32.mrf.mxu0
    %2940 = vdwg.mxu0
    %v2942 = vunpack.c.l.b16 %v1351
    %v2943 = vpack.c.b16 %v2942, %v2942
    %2944 = vrot.lane.b32.xlu0 %v2943, 64
    %v2945 = vpop.permute.xlu0 %2944
    %v2947 = vsel %vm1667, %v2810, 0
    %v2950 = vsel %vm1863, %v2945, 0
    %2952 = vmatpush.bf16.msra.mxu0 0
    %2953 = vmatpush.bf16.msra.mxu0 0
    %2954 = vmatpush.bf16.msra.mxu0 0
    %2955 = vmatpush.bf16.msra.mxu0 0
    %2956 = vmatpush.bf16.msra.mxu0 0
    %2957 = vmatpush.bf16.msra.mxu0 0
    %2958 = vmatpush.bf16.msra.mxu0 0
    %2959 = vmatpush.bf16.msra.mxu0 %v2950
    %2960 = vmatmul.bf16.gmra.mxu0 %v2947
    %v2961 = vpop.f32.mrf.mxu0
    %v2962 = vadd.f32 0.0, %v2961
    %v2963 = vpop.f32.mrf.mxu0
    %2964 = vdwg.mxu0
    %v2966 = vunpack.c.l.b16 %v1352
    %v2967 = vpack.c.b16 %v2966, %v2966
    %2968 = vrot.lane.b32.xlu0 %v2967, 64
    %v2969 = vpop.permute.xlu0 %2968
    %v2971 = vsel %vm1667, %v2811, 0
    %v2974 = vsel %vm1863, %v2969, 0
    %2976 = vmatpush.bf16.msra.mxu0 0
    %2977 = vmatpush.bf16.msra.mxu0 0
    %2978 = vmatpush.bf16.msra.mxu0 0
    %2979 = vmatpush.bf16.msra.mxu0 0
    %2980 = vmatpush.bf16.msra.mxu0 0
    %2981 = vmatpush.bf16.msra.mxu0 0
    %2982 = vmatpush.bf16.msra.mxu0 0
    %2983 = vmatpush.bf16.msra.mxu0 %v2974
    %2984 = vmatmul.bf16.gmra.mxu0 %v2971
    %v2985 = vpop.f32.mrf.mxu0
    %v2986 = vadd.f32 0.0, %v2985
    %v2987 = vpop.f32.mrf.mxu0
    %2988 = vdwg.mxu0
    %v2990 = vunpack.c.l.b16 %v1353
    %v2991 = vpack.c.b16 %v2990, %v2990
    %2992 = vrot.lane.b32.xlu0 %v2991, 64
    %v2993 = vpop.permute.xlu0 %2992
    %v2995 = vsel %vm1667, %v2812, 0
    %v2998 = vsel %vm1863, %v2993, 0
    %3000 = vmatpush.bf16.msra.mxu0 0
    %3001 = vmatpush.bf16.msra.mxu0 0
    %3002 = vmatpush.bf16.msra.mxu0 0
    %3003 = vmatpush.bf16.msra.mxu0 0
    %3004 = vmatpush.bf16.msra.mxu0 0
    %3005 = vmatpush.bf16.msra.mxu0 0
    %3006 = vmatpush.bf16.msra.mxu0 0
    %3007 = vmatpush.bf16.msra.mxu0 %v2998
    %3008 = vmatmul.bf16.gmra.mxu0 %v2995
    %v3009 = vpop.f32.mrf.mxu0
    %v3010 = vadd.f32 0.0, %v3009
    %v3011 = vpop.f32.mrf.mxu0
    %3012 = vdwg.mxu0
    %v3014 = vunpack.c.l.b16 %v1354
    %v3015 = vpack.c.b16 %v3014, %v3014
    %3016 = vrot.lane.b32.xlu0 %v3015, 64
    %v3017 = vpop.permute.xlu0 %3016
    %v3019 = vsel %vm1667, %v2813, 0
    %v3022 = vsel %vm1863, %v3017, 0
    %3024 = vmatpush.bf16.msra.mxu0 0
    %3025 = vmatpush.bf16.msra.mxu0 0
    %3026 = vmatpush.bf16.msra.mxu0 0
    %3027 = vmatpush.bf16.msra.mxu0 0
    %3028 = vmatpush.bf16.msra.mxu0 0
    %3029 = vmatpush.bf16.msra.mxu0 0
    %3030 = vmatpush.bf16.msra.mxu0 0
    %3031 = vmatpush.bf16.msra.mxu0 %v3022
    %3032 = vmatmul.bf16.gmra.mxu0 %v3019
    %v3033 = vpop.f32.mrf.mxu0
    %v3034 = vadd.f32 0.0, %v3033
    %v3035 = vpop.f32.mrf.mxu0
    %3036 = vdwg.mxu0
    %v3038 = vunpack.c.l.b16 %v1355
    %v3039 = vpack.c.b16 %v3038, %v3038
    %3040 = vrot.lane.b32.xlu0 %v3039, 64
    %v3041 = vpop.permute.xlu0 %3040
    %v3043 = vsel %vm1667, %v2814, 0
    %v3046 = vsel %vm1863, %v3041, 0
    %3048 = vmatpush.bf16.msra.mxu0 0
    %3049 = vmatpush.bf16.msra.mxu0 0
    %3050 = vmatpush.bf16.msra.mxu0 0
    %3051 = vmatpush.bf16.msra.mxu0 0
    %3052 = vmatpush.bf16.msra.mxu0 0
    %3053 = vmatpush.bf16.msra.mxu0 0
    %3054 = vmatpush.bf16.msra.mxu0 0
    %3055 = vmatpush.bf16.msra.mxu0 %v3046
    %3056 = vmatmul.bf16.gmra.mxu0 %v3043
    %v3057 = vpop.f32.mrf.mxu0
    %v3058 = vadd.f32 0.0, %v3057
    %v3059 = vpop.f32.mrf.mxu0
    %3060 = vdwg.mxu0
    %v3062 = vunpack.c.l.b16 %v1356
    %v3063 = vpack.c.b16 %v3062, %v3062
    %3064 = vrot.lane.b32.xlu0 %v3063, 64
    %v3065 = vpop.permute.xlu0 %3064
    %v3067 = vsel %vm1667, %v2815, 0
    %v3070 = vsel %vm1863, %v3065, 0
    %3072 = vmatpush.bf16.msra.mxu0 0
    %3073 = vmatpush.bf16.msra.mxu0 0
    %3074 = vmatpush.bf16.msra.mxu0 0
    %3075 = vmatpush.bf16.msra.mxu0 0
    %3076 = vmatpush.bf16.msra.mxu0 0
    %3077 = vmatpush.bf16.msra.mxu0 0
    %3078 = vmatpush.bf16.msra.mxu0 0
    %3079 = vmatpush.bf16.msra.mxu0 %v3070
    %3080 = vmatmul.bf16.gmra.mxu0 %v3067
    %v3081 = vpop.f32.mrf.mxu0
    %v3082 = vadd.f32 0.0, %v3081
    %v3083 = vpop.f32.mrf.mxu0
    %3084 = vdwg.mxu0
    %v3086 = vunpack.c.l.b16 %v1357
    %v3087 = vpack.c.b16 %v3086, %v3086
    %3088 = vrot.lane.b32.xlu0 %v3087, 64
    %v3089 = vpop.permute.xlu0 %3088
    %v3091 = vsel %vm1667, %v2816, 0
    %v3094 = vsel %vm1863, %v3089, 0
    %3096 = vmatpush.bf16.msra.mxu0 0
    %3097 = vmatpush.bf16.msra.mxu0 0
    %3098 = vmatpush.bf16.msra.mxu0 0
    %3099 = vmatpush.bf16.msra.mxu0 0
    %3100 = vmatpush.bf16.msra.mxu0 0
    %3101 = vmatpush.bf16.msra.mxu0 0
    %3102 = vmatpush.bf16.msra.mxu0 0
    %3103 = vmatpush.bf16.msra.mxu0 %v3094
    %3104 = vmatmul.bf16.gmra.mxu0 %v3091
    %v3105 = vpop.f32.mrf.mxu0
    %v3106 = vadd.f32 0.0, %v3105
    %v3107 = vpop.f32.mrf.mxu0
    %3108 = vdwg.mxu0
    %v3110 = vunpack.c.l.b16 %v1358
    %v3111 = vpack.c.b16 %v3110, %v3110
    %3112 = vrot.lane.b32.xlu0 %v3111, 64
    %v3113 = vpop.permute.xlu0 %3112
    %v3115 = vsel %vm1667, %v2817, 0
    %v3118 = vsel %vm1863, %v3113, 0
    %3120 = vmatpush.bf16.msra.mxu0 0
    %3121 = vmatpush.bf16.msra.mxu0 0
    %3122 = vmatpush.bf16.msra.mxu0 0
    %3123 = vmatpush.bf16.msra.mxu0 0
    %3124 = vmatpush.bf16.msra.mxu0 0
    %3125 = vmatpush.bf16.msra.mxu0 0
    %3126 = vmatpush.bf16.msra.mxu0 0
    %3127 = vmatpush.bf16.msra.mxu0 %v3118
    %3128 = vmatmul.bf16.gmra.mxu0 %v3115
    %v3129 = vpop.f32.mrf.mxu0
    %v3130 = vadd.f32 0.0, %v3129
    %v3131 = vpop.f32.mrf.mxu0
    %3132 = vdwg.mxu0
    %v3134 = vunpack.c.l.b16 %v1359
    %v3135 = vpack.c.b16 %v3134, %v3134
    %3136 = vrot.lane.b32.xlu0 %v3135, 64
    %v3137 = vpop.permute.xlu0 %3136
    %v3139 = vsel %vm1667, %v2818, 0
    %v3142 = vsel %vm1863, %v3137, 0
    %3144 = vmatpush.bf16.msra.mxu0 0
    %3145 = vmatpush.bf16.msra.mxu0 0
    %3146 = vmatpush.bf16.msra.mxu0 0
    %3147 = vmatpush.bf16.msra.mxu0 0
    %3148 = vmatpush.bf16.msra.mxu0 0
    %3149 = vmatpush.bf16.msra.mxu0 0
    %3150 = vmatpush.bf16.msra.mxu0 0
    %3151 = vmatpush.bf16.msra.mxu0 %v3142
    %3152 = vmatmul.bf16.gmra.mxu0 %v3139
    %v3153 = vpop.f32.mrf.mxu0
    %v3154 = vadd.f32 0.0, %v3153
    %v3155 = vpop.f32.mrf.mxu0
    %3156 = vdwg.mxu0
    %v3158 = vunpack.c.l.b16 %v1360
    %v3159 = vpack.c.b16 %v3158, %v3158
    %3160 = vrot.lane.b32.xlu0 %v3159, 64
    %v3161 = vpop.permute.xlu0 %3160
    %v3163 = vsel %vm1667, %v2819, 0
    %v3166 = vsel %vm1863, %v3161, 0
    %3168 = vmatpush.bf16.msra.mxu0 0
    %3169 = vmatpush.bf16.msra.mxu0 0
    %3170 = vmatpush.bf16.msra.mxu0 0
    %3171 = vmatpush.bf16.msra.mxu0 0
    %3172 = vmatpush.bf16.msra.mxu0 0
    %3173 = vmatpush.bf16.msra.mxu0 0
    %3174 = vmatpush.bf16.msra.mxu0 0
    %3175 = vmatpush.bf16.msra.mxu0 %v3166
    %3176 = vmatmul.bf16.gmra.mxu0 %v3163
    %v3177 = vpop.f32.mrf.mxu0
    %v3178 = vadd.f32 0.0, %v3177
    %v3179 = vpop.f32.mrf.mxu0
    %3180 = vdwg.mxu0
    %v3182 = vunpack.c.l.b16 %v1361
    %v3183 = vpack.c.b16 %v3182, %v3182
    %3184 = vrot.lane.b32.xlu0 %v3183, 64
    %v3185 = vpop.permute.xlu0 %3184
    %v3187 = vsel %vm1667, %v2820, 0
    %v3190 = vsel %vm1863, %v3185, 0
    %3192 = vmatpush.bf16.msra.mxu0 0
    %3193 = vmatpush.bf16.msra.mxu0 0
    %3194 = vmatpush.bf16.msra.mxu0 0
    %3195 = vmatpush.bf16.msra.mxu0 0
    %3196 = vmatpush.bf16.msra.mxu0 0
    %3197 = vmatpush.bf16.msra.mxu0 0
    %3198 = vmatpush.bf16.msra.mxu0 0
    %3199 = vmatpush.bf16.msra.mxu0 %v3190
    %3200 = vmatmul.bf16.gmra.mxu0 %v3187
    %v3201 = vpop.f32.mrf.mxu0
    %v3202 = vadd.f32 0.0, %v3201
    %v3203 = vpop.f32.mrf.mxu0
    %3204 = vdwg.mxu0
    %3221 = vrot.lane.b32.xlu0 %v2842, 64
    %v3222 = vpop.permute.xlu0 %3221
    %3223 = vrot.lane.b32.xlu0 %v2866, 64
    %v3224 = vpop.permute.xlu0 %3223
    %3225 = vrot.lane.b32.xlu0 %v2890, 64
    %v3226 = vpop.permute.xlu0 %3225
    %3227 = vrot.lane.b32.xlu0 %v2914, 64
    %v3228 = vpop.permute.xlu0 %3227
    %3229 = vrot.lane.b32.xlu0 %v2938, 64
    %v3230 = vpop.permute.xlu0 %3229
    %3231 = vrot.lane.b32.xlu0 %v2962, 64
    %v3232 = vpop.permute.xlu0 %3231
    %3233 = vrot.lane.b32.xlu0 %v2986, 64
    %v3234 = vpop.permute.xlu0 %3233
    %3235 = vrot.lane.b32.xlu0 %v3010, 64
    %v3236 = vpop.permute.xlu0 %3235
    %3237 = vrot.lane.b32.xlu0 %v3034, 64
    %v3238 = vpop.permute.xlu0 %3237
    %3239 = vrot.lane.b32.xlu0 %v3058, 64
    %v3240 = vpop.permute.xlu0 %3239
    %3241 = vrot.lane.b32.xlu0 %v3082, 64
    %v3242 = vpop.permute.xlu0 %3241
    %3243 = vrot.lane.b32.xlu0 %v3106, 64
    %v3244 = vpop.permute.xlu0 %3243
    %3245 = vrot.lane.b32.xlu0 %v3130, 64
    %v3246 = vpop.permute.xlu0 %3245
    %3247 = vrot.lane.b32.xlu0 %v3154, 64
    %v3248 = vpop.permute.xlu0 %3247
    %3249 = vrot.lane.b32.xlu0 %v3178, 64
    %v3250 = vpop.permute.xlu0 %3249
    %3251 = vrot.lane.b32.xlu0 %v3202, 64
    %v3252 = vpop.permute.xlu0 %3251
    %v3269 = vsel %vm1362, %v1877, %v3222
    %v3270 = vsel %vm1362, %v1896, %v3224
    %v3271 = vsel %vm1362, %v1915, %v3226
    %v3272 = vsel %vm1362, %v1934, %v3228
    %v3273 = vsel %vm1362, %v1953, %v3230
    %v3274 = vsel %vm1362, %v1972, %v3232
    %v3275 = vsel %vm1362, %v1991, %v3234
    %v3276 = vsel %vm1362, %v2010, %v3236
    %v3277 = vsel %vm1362, %v2029, %v3238
    %v3278 = vsel %vm1362, %v2048, %v3240
    %v3279 = vsel %vm1362, %v2067, %v3242
    %v3280 = vsel %vm1362, %v2086, %v3244
    %v3281 = vsel %vm1362, %v2105, %v3246
    %v3282 = vsel %vm1362, %v2124, %v3248
    %v3283 = vsel %vm1362, %v2143, %v3250
    %v3284 = vsel %vm1362, %v2162, %v3252
    %v3285 = vpack.c.bf16 %v3270, %v3269
    %v3286 = vpack.c.bf16 %v3272, %v3271
    %v3287 = vpack.c.bf16 %v3274, %v3273
    %v3288 = vpack.c.bf16 %v3276, %v3275
    %v3289 = vpack.c.bf16 %v3278, %v3277
    %v3290 = vpack.c.bf16 %v3280, %v3279
    %v3291 = vpack.c.bf16 %v3282, %v3281
    %v3292 = vpack.c.bf16 %v3284, %v3283
    %v3293 = vld [vmem:[#allocation12] sm:$0xf]
    %v3294 = vld [vmem:[#allocation12 + $0x4] sm:$0xf]
    %v3295 = vld [vmem:[#allocation12 + $0x8] sm:$0xf]
    %v3296 = vld [vmem:[#allocation12 + $0xc] sm:$0xf]
    %v3297 = vld [vmem:[#allocation12 + $0x10] sm:$0xf]
    %v3298 = vld [vmem:[#allocation12 + $0x14] sm:$0xf]
    %v3299 = vld [vmem:[#allocation12 + $0x18] sm:$0xf]
    %v3300 = vld [vmem:[#allocation12 + $0x1c] sm:$0xf]
    %v3301 = vld [vmem:[#allocation12 + $0x20] sm:$0xf]
    %v3302 = vld [vmem:[#allocation12 + $0x24] sm:$0xf]
    %v3303 = vld [vmem:[#allocation12 + $0x28] sm:$0xf]
    %v3304 = vld [vmem:[#allocation12 + $0x2c] sm:$0xf]
    %v3305 = vld [vmem:[#allocation12 + $0x30] sm:$0xf]
    %v3306 = vld [vmem:[#allocation12 + $0x34] sm:$0xf]
    %v3307 = vld [vmem:[#allocation12 + $0x38] sm:$0xf]
    %v3308 = vld [vmem:[#allocation12 + $0x3c] sm:$0xf]
    %v3309 = vld [vmem:[%s11] sm:$0x1]
    %v3311 = vperm.slane %v3309, 0
    %v3329 = vunpack.c.l.b16 %v3293
    %v3330 = vunpack.c.l.b16 %v3294
    %v3331 = vunpack.c.l.b16 %v3295
    %v3332 = vunpack.c.l.b16 %v3296
    %v3333 = vunpack.c.l.b16 %v3297
    %v3334 = vunpack.c.l.b16 %v3298
    %v3335 = vunpack.c.l.b16 %v3299
    %v3336 = vunpack.c.l.b16 %v3300
    %v3337 = vunpack.c.l.b16 %v3301
    %v3338 = vunpack.c.l.b16 %v3302
    %v3339 = vunpack.c.l.b16 %v3303
    %v3340 = vunpack.c.l.b16 %v3304
    %v3341 = vunpack.c.l.b16 %v3305
    %v3342 = vunpack.c.l.b16 %v3306
    %v3343 = vunpack.c.l.b16 %v3307
    %v3344 = vunpack.c.l.b16 %v3308
    %v3345 = vpack.c.b16 %v3330, %v3329
    %v3346 = vpack.c.b16 %v3332, %v3331
    %v3347 = vpack.c.b16 %v3334, %v3333
    %v3348 = vpack.c.b16 %v3336, %v3335
    %v3349 = vpack.c.b16 %v3338, %v3337
    %v3350 = vpack.c.b16 %v3340, %v3339
    %v3351 = vpack.c.b16 %v3342, %v3341
    %v3352 = vpack.c.b16 %v3344, %v3343
    %3361 = vmatpush.bf16.msra.mxu0 %v3352
    %3362 = vmatpush.bf16.msra.mxu0 %v3351
    %3363 = vmatpush.bf16.msra.mxu0 %v3350
    %3364 = vmatpush.bf16.msra.mxu0 %v3349
    %3365 = vmatpush.bf16.msra.mxu0 %v3348
    %3366 = vmatpush.bf16.msra.mxu0 %v3347
    %3367 = vmatpush.bf16.msra.mxu0 %v3346
    %3368 = vmatpush.bf16.msra.mxu0 %v3345
    %3369 = vmatmul.bf16.gmra.mxu0 %v3285
    %v3370 = vpop.f32.mrf.mxu0
    %v3371 = vadd.f32 %v3311, %v3370
    %v3372 = vpop.f32.mrf.mxu0
    %v3373 = vadd.f32 %v3311, %v3372
    %3374 = vmatmul.bf16.gmra.mxu0 %v3286
    %v3375 = vpop.f32.mrf.mxu0
    %v3376 = vadd.f32 %v3311, %v3375
    %v3377 = vpop.f32.mrf.mxu0
    %v3378 = vadd.f32 %v3311, %v3377
    %3379 = vmatmul.bf16.gmra.mxu0 %v3287
    %v3380 = vpop.f32.mrf.mxu0
    %v3381 = vadd.f32 %v3311, %v3380
    %v3382 = vpop.f32.mrf.mxu0
    %v3383 = vadd.f32 %v3311, %v3382
    %3384 = vmatmul.bf16.gmra.mxu0 %v3288
    %v3385 = vpop.f32.mrf.mxu0
    %v3386 = vadd.f32 %v3311, %v3385
    %v3387 = vpop.f32.mrf.mxu0
    %v3388 = vadd.f32 %v3311, %v3387
    %3389 = vmatmul.bf16.gmra.mxu0 %v3289
    %v3390 = vpop.f32.mrf.mxu0
    %v3391 = vadd.f32 %v3311, %v3390
    %v3392 = vpop.f32.mrf.mxu0
    %v3393 = vadd.f32 %v3311, %v3392
    %3394 = vmatmul.bf16.gmra.mxu0 %v3290
    %v3395 = vpop.f32.mrf.mxu0
    %v3396 = vadd.f32 %v3311, %v3395
    %v3397 = vpop.f32.mrf.mxu0
    %v3398 = vadd.f32 %v3311, %v3397
    %3399 = vmatmul.bf16.gmra.mxu0 %v3291
    %v3400 = vpop.f32.mrf.mxu0
    %v3401 = vadd.f32 %v3311, %v3400
    %v3402 = vpop.f32.mrf.mxu0
    %v3403 = vadd.f32 %v3311, %v3402
    %3404 = vmatmul.bf16.gmra.mxu0 %v3292
    %v3405 = vpop.f32.mrf.mxu0
    %v3406 = vadd.f32 %v3311, %v3405
    %v3407 = vpop.f32.mrf.mxu0
    %v3408 = vadd.f32 %v3311, %v3407
    %3409 = vdwg.mxu0
    %s3410 = sld [smem:[#allocation17]]
    %s3411 = sld [smem:[#allocation17 + $0x1]]
    %v3412 = vstv %s3410
    %v3413 = vmul.f32 %v3412, %v212
    %v3414 = vmul.f32 %v3412, %v213
    %v3415 = vmul.f32 %v3412, %v214
    %v3416 = vmul.f32 %v3412, %v215
    %v3417 = vmul.f32 %v3412, %v216
    %v3418 = vmul.f32 %v3412, %v217
    %v3419 = vmul.f32 %v3412, %v218
    %v3420 = vmul.f32 %v3412, %v219
    %v3421 = vmul.f32 %v3412, %v220
    %v3422 = vmul.f32 %v3412, %v221
    %v3423 = vmul.f32 %v3412, %v222
    %v3424 = vmul.f32 %v3412, %v223
    %v3425 = vmul.f32 %v3412, %v224
    %v3426 = vmul.f32 %v3412, %v225
    %v3427 = vmul.f32 %v3412, %v226
    %v3428 = vmul.f32 %v3412, %v227
    %s3429 = ssub.f32 1.0, %s3410
    %v3430 = vstv %s3429
    %v3431 = vmul.f32 %v3430, %v3371
    %v3432 = vmul.f32 %v3430, %v3373
    %v3433 = vmul.f32 %v3430, %v3376
    %v3434 = vmul.f32 %v3430, %v3378
    %v3435 = vmul.f32 %v3430, %v3381
    %v3436 = vmul.f32 %v3430, %v3383
    %v3437 = vmul.f32 %v3430, %v3386
    %v3438 = vmul.f32 %v3430, %v3388
    %v3439 = vmul.f32 %v3430, %v3391
    %v3440 = vmul.f32 %v3430, %v3393
    %v3441 = vmul.f32 %v3430, %v3396
    %v3442 = vmul.f32 %v3430, %v3398
    %v3443 = vmul.f32 %v3430, %v3401
    %v3444 = vmul.f32 %v3430, %v3403
    %v3445 = vmul.f32 %v3430, %v3406
    %v3446 = vmul.f32 %v3430, %v3408
    %v3447 = vadd.f32 %v3413, %v3431
    %v3448 = vadd.f32 %v3414, %v3432
    %v3449 = vadd.f32 %v3415, %v3433
    %v3450 = vadd.f32 %v3416, %v3434
    %v3451 = vadd.f32 %v3417, %v3435
    %v3452 = vadd.f32 %v3418, %v3436
    %v3453 = vadd.f32 %v3419, %v3437
    %v3454 = vadd.f32 %v3420, %v3438
    %v3455 = vadd.f32 %v3421, %v3439
    %v3456 = vadd.f32 %v3422, %v3440
    %v3457 = vadd.f32 %v3423, %v3441
    %v3458 = vadd.f32 %v3424, %v3442
    %v3459 = vadd.f32 %v3425, %v3443
    %v3460 = vadd.f32 %v3426, %v3444
    %v3461 = vadd.f32 %v3427, %v3445
    %v3462 = vadd.f32 %v3428, %v3446
    %v3463 = vld [vmem:[%s12] sm:$0x1]
    %v3464 = vld [vmem:[%s13] sm:$0x1]
    %3465 = vadd.xlane.f32.xlu0 %v3447
    %v3466 = vpop.xlane.xlu0 %3465
    %3467 = vadd.xlane.f32.xlu0 %v3448
    %v3468 = vpop.xlane.xlu0 %3467
    %3469 = vadd.xlane.f32.xlu0 %v3449
    %v3470 = vpop.xlane.xlu0 %3469
    %3471 = vadd.xlane.f32.xlu0 %v3450
    %v3472 = vpop.xlane.xlu0 %3471
    %3473 = vadd.xlane.f32.xlu0 %v3451
    %v3474 = vpop.xlane.xlu0 %3473
    %3475 = vadd.xlane.f32.xlu0 %v3452
    %v3476 = vpop.xlane.xlu0 %3475
    %3477 = vadd.xlane.f32.xlu0 %v3453
    %v3478 = vpop.xlane.xlu0 %3477
    %3479 = vadd.xlane.f32.xlu0 %v3454
    %v3480 = vpop.xlane.xlu0 %3479
    %3481 = vadd.xlane.f32.xlu0 %v3455
    %v3482 = vpop.xlane.xlu0 %3481
    %3483 = vadd.xlane.f32.xlu0 %v3456
    %v3484 = vpop.xlane.xlu0 %3483
    %3485 = vadd.xlane.f32.xlu0 %v3457
    %v3486 = vpop.xlane.xlu0 %3485
    %3487 = vadd.xlane.f32.xlu0 %v3458
    %v3488 = vpop.xlane.xlu0 %3487
    %3489 = vadd.xlane.f32.xlu0 %v3459
    %v3490 = vpop.xlane.xlu0 %3489
    %3491 = vadd.xlane.f32.xlu0 %v3460
    %v3492 = vpop.xlane.xlu0 %3491
    %3493 = vadd.xlane.f32.xlu0 %v3461
    %v3494 = vpop.xlane.xlu0 %3493
    %3495 = vadd.xlane.f32.xlu0 %v3462
    %v3496 = vpop.xlane.xlu0 %3495
    %v3497 = vmul.f32 %v3466, %v268
    %v3498 = vmul.f32 %v3468, %v268
    %v3499 = vmul.f32 %v3470, %v268
    %v3500 = vmul.f32 %v3472, %v268
    %v3501 = vmul.f32 %v3474, %v268
    %v3502 = vmul.f32 %v3476, %v268
    %v3503 = vmul.f32 %v3478, %v268
    %v3504 = vmul.f32 %v3480, %v268
    %v3505 = vmul.f32 %v3482, %v268
    %v3506 = vmul.f32 %v3484, %v268
    %v3507 = vmul.f32 %v3486, %v268
    %v3508 = vmul.f32 %v3488, %v268
    %v3509 = vmul.f32 %v3490, %v268
    %v3510 = vmul.f32 %v3492, %v268
    %v3511 = vmul.f32 %v3494, %v268
    %v3512 = vmul.f32 %v3496, %v268
    %v3513 = vsub.f32 %v3447, %v3497
    %v3514 = vsub.f32 %v3448, %v3498
    %v3515 = vsub.f32 %v3449, %v3499
    %v3516 = vsub.f32 %v3450, %v3500
    %v3517 = vsub.f32 %v3451, %v3501
    %v3518 = vsub.f32 %v3452, %v3502
    %v3519 = vsub.f32 %v3453, %v3503
    %v3520 = vsub.f32 %v3454, %v3504
    %v3521 = vsub.f32 %v3455, %v3505
    %v3522 = vsub.f32 %v3456, %v3506
    %v3523 = vsub.f32 %v3457, %v3507
    %v3524 = vsub.f32 %v3458, %v3508
    %v3525 = vsub.f32 %v3459, %v3509
    %v3526 = vsub.f32 %v3460, %v3510
    %v3527 = vsub.f32 %v3461, %v3511
    %v3528 = vsub.f32 %v3462, %v3512
    %v3529 = vmul.f32 %v3513, %v3513
    %v3530 = vmul.f32 %v3514, %v3514
    %v3531 = vmul.f32 %v3515, %v3515
    %v3532 = vmul.f32 %v3516, %v3516
    %v3533 = vmul.f32 %v3517, %v3517
    %v3534 = vmul.f32 %v3518, %v3518
    %v3535 = vmul.f32 %v3519, %v3519
    %v3536 = vmul.f32 %v3520, %v3520
    %v3537 = vmul.f32 %v3521, %v3521
    %v3538 = vmul.f32 %v3522, %v3522
    %v3539 = vmul.f32 %v3523, %v3523
    %v3540 = vmul.f32 %v3524, %v3524
    %v3541 = vmul.f32 %v3525, %v3525
    %v3542 = vmul.f32 %v3526, %v3526
    %v3543 = vmul.f32 %v3527, %v3527
    %v3544 = vmul.f32 %v3528, %v3528
    %3545 = vadd.xlane.f32.xlu0 %v3529
    %v3546 = vpop.xlane.xlu0 %3545
    %3547 = vadd.xlane.f32.xlu0 %v3530
    %v3548 = vpop.xlane.xlu0 %3547
    %3549 = vadd.xlane.f32.xlu0 %v3531
    %v3550 = vpop.xlane.xlu0 %3549
    %3551 = vadd.xlane.f32.xlu0 %v3532
    %v3552 = vpop.xlane.xlu0 %3551
    %3553 = vadd.xlane.f32.xlu0 %v3533
    %v3554 = vpop.xlane.xlu0 %3553
    %3555 = vadd.xlane.f32.xlu0 %v3534
    %v3556 = vpop.xlane.xlu0 %3555
    %3557 = vadd.xlane.f32.xlu0 %v3535
    %v3558 = vpop.xlane.xlu0 %3557
    %3559 = vadd.xlane.f32.xlu0 %v3536
    %v3560 = vpop.xlane.xlu0 %3559
    %3561 = vadd.xlane.f32.xlu0 %v3537
    %v3562 = vpop.xlane.xlu0 %3561
    %3563 = vadd.xlane.f32.xlu0 %v3538
    %v3564 = vpop.xlane.xlu0 %3563
    %3565 = vadd.xlane.f32.xlu0 %v3539
    %v3566 = vpop.xlane.xlu0 %3565
    %3567 = vadd.xlane.f32.xlu0 %v3540
    %v3568 = vpop.xlane.xlu0 %3567
    %3569 = vadd.xlane.f32.xlu0 %v3541
    %v3570 = vpop.xlane.xlu0 %3569
    %3571 = vadd.xlane.f32.xlu0 %v3542
    %v3572 = vpop.xlane.xlu0 %3571
    %3573 = vadd.xlane.f32.xlu0 %v3543
    %v3574 = vpop.xlane.xlu0 %3573
    %3575 = vadd.xlane.f32.xlu0 %v3544
    %v3576 = vpop.xlane.xlu0 %3575
    %v3577 = vmul.f32 %v3546, %v268
    %v3578 = vmul.f32 %v3548, %v268
    %v3579 = vmul.f32 %v3550, %v268
    %v3580 = vmul.f32 %v3552, %v268
    %v3581 = vmul.f32 %v3554, %v268
    %v3582 = vmul.f32 %v3556, %v268
    %v3583 = vmul.f32 %v3558, %v268
    %v3584 = vmul.f32 %v3560, %v268
    %v3585 = vmul.f32 %v3562, %v268
    %v3586 = vmul.f32 %v3564, %v268
    %v3587 = vmul.f32 %v3566, %v268
    %v3588 = vmul.f32 %v3568, %v268
    %v3589 = vmul.f32 %v3570, %v268
    %v3590 = vmul.f32 %v3572, %v268
    %v3591 = vmul.f32 %v3574, %v268
    %v3592 = vmul.f32 %v3576, %v268
    %v3593 = vadd.f32 %v3577, 1e-05
    %v3594 = vadd.f32 %v3578, 1e-05
    %v3595 = vadd.f32 %v3579, 1e-05
    %v3596 = vadd.f32 %v3580, 1e-05
    %v3597 = vadd.f32 %v3581, 1e-05
    %v3598 = vadd.f32 %v3582, 1e-05
    %v3599 = vadd.f32 %v3583, 1e-05
    %v3600 = vadd.f32 %v3584, 1e-05
    %v3601 = vadd.f32 %v3585, 1e-05
    %v3602 = vadd.f32 %v3586, 1e-05
    %v3603 = vadd.f32 %v3587, 1e-05
    %v3604 = vadd.f32 %v3588, 1e-05
    %v3605 = vadd.f32 %v3589, 1e-05
    %v3606 = vadd.f32 %v3590, 1e-05
    %v3607 = vadd.f32 %v3591, 1e-05
    %v3608 = vadd.f32 %v3592, 1e-05
    %v3609 = vrsqrt.pop %v3593
    %v3610 = vmul.f32 %v3609, %v3593
    %v3611 = vmul.f32 %v3610, %v3609
    %v3612 = vmul.f32 0.5, %v3611
    %v3613 = vsub.f32 1.5, %v3612
    %v3614 = vmul.f32 %v3609, %v3613
    %vm3615 = vweird.f32 %v3593
    %vm3616 = vweird.f32 %v3609
    %vm3617 = vmor %vm3615, %vm3616
    %v3618 = vsel %vm3617, %v3609, %v3614
    %v3619 = vrsqrt.pop %v3594
    %v3620 = vmul.f32 %v3619, %v3594
    %v3621 = vmul.f32 %v3620, %v3619
    %v3622 = vmul.f32 0.5, %v3621
    %v3623 = vsub.f32 1.5, %v3622
    %v3624 = vmul.f32 %v3619, %v3623
    %vm3625 = vweird.f32 %v3594
    %vm3626 = vweird.f32 %v3619
    %vm3627 = vmor %vm3625, %vm3626
    %v3628 = vsel %vm3627, %v3619, %v3624
    %v3629 = vrsqrt.pop %v3595
    %v3630 = vmul.f32 %v3629, %v3595
    %v3631 = vmul.f32 %v3630, %v3629
    %v3632 = vmul.f32 0.5, %v3631
    %v3633 = vsub.f32 1.5, %v3632
    %v3634 = vmul.f32 %v3629, %v3633
    %vm3635 = vweird.f32 %v3595
    %vm3636 = vweird.f32 %v3629
    %vm3637 = vmor %vm3635, %vm3636
    %v3638 = vsel %vm3637, %v3629, %v3634
    %v3639 = vrsqrt.pop %v3596
    %v3640 = vmul.f32 %v3639, %v3596
    %v3641 = vmul.f32 %v3640, %v3639
    %v3642 = vmul.f32 0.5, %v3641
    %v3643 = vsub.f32 1.5, %v3642
    %v3644 = vmul.f32 %v3639, %v3643
    %vm3645 = vweird.f32 %v3596
    %vm3646 = vweird.f32 %v3639
    %vm3647 = vmor %vm3645, %vm3646
    %v3648 = vsel %vm3647, %v3639, %v3644
    %v3649 = vrsqrt.pop %v3597
    %v3650 = vmul.f32 %v3649, %v3597
    %v3651 = vmul.f32 %v3650, %v3649
    %v3652 = vmul.f32 0.5, %v3651
    %v3653 = vsub.f32 1.5, %v3652
    %v3654 = vmul.f32 %v3649, %v3653
    %vm3655 = vweird.f32 %v3597
    %vm3656 = vweird.f32 %v3649
    %vm3657 = vmor %vm3655, %vm3656
    %v3658 = vsel %vm3657, %v3649, %v3654
    %v3659 = vrsqrt.pop %v3598
    %v3660 = vmul.f32 %v3659, %v3598
    %v3661 = vmul.f32 %v3660, %v3659
    %v3662 = vmul.f32 0.5, %v3661
    %v3663 = vsub.f32 1.5, %v3662
    %v3664 = vmul.f32 %v3659, %v3663
    %vm3665 = vweird.f32 %v3598
    %vm3666 = vweird.f32 %v3659
    %vm3667 = vmor %vm3665, %vm3666
    %v3668 = vsel %vm3667, %v3659, %v3664
    %v3669 = vrsqrt.pop %v3599
    %v3670 = vmul.f32 %v3669, %v3599
    %v3671 = vmul.f32 %v3670, %v3669
    %v3672 = vmul.f32 0.5, %v3671
    %v3673 = vsub.f32 1.5, %v3672
    %v3674 = vmul.f32 %v3669, %v3673
    %vm3675 = vweird.f32 %v3599
    %vm3676 = vweird.f32 %v3669
    %vm3677 = vmor %vm3675, %vm3676
    %v3678 = vsel %vm3677, %v3669, %v3674
    %v3679 = vrsqrt.pop %v3600
    %v3680 = vmul.f32 %v3679, %v3600
    %v3681 = vmul.f32 %v3680, %v3679
    %v3682 = vmul.f32 0.5, %v3681
    %v3683 = vsub.f32 1.5, %v3682
    %v3684 = vmul.f32 %v3679, %v3683
    %vm3685 = vweird.f32 %v3600
    %vm3686 = vweird.f32 %v3679
    %vm3687 = vmor %vm3685, %vm3686
    %v3688 = vsel %vm3687, %v3679, %v3684
    %v3689 = vrsqrt.pop %v3601
    %v3690 = vmul.f32 %v3689, %v3601
    %v3691 = vmul.f32 %v3690, %v3689
    %v3692 = vmul.f32 0.5, %v3691
    %v3693 = vsub.f32 1.5, %v3692
    %v3694 = vmul.f32 %v3689, %v3693
    %vm3695 = vweird.f32 %v3601
    %vm3696 = vweird.f32 %v3689
    %vm3697 = vmor %vm3695, %vm3696
    %v3698 = vsel %vm3697, %v3689, %v3694
    %v3699 = vrsqrt.pop %v3602
    %v3700 = vmul.f32 %v3699, %v3602
    %v3701 = vmul.f32 %v3700, %v3699
    %v3702 = vmul.f32 0.5, %v3701
    %v3703 = vsub.f32 1.5, %v3702
    %v3704 = vmul.f32 %v3699, %v3703
    %vm3705 = vweird.f32 %v3602
    %vm3706 = vweird.f32 %v3699
    %vm3707 = vmor %vm3705, %vm3706
    %v3708 = vsel %vm3707, %v3699, %v3704
    %v3709 = vrsqrt.pop %v3603
    %v3710 = vmul.f32 %v3709, %v3603
    %v3711 = vmul.f32 %v3710, %v3709
    %v3712 = vmul.f32 0.5, %v3711
    %v3713 = vsub.f32 1.5, %v3712
    %v3714 = vmul.f32 %v3709, %v3713
    %vm3715 = vweird.f32 %v3603
    %vm3716 = vweird.f32 %v3709
    %vm3717 = vmor %vm3715, %vm3716
    %v3718 = vsel %vm3717, %v3709, %v3714
    %v3719 = vrsqrt.pop %v3604
    %v3720 = vmul.f32 %v3719, %v3604
    %v3721 = vmul.f32 %v3720, %v3719
    %v3722 = vmul.f32 0.5, %v3721
    %v3723 = vsub.f32 1.5, %v3722
    %v3724 = vmul.f32 %v3719, %v3723
    %vm3725 = vweird.f32 %v3604
    %vm3726 = vweird.f32 %v3719
    %vm3727 = vmor %vm3725, %vm3726
    %v3728 = vsel %vm3727, %v3719, %v3724
    %v3729 = vrsqrt.pop %v3605
    %v3730 = vmul.f32 %v3729, %v3605
    %v3731 = vmul.f32 %v3730, %v3729
    %v3732 = vmul.f32 0.5, %v3731
    %v3733 = vsub.f32 1.5, %v3732
    %v3734 = vmul.f32 %v3729, %v3733
    %vm3735 = vweird.f32 %v3605
    %vm3736 = vweird.f32 %v3729
    %vm3737 = vmor %vm3735, %vm3736
    %v3738 = vsel %vm3737, %v3729, %v3734
    %v3739 = vrsqrt.pop %v3606
    %v3740 = vmul.f32 %v3739, %v3606
    %v3741 = vmul.f32 %v3740, %v3739
    %v3742 = vmul.f32 0.5, %v3741
    %v3743 = vsub.f32 1.5, %v3742
    %v3744 = vmul.f32 %v3739, %v3743
    %vm3745 = vweird.f32 %v3606
    %vm3746 = vweird.f32 %v3739
    %vm3747 = vmor %vm3745, %vm3746
    %v3748 = vsel %vm3747, %v3739, %v3744
    %v3749 = vrsqrt.pop %v3607
    %v3750 = vmul.f32 %v3749, %v3607
    %v3751 = vmul.f32 %v3750, %v3749
    %v3752 = vmul.f32 0.5, %v3751
    %v3753 = vsub.f32 1.5, %v3752
    %v3754 = vmul.f32 %v3749, %v3753
    %vm3755 = vweird.f32 %v3607
    %vm3756 = vweird.f32 %v3749
    %vm3757 = vmor %vm3755, %vm3756
    %v3758 = vsel %vm3757, %v3749, %v3754
    %v3759 = vrsqrt.pop %v3608
    %v3760 = vmul.f32 %v3759, %v3608
    %v3761 = vmul.f32 %v3760, %v3759
    %v3762 = vmul.f32 0.5, %v3761
    %v3763 = vsub.f32 1.5, %v3762
    %v3764 = vmul.f32 %v3759, %v3763
    %vm3765 = vweird.f32 %v3608
    %vm3766 = vweird.f32 %v3759
    %vm3767 = vmor %vm3765, %vm3766
    %v3768 = vsel %vm3767, %v3759, %v3764
    %v3769 = vmul.f32 %v3513, %v3618
    %v3770 = vmul.f32 %v3514, %v3628
    %v3771 = vmul.f32 %v3515, %v3638
    %v3772 = vmul.f32 %v3516, %v3648
    %v3773 = vmul.f32 %v3517, %v3658
    %v3774 = vmul.f32 %v3518, %v3668
    %v3775 = vmul.f32 %v3519, %v3678
    %v3776 = vmul.f32 %v3520, %v3688
    %v3777 = vmul.f32 %v3521, %v3698
    %v3778 = vmul.f32 %v3522, %v3708
    %v3779 = vmul.f32 %v3523, %v3718
    %v3780 = vmul.f32 %v3524, %v3728
    %v3781 = vmul.f32 %v3525, %v3738
    %v3782 = vmul.f32 %v3526, %v3748
    %v3783 = vmul.f32 %v3527, %v3758
    %v3784 = vmul.f32 %v3528, %v3768
    %v3786 = vperm.slane %v3463, 0
    %v3788 = vmul.f32 %v3769, %v3786
    %v3789 = vmul.f32 %v3770, %v3786
    %v3790 = vmul.f32 %v3771, %v3786
    %v3791 = vmul.f32 %v3772, %v3786
    %v3792 = vmul.f32 %v3773, %v3786
    %v3793 = vmul.f32 %v3774, %v3786
    %v3794 = vmul.f32 %v3775, %v3786
    %v3795 = vmul.f32 %v3776, %v3786
    %v3796 = vmul.f32 %v3777, %v3786
    %v3797 = vmul.f32 %v3778, %v3786
    %v3798 = vmul.f32 %v3779, %v3786
    %v3799 = vmul.f32 %v3780, %v3786
    %v3800 = vmul.f32 %v3781, %v3786
    %v3801 = vmul.f32 %v3782, %v3786
    %v3802 = vmul.f32 %v3783, %v3786
    %v3803 = vmul.f32 %v3784, %v3786
    %v3805 = vperm.slane %v3464, 0
    %v3807 = vadd.f32 %v3788, %v3805
    %v3808 = vadd.f32 %v3789, %v3805
    %v3809 = vadd.f32 %v3790, %v3805
    %v3810 = vadd.f32 %v3791, %v3805
    %v3811 = vadd.f32 %v3792, %v3805
    %v3812 = vadd.f32 %v3793, %v3805
    %v3813 = vadd.f32 %v3794, %v3805
    %v3814 = vadd.f32 %v3795, %v3805
    %v3815 = vadd.f32 %v3796, %v3805
    %v3816 = vadd.f32 %v3797, %v3805
    %v3817 = vadd.f32 %v3798, %v3805
    %v3818 = vadd.f32 %v3799, %v3805
    %v3819 = vadd.f32 %v3800, %v3805
    %v3820 = vadd.f32 %v3801, %v3805
    %v3821 = vadd.f32 %v3802, %v3805
    %v3822 = vadd.f32 %v3803, %v3805
    %v3823 = vpack.c.bf16 %v3808, %v3807
    %v3824 = vpack.c.bf16 %v3810, %v3809
    %v3825 = vpack.c.bf16 %v3812, %v3811
    %v3826 = vpack.c.bf16 %v3814, %v3813
    %v3827 = vpack.c.bf16 %v3816, %v3815
    %v3828 = vpack.c.bf16 %v3818, %v3817
    %v3829 = vpack.c.bf16 %v3820, %v3819
    %v3830 = vpack.c.bf16 %v3822, %v3821
    %v3831 = vld [vmem:[#allocation14] sm:$0xff]
    %v3832 = vld [vmem:[#allocation14 + $0x8] sm:$0xff]
    %v3833 = vld [vmem:[#allocation14 + $0x10] sm:$0xff]
    %v3834 = vld [vmem:[#allocation14 + $0x18] sm:$0xff]
    %v3835 = vld [vmem:[#allocation14 + $0x20] sm:$0xff]
    %v3836 = vld [vmem:[#allocation14 + $0x28] sm:$0xff]
    %v3837 = vld [vmem:[#allocation14 + $0x30] sm:$0xff]
    %v3838 = vld [vmem:[#allocation14 + $0x38] sm:$0xff]
    %v3839 = vld [vmem:[#allocation14 + $0x40] sm:$0xff]
    %v3840 = vld [vmem:[#allocation14 + $0x48] sm:$0xff]
    %v3841 = vld [vmem:[#allocation14 + $0x50] sm:$0xff]
    %v3842 = vld [vmem:[#allocation14 + $0x58] sm:$0xff]
    %v3843 = vld [vmem:[#allocation14 + $0x60] sm:$0xff]
    %v3844 = vld [vmem:[#allocation14 + $0x68] sm:$0xff]
    %v3845 = vld [vmem:[#allocation14 + $0x70] sm:$0xff]
    %v3846 = vld [vmem:[#allocation14 + $0x78] sm:$0xff]
    %v3863 = vunpack.c.l.b16 %v3831
    %v3864 = vunpack.c.h.b16 %v3831
    %v3865 = vunpack.c.l.b16 %v3832
    %v3866 = vunpack.c.h.b16 %v3832
    %v3867 = vunpack.c.l.b16 %v3833
    %v3868 = vunpack.c.h.b16 %v3833
    %v3869 = vunpack.c.l.b16 %v3834
    %v3870 = vunpack.c.h.b16 %v3834
    %v3871 = vunpack.c.l.b16 %v3835
    %v3872 = vunpack.c.h.b16 %v3835
    %v3873 = vunpack.c.l.b16 %v3836
    %v3874 = vunpack.c.h.b16 %v3836
    %v3875 = vunpack.c.l.b16 %v3837
    %v3876 = vunpack.c.h.b16 %v3837
    %v3877 = vunpack.c.l.b16 %v3838
    %v3878 = vunpack.c.h.b16 %v3838
    %v3879 = vunpack.c.l.b16 %v3839
    %v3880 = vunpack.c.h.b16 %v3839
    %v3881 = vunpack.c.l.b16 %v3840
    %v3882 = vunpack.c.h.b16 %v3840
    %v3883 = vunpack.c.l.b16 %v3841
    %v3884 = vunpack.c.h.b16 %v3841
    %v3885 = vunpack.c.l.b16 %v3842
    %v3886 = vunpack.c.h.b16 %v3842
    %v3887 = vunpack.c.l.b16 %v3843
    %v3888 = vunpack.c.h.b16 %v3843
    %v3889 = vunpack.c.l.b16 %v3844
    %v3890 = vunpack.c.h.b16 %v3844
    %v3891 = vunpack.c.l.b16 %v3845
    %v3892 = vunpack.c.h.b16 %v3845
    %v3893 = vunpack.c.l.b16 %v3846
    %v3894 = vunpack.c.h.b16 %v3846
    %v3895 = vpack.c.b16 %v3865, %v3863
    %v3896 = vpack.c.b16 %v3866, %v3864
    %v3897 = vpack.c.b16 %v3869, %v3867
    %v3898 = vpack.c.b16 %v3870, %v3868
    %v3899 = vpack.c.b16 %v3873, %v3871
    %v3900 = vpack.c.b16 %v3874, %v3872
    %v3901 = vpack.c.b16 %v3877, %v3875
    %v3902 = vpack.c.b16 %v3878, %v3876
    %v3903 = vpack.c.b16 %v3881, %v3879
    %v3904 = vpack.c.b16 %v3882, %v3880
    %v3905 = vpack.c.b16 %v3885, %v3883
    %v3906 = vpack.c.b16 %v3886, %v3884
    %v3907 = vpack.c.b16 %v3889, %v3887
    %v3908 = vpack.c.b16 %v3890, %v3888
    %v3909 = vpack.c.b16 %v3893, %v3891
    %v3910 = vpack.c.b16 %v3894, %v3892
    %3927 = vmatpush.bf16.msra.mxu0 %v3909
    %3928 = vmatpush.bf16.msra.mxu0 %v3907
    %3929 = vmatpush.bf16.msra.mxu0 %v3905
    %3930 = vmatpush.bf16.msra.mxu0 %v3903
    %3931 = vmatpush.bf16.msra.mxu0 %v3901
    %3932 = vmatpush.bf16.msra.mxu0 %v3899
    %3933 = vmatpush.bf16.msra.mxu0 %v3897
    %3934 = vmatpush.bf16.msra.mxu0 %v3895
    %3935 = vmatmul.bf16.gmra.mxu0 %v3823
    %v3936 = vpop.f32.mrf.mxu0
    %v3937 = vadd.f32 0.0, %v3936
    %v3938 = vpop.f32.mrf.mxu0
    %v3939 = vadd.f32 0.0, %v3938
    %3940 = vmatmul.bf16.gmra.mxu0 %v3824
    %v3941 = vpop.f32.mrf.mxu0
    %v3942 = vadd.f32 0.0, %v3941
    %v3943 = vpop.f32.mrf.mxu0
    %v3944 = vadd.f32 0.0, %v3943
    %3945 = vmatmul.bf16.gmra.mxu0 %v3825
    %v3946 = vpop.f32.mrf.mxu0
    %v3947 = vadd.f32 0.0, %v3946
    %v3948 = vpop.f32.mrf.mxu0
    %v3949 = vadd.f32 0.0, %v3948
    %3950 = vmatmul.bf16.gmra.mxu0 %v3826
    %v3951 = vpop.f32.mrf.mxu0
    %v3952 = vadd.f32 0.0, %v3951
    %v3953 = vpop.f32.mrf.mxu0
    %v3954 = vadd.f32 0.0, %v3953
    %3955 = vmatmul.bf16.gmra.mxu0 %v3827
    %v3956 = vpop.f32.mrf.mxu0
    %v3957 = vadd.f32 0.0, %v3956
    %v3958 = vpop.f32.mrf.mxu0
    %v3959 = vadd.f32 0.0, %v3958
    %3960 = vmatmul.bf16.gmra.mxu0 %v3828
    %v3961 = vpop.f32.mrf.mxu0
    %v3962 = vadd.f32 0.0, %v3961
    %v3963 = vpop.f32.mrf.mxu0
    %v3964 = vadd.f32 0.0, %v3963
    %3965 = vmatmul.bf16.gmra.mxu0 %v3829
    %v3966 = vpop.f32.mrf.mxu0
    %v3967 = vadd.f32 0.0, %v3966
    %v3968 = vpop.f32.mrf.mxu0
    %v3969 = vadd.f32 0.0, %v3968
    %3970 = vmatmul.bf16.gmra.mxu0 %v3830
    %v3971 = vpop.f32.mrf.mxu0
    %v3972 = vadd.f32 0.0, %v3971
    %v3973 = vpop.f32.mrf.mxu0
    %v3974 = vadd.f32 0.0, %v3973
    %3975 = vdwg.mxu0
    %3976 = vmatpush.bf16.msra.mxu0 %v3910
    %3977 = vmatpush.bf16.msra.mxu0 %v3908
    %3978 = vmatpush.bf16.msra.mxu0 %v3906
    %3979 = vmatpush.bf16.msra.mxu0 %v3904
    %3980 = vmatpush.bf16.msra.mxu0 %v3902
    %3981 = vmatpush.bf16.msra.mxu0 %v3900
    %3982 = vmatpush.bf16.msra.mxu0 %v3898
    %3983 = vmatpush.bf16.msra.mxu0 %v3896
    %3984 = vmatmul.bf16.gmra.mxu0 %v3823
    %v3985 = vpop.f32.mrf.mxu0
    %v3986 = vadd.f32 0.0, %v3985
    %v3987 = vpop.f32.mrf.mxu0
    %v3988 = vadd.f32 0.0, %v3987
    %3989 = vmatmul.bf16.gmra.mxu0 %v3824
    %v3990 = vpop.f32.mrf.mxu0
    %v3991 = vadd.f32 0.0, %v3990
    %v3992 = vpop.f32.mrf.mxu0
    %v3993 = vadd.f32 0.0, %v3992
    %3994 = vmatmul.bf16.gmra.mxu0 %v3825
    %v3995 = vpop.f32.mrf.mxu0
    %v3996 = vadd.f32 0.0, %v3995
    %v3997 = vpop.f32.mrf.mxu0
    %v3998 = vadd.f32 0.0, %v3997
    %3999 = vmatmul.bf16.gmra.mxu0 %v3826
    %v4000 = vpop.f32.mrf.mxu0
    %v4001 = vadd.f32 0.0, %v4000
    %v4002 = vpop.f32.mrf.mxu0
    %v4003 = vadd.f32 0.0, %v4002
    %4004 = vmatmul.bf16.gmra.mxu0 %v3827
    %v4005 = vpop.f32.mrf.mxu0
    %v4006 = vadd.f32 0.0, %v4005
    %v4007 = vpop.f32.mrf.mxu0
    %v4008 = vadd.f32 0.0, %v4007
    %4009 = vmatmul.bf16.gmra.mxu0 %v3828
    %v4010 = vpop.f32.mrf.mxu0
    %v4011 = vadd.f32 0.0, %v4010
    %v4012 = vpop.f32.mrf.mxu0
    %v4013 = vadd.f32 0.0, %v4012
    %4014 = vmatmul.bf16.gmra.mxu0 %v3829
    %v4015 = vpop.f32.mrf.mxu0
    %v4016 = vadd.f32 0.0, %v4015
    %v4017 = vpop.f32.mrf.mxu0
    %v4018 = vadd.f32 0.0, %v4017
    %4019 = vmatmul.bf16.gmra.mxu0 %v3830
    %v4020 = vpop.f32.mrf.mxu0
    %v4021 = vadd.f32 0.0, %v4020
    %v4022 = vpop.f32.mrf.mxu0
    %v4023 = vadd.f32 0.0, %v4022
    %4024 = vdwg.mxu0
    %v4025 = vmul.f32 %v3937, 1.702
    %v4026 = vmul.f32 %v3986, 1.702
    %v4027 = vmul.f32 %v3939, 1.702
    %v4028 = vmul.f32 %v3988, 1.702
    %v4029 = vmul.f32 %v3942, 1.702
    %v4030 = vmul.f32 %v3991, 1.702
    %v4031 = vmul.f32 %v3944, 1.702
    %v4032 = vmul.f32 %v3993, 1.702
    %v4033 = vmul.f32 %v3947, 1.702
    %v4034 = vmul.f32 %v3996, 1.702
    %v4035 = vmul.f32 %v3949, 1.702
    %v4036 = vmul.f32 %v3998, 1.702
    %v4037 = vmul.f32 %v3952, 1.702
    %v4038 = vmul.f32 %v4001, 1.702
    %v4039 = vmul.f32 %v3954, 1.702
    %v4040 = vmul.f32 %v4003, 1.702
    %v4041 = vmul.f32 %v3957, 1.702
    %v4042 = vmul.f32 %v4006, 1.702
    %v4043 = vmul.f32 %v3959, 1.702
    %v4044 = vmul.f32 %v4008, 1.702
    %v4045 = vmul.f32 %v3962, 1.702
    %v4046 = vmul.f32 %v4011, 1.702
    %v4047 = vmul.f32 %v3964, 1.702
    %v4048 = vmul.f32 %v4013, 1.702
    %v4049 = vmul.f32 %v3967, 1.702
    %v4050 = vmul.f32 %v4016, 1.702
    %v4051 = vmul.f32 %v3969, 1.702
    %v4052 = vmul.f32 %v4018, 1.702
    %v4053 = vmul.f32 %v3972, 1.702
    %v4054 = vmul.f32 %v4021, 1.702
    %v4055 = vmul.f32 %v3974, 1.702
    %v4056 = vmul.f32 %v4023, 1.702
    %v4057 = vxor.u32 %v4025, 2147483648
    %v4058 = vxor.u32 %v4026, 2147483648
    %v4059 = vxor.u32 %v4027, 2147483648
    %v4060 = vxor.u32 %v4028, 2147483648
    %v4061 = vxor.u32 %v4029, 2147483648
    %v4062 = vxor.u32 %v4030, 2147483648
    %v4063 = vxor.u32 %v4031, 2147483648
    %v4064 = vxor.u32 %v4032, 2147483648
    %v4065 = vxor.u32 %v4033, 2147483648
    %v4066 = vxor.u32 %v4034, 2147483648
    %v4067 = vxor.u32 %v4035, 2147483648
    %v4068 = vxor.u32 %v4036, 2147483648
    %v4069 = vxor.u32 %v4037, 2147483648
    %v4070 = vxor.u32 %v4038, 2147483648
    %v4071 = vxor.u32 %v4039, 2147483648
    %v4072 = vxor.u32 %v4040, 2147483648
    %v4073 = vxor.u32 %v4041, 2147483648
    %v4074 = vxor.u32 %v4042, 2147483648
    %v4075 = vxor.u32 %v4043, 2147483648
    %v4076 = vxor.u32 %v4044, 2147483648
    %v4077 = vxor.u32 %v4045, 2147483648
    %v4078 = vxor.u32 %v4046, 2147483648
    %v4079 = vxor.u32 %v4047, 2147483648
    %v4080 = vxor.u32 %v4048, 2147483648
    %v4081 = vxor.u32 %v4049, 2147483648
    %v4082 = vxor.u32 %v4050, 2147483648
    %v4083 = vxor.u32 %v4051, 2147483648
    %v4084 = vxor.u32 %v4052, 2147483648
    %v4085 = vxor.u32 %v4053, 2147483648
    %v4086 = vxor.u32 %v4054, 2147483648
    %v4087 = vxor.u32 %v4055, 2147483648
    %v4088 = vxor.u32 %v4056, 2147483648
    %v4089 = vmul.f32 %v4057, 1.442695
    %v4090 = vpow.pop %v4089
    %v4091 = vmul.f32 %v4058, 1.442695
    %v4092 = vpow.pop %v4091
    %v4093 = vmul.f32 %v4059, 1.442695
    %v4094 = vpow.pop %v4093
    %v4095 = vmul.f32 %v4060, 1.442695
    %v4096 = vpow.pop %v4095
    %v4097 = vmul.f32 %v4061, 1.442695
    %v4098 = vpow.pop %v4097
    %v4099 = vmul.f32 %v4062, 1.442695
    %v4100 = vpow.pop %v4099
    %v4101 = vmul.f32 %v4063, 1.442695
    %v4102 = vpow.pop %v4101
    %v4103 = vmul.f32 %v4064, 1.442695
    %v4104 = vpow.pop %v4103
    %v4105 = vmul.f32 %v4065, 1.442695
    %v4106 = vpow.pop %v4105
    %v4107 = vmul.f32 %v4066, 1.442695
    %v4108 = vpow.pop %v4107
    %v4109 = vmul.f32 %v4067, 1.442695
    %v4110 = vpow.pop %v4109
    %v4111 = vmul.f32 %v4068, 1.442695
    %v4112 = vpow.pop %v4111
    %v4113 = vmul.f32 %v4069, 1.442695
    %v4114 = vpow.pop %v4113
    %v4115 = vmul.f32 %v4070, 1.442695
    %v4116 = vpow.pop %v4115
    %v4117 = vmul.f32 %v4071, 1.442695
    %v4118 = vpow.pop %v4117
    %v4119 = vmul.f32 %v4072, 1.442695
    %v4120 = vpow.pop %v4119
    %v4121 = vmul.f32 %v4073, 1.442695
    %v4122 = vpow.pop %v4121
    %v4123 = vmul.f32 %v4074, 1.442695
    %v4124 = vpow.pop %v4123
    %v4125 = vmul.f32 %v4075, 1.442695
    %v4126 = vpow.pop %v4125
    %v4127 = vmul.f32 %v4076, 1.442695
    %v4128 = vpow.pop %v4127
    %v4129 = vmul.f32 %v4077, 1.442695
    %v4130 = vpow.pop %v4129
    %v4131 = vmul.f32 %v4078, 1.442695
    %v4132 = vpow.pop %v4131
    %v4133 = vmul.f32 %v4079, 1.442695
    %v4134 = vpow.pop %v4133
    %v4135 = vmul.f32 %v4080, 1.442695
    %v4136 = vpow.pop %v4135
    %v4137 = vmul.f32 %v4081, 1.442695
    %v4138 = vpow.pop %v4137
    %v4139 = vmul.f32 %v4082, 1.442695
    %v4140 = vpow.pop %v4139
    %v4141 = vmul.f32 %v4083, 1.442695
    %v4142 = vpow.pop %v4141
    %v4143 = vmul.f32 %v4084, 1.442695
    %v4144 = vpow.pop %v4143
    %v4145 = vmul.f32 %v4085, 1.442695
    %v4146 = vpow.pop %v4145
    %v4147 = vmul.f32 %v4086, 1.442695
    %v4148 = vpow.pop %v4147
    %v4149 = vmul.f32 %v4087, 1.442695
    %v4150 = vpow.pop %v4149
    %v4151 = vmul.f32 %v4088, 1.442695
    %v4152 = vpow.pop %v4151
    %v4153 = vadd.f32 %v4090, 1.0
    %v4154 = vadd.f32 %v4092, 1.0
    %v4155 = vadd.f32 %v4094, 1.0
    %v4156 = vadd.f32 %v4096, 1.0
    %v4157 = vadd.f32 %v4098, 1.0
    %v4158 = vadd.f32 %v4100, 1.0
    %v4159 = vadd.f32 %v4102, 1.0
    %v4160 = vadd.f32 %v4104, 1.0
    %v4161 = vadd.f32 %v4106, 1.0
    %v4162 = vadd.f32 %v4108, 1.0
    %v4163 = vadd.f32 %v4110, 1.0
    %v4164 = vadd.f32 %v4112, 1.0
    %v4165 = vadd.f32 %v4114, 1.0
    %v4166 = vadd.f32 %v4116, 1.0
    %v4167 = vadd.f32 %v4118, 1.0
    %v4168 = vadd.f32 %v4120, 1.0
    %v4169 = vadd.f32 %v4122, 1.0
    %v4170 = vadd.f32 %v4124, 1.0
    %v4171 = vadd.f32 %v4126, 1.0
    %v4172 = vadd.f32 %v4128, 1.0
    %v4173 = vadd.f32 %v4130, 1.0
    %v4174 = vadd.f32 %v4132, 1.0
    %v4175 = vadd.f32 %v4134, 1.0
    %v4176 = vadd.f32 %v4136, 1.0
    %v4177 = vadd.f32 %v4138, 1.0
    %v4178 = vadd.f32 %v4140, 1.0
    %v4179 = vadd.f32 %v4142, 1.0
    %v4180 = vadd.f32 %v4144, 1.0
    %v4181 = vadd.f32 %v4146, 1.0
    %v4182 = vadd.f32 %v4148, 1.0
    %v4183 = vadd.f32 %v4150, 1.0
    %v4184 = vadd.f32 %v4152, 1.0
    %v4185 = vrcp.pop %v4153
    %v4186 = vmul.f32 %v4153, %v4185
    %v4187 = vsub.f32 1.0, %v4186
    %v4188 = vmul.f32 %v4185, %v4187
    %v4189 = vadd.f32 %v4185, %v4188
    %vm4190 = vweird.f32 %v4153
    %vm4191 = vweird.f32 %v4185
    %vm4192 = vmor %vm4190, %vm4191
    %v4193 = vsel %vm4192, %v4185, %v4189
    %v4194 = vand.u32 2147483647, %v4153
    %vm4195 = vcmp.eq.f32.partialorder %v4194, 8.507059e+37
    %v4196 = vand.u32 %v4153, 2147483648
    %v4197 = vor.u32 1.1754944e-38, %v4196
    %v4198 = vsel %vm4195, %v4197, %v4193
    %v4199 = vmul.f32 1.0, %v4198
    %v4200 = vrcp.pop %v4154
    %v4201 = vmul.f32 %v4154, %v4200
    %v4202 = vsub.f32 1.0, %v4201
    %v4203 = vmul.f32 %v4200, %v4202
    %v4204 = vadd.f32 %v4200, %v4203
    %vm4205 = vweird.f32 %v4154
    %vm4206 = vweird.f32 %v4200
    %vm4207 = vmor %vm4205, %vm4206
    %v4208 = vsel %vm4207, %v4200, %v4204
    %v4209 = vand.u32 2147483647, %v4154
    %vm4210 = vcmp.eq.f32.partialorder %v4209, 8.507059e+37
    %v4211 = vand.u32 %v4154, 2147483648
    %v4212 = vor.u32 1.1754944e-38, %v4211
    %v4213 = vsel %vm4210, %v4212, %v4208
    %v4214 = vmul.f32 1.0, %v4213
    %v4215 = vrcp.pop %v4155
    %v4216 = vmul.f32 %v4155, %v4215
    %v4217 = vsub.f32 1.0, %v4216
    %v4218 = vmul.f32 %v4215, %v4217
    %v4219 = vadd.f32 %v4215, %v4218
    %vm4220 = vweird.f32 %v4155
    %vm4221 = vweird.f32 %v4215
    %vm4222 = vmor %vm4220, %vm4221
    %v4223 = vsel %vm4222, %v4215, %v4219
    %v4224 = vand.u32 2147483647, %v4155
    %vm4225 = vcmp.eq.f32.partialorder %v4224, 8.507059e+37
    %v4226 = vand.u32 %v4155, 2147483648
    %v4227 = vor.u32 1.1754944e-38, %v4226
    %v4228 = vsel %vm4225, %v4227, %v4223
    %v4229 = vmul.f32 1.0, %v4228
    %v4230 = vrcp.pop %v4156
    %v4231 = vmul.f32 %v4156, %v4230
    %v4232 = vsub.f32 1.0, %v4231
    %v4233 = vmul.f32 %v4230, %v4232
    %v4234 = vadd.f32 %v4230, %v4233
    %vm4235 = vweird.f32 %v4156
    %vm4236 = vweird.f32 %v4230
    %vm4237 = vmor %vm4235, %vm4236
    %v4238 = vsel %vm4237, %v4230, %v4234
    %v4239 = vand.u32 2147483647, %v4156
    %vm4240 = vcmp.eq.f32.partialorder %v4239, 8.507059e+37
    %v4241 = vand.u32 %v4156, 2147483648
    %v4242 = vor.u32 1.1754944e-38, %v4241
    %v4243 = vsel %vm4240, %v4242, %v4238
    %v4244 = vmul.f32 1.0, %v4243
    %v4245 = vrcp.pop %v4157
    %v4246 = vmul.f32 %v4157, %v4245
    %v4247 = vsub.f32 1.0, %v4246
    %v4248 = vmul.f32 %v4245, %v4247
    %v4249 = vadd.f32 %v4245, %v4248
    %vm4250 = vweird.f32 %v4157
    %vm4251 = vweird.f32 %v4245
    %vm4252 = vmor %vm4250, %vm4251
    %v4253 = vsel %vm4252, %v4245, %v4249
    %v4254 = vand.u32 2147483647, %v4157
    %vm4255 = vcmp.eq.f32.partialorder %v4254, 8.507059e+37
    %v4256 = vand.u32 %v4157, 2147483648
    %v4257 = vor.u32 1.1754944e-38, %v4256
    %v4258 = vsel %vm4255, %v4257, %v4253
    %v4259 = vmul.f32 1.0, %v4258
    %v4260 = vrcp.pop %v4158
    %v4261 = vmul.f32 %v4158, %v4260
    %v4262 = vsub.f32 1.0, %v4261
    %v4263 = vmul.f32 %v4260, %v4262
    %v4264 = vadd.f32 %v4260, %v4263
    %vm4265 = vweird.f32 %v4158
    %vm4266 = vweird.f32 %v4260
    %vm4267 = vmor %vm4265, %vm4266
    %v4268 = vsel %vm4267, %v4260, %v4264
    %v4269 = vand.u32 2147483647, %v4158
    %vm4270 = vcmp.eq.f32.partialorder %v4269, 8.507059e+37
    %v4271 = vand.u32 %v4158, 2147483648
    %v4272 = vor.u32 1.1754944e-38, %v4271
    %v4273 = vsel %vm4270, %v4272, %v4268
    %v4274 = vmul.f32 1.0, %v4273
    %v4275 = vrcp.pop %v4159
    %v4276 = vmul.f32 %v4159, %v4275
    %v4277 = vsub.f32 1.0, %v4276
    %v4278 = vmul.f32 %v4275, %v4277
    %v4279 = vadd.f32 %v4275, %v4278
    %vm4280 = vweird.f32 %v4159
    %vm4281 = vweird.f32 %v4275
    %vm4282 = vmor %vm4280, %vm4281
    %v4283 = vsel %vm4282, %v4275, %v4279
    %v4284 = vand.u32 2147483647, %v4159
    %vm4285 = vcmp.eq.f32.partialorder %v4284, 8.507059e+37
    %v4286 = vand.u32 %v4159, 2147483648
    %v4287 = vor.u32 1.1754944e-38, %v4286
    %v4288 = vsel %vm4285, %v4287, %v4283
    %v4289 = vmul.f32 1.0, %v4288
    %v4290 = vrcp.pop %v4160
    %v4291 = vmul.f32 %v4160, %v4290
    %v4292 = vsub.f32 1.0, %v4291
    %v4293 = vmul.f32 %v4290, %v4292
    %v4294 = vadd.f32 %v4290, %v4293
    %vm4295 = vweird.f32 %v4160
    %vm4296 = vweird.f32 %v4290
    %vm4297 = vmor %vm4295, %vm4296
    %v4298 = vsel %vm4297, %v4290, %v4294
    %v4299 = vand.u32 2147483647, %v4160
    %vm4300 = vcmp.eq.f32.partialorder %v4299, 8.507059e+37
    %v4301 = vand.u32 %v4160, 2147483648
    %v4302 = vor.u32 1.1754944e-38, %v4301
    %v4303 = vsel %vm4300, %v4302, %v4298
    %v4304 = vmul.f32 1.0, %v4303
    %v4305 = vrcp.pop %v4161
    %v4306 = vmul.f32 %v4161, %v4305
    %v4307 = vsub.f32 1.0, %v4306
    %v4308 = vmul.f32 %v4305, %v4307
    %v4309 = vadd.f32 %v4305, %v4308
    %vm4310 = vweird.f32 %v4161
    %vm4311 = vweird.f32 %v4305
    %vm4312 = vmor %vm4310, %vm4311
    %v4313 = vsel %vm4312, %v4305, %v4309
    %v4314 = vand.u32 2147483647, %v4161
    %vm4315 = vcmp.eq.f32.partialorder %v4314, 8.507059e+37
    %v4316 = vand.u32 %v4161, 2147483648
    %v4317 = vor.u32 1.1754944e-38, %v4316
    %v4318 = vsel %vm4315, %v4317, %v4313
    %v4319 = vmul.f32 1.0, %v4318
    %v4320 = vrcp.pop %v4162
    %v4321 = vmul.f32 %v4162, %v4320
    %v4322 = vsub.f32 1.0, %v4321
    %v4323 = vmul.f32 %v4320, %v4322
    %v4324 = vadd.f32 %v4320, %v4323
    %vm4325 = vweird.f32 %v4162
    %vm4326 = vweird.f32 %v4320
    %vm4327 = vmor %vm4325, %vm4326
    %v4328 = vsel %vm4327, %v4320, %v4324
    %v4329 = vand.u32 2147483647, %v4162
    %vm4330 = vcmp.eq.f32.partialorder %v4329, 8.507059e+37
    %v4331 = vand.u32 %v4162, 2147483648
    %v4332 = vor.u32 1.1754944e-38, %v4331
    %v4333 = vsel %vm4330, %v4332, %v4328
    %v4334 = vmul.f32 1.0, %v4333
    %v4335 = vrcp.pop %v4163
    %v4336 = vmul.f32 %v4163, %v4335
    %v4337 = vsub.f32 1.0, %v4336
    %v4338 = vmul.f32 %v4335, %v4337
    %v4339 = vadd.f32 %v4335, %v4338
    %vm4340 = vweird.f32 %v4163
    %vm4341 = vweird.f32 %v4335
    %vm4342 = vmor %vm4340, %vm4341
    %v4343 = vsel %vm4342, %v4335, %v4339
    %v4344 = vand.u32 2147483647, %v4163
    %vm4345 = vcmp.eq.f32.partialorder %v4344, 8.507059e+37
    %v4346 = vand.u32 %v4163, 2147483648
    %v4347 = vor.u32 1.1754944e-38, %v4346
    %v4348 = vsel %vm4345, %v4347, %v4343
    %v4349 = vmul.f32 1.0, %v4348
    %v4350 = vrcp.pop %v4164
    %v4351 = vmul.f32 %v4164, %v4350
    %v4352 = vsub.f32 1.0, %v4351
    %v4353 = vmul.f32 %v4350, %v4352
    %v4354 = vadd.f32 %v4350, %v4353
    %vm4355 = vweird.f32 %v4164
    %vm4356 = vweird.f32 %v4350
    %vm4357 = vmor %vm4355, %vm4356
    %v4358 = vsel %vm4357, %v4350, %v4354
    %v4359 = vand.u32 2147483647, %v4164
    %vm4360 = vcmp.eq.f32.partialorder %v4359, 8.507059e+37
    %v4361 = vand.u32 %v4164, 2147483648
    %v4362 = vor.u32 1.1754944e-38, %v4361
    %v4363 = vsel %vm4360, %v4362, %v4358
    %v4364 = vmul.f32 1.0, %v4363
    %v4365 = vrcp.pop %v4165
    %v4366 = vmul.f32 %v4165, %v4365
    %v4367 = vsub.f32 1.0, %v4366
    %v4368 = vmul.f32 %v4365, %v4367
    %v4369 = vadd.f32 %v4365, %v4368
    %vm4370 = vweird.f32 %v4165
    %vm4371 = vweird.f32 %v4365
    %vm4372 = vmor %vm4370, %vm4371
    %v4373 = vsel %vm4372, %v4365, %v4369
    %v4374 = vand.u32 2147483647, %v4165
    %vm4375 = vcmp.eq.f32.partialorder %v4374, 8.507059e+37
    %v4376 = vand.u32 %v4165, 2147483648
    %v4377 = vor.u32 1.1754944e-38, %v4376
    %v4378 = vsel %vm4375, %v4377, %v4373
    %v4379 = vmul.f32 1.0, %v4378
    %v4380 = vrcp.pop %v4166
    %v4381 = vmul.f32 %v4166, %v4380
    %v4382 = vsub.f32 1.0, %v4381
    %v4383 = vmul.f32 %v4380, %v4382
    %v4384 = vadd.f32 %v4380, %v4383
    %vm4385 = vweird.f32 %v4166
    %vm4386 = vweird.f32 %v4380
    %vm4387 = vmor %vm4385, %vm4386
    %v4388 = vsel %vm4387, %v4380, %v4384
    %v4389 = vand.u32 2147483647, %v4166
    %vm4390 = vcmp.eq.f32.partialorder %v4389, 8.507059e+37
    %v4391 = vand.u32 %v4166, 2147483648
    %v4392 = vor.u32 1.1754944e-38, %v4391
    %v4393 = vsel %vm4390, %v4392, %v4388
    %v4394 = vmul.f32 1.0, %v4393
    %v4395 = vrcp.pop %v4167
    %v4396 = vmul.f32 %v4167, %v4395
    %v4397 = vsub.f32 1.0, %v4396
    %v4398 = vmul.f32 %v4395, %v4397
    %v4399 = vadd.f32 %v4395, %v4398
    %vm4400 = vweird.f32 %v4167
    %vm4401 = vweird.f32 %v4395
    %vm4402 = vmor %vm4400, %vm4401
    %v4403 = vsel %vm4402, %v4395, %v4399
    %v4404 = vand.u32 2147483647, %v4167
    %vm4405 = vcmp.eq.f32.partialorder %v4404, 8.507059e+37
    %v4406 = vand.u32 %v4167, 2147483648
    %v4407 = vor.u32 1.1754944e-38, %v4406
    %v4408 = vsel %vm4405, %v4407, %v4403
    %v4409 = vmul.f32 1.0, %v4408
    %v4410 = vrcp.pop %v4168
    %v4411 = vmul.f32 %v4168, %v4410
    %v4412 = vsub.f32 1.0, %v4411
    %v4413 = vmul.f32 %v4410, %v4412
    %v4414 = vadd.f32 %v4410, %v4413
    %vm4415 = vweird.f32 %v4168
    %vm4416 = vweird.f32 %v4410
    %vm4417 = vmor %vm4415, %vm4416
    %v4418 = vsel %vm4417, %v4410, %v4414
    %v4419 = vand.u32 2147483647, %v4168
    %vm4420 = vcmp.eq.f32.partialorder %v4419, 8.507059e+37
    %v4421 = vand.u32 %v4168, 2147483648
    %v4422 = vor.u32 1.1754944e-38, %v4421
    %v4423 = vsel %vm4420, %v4422, %v4418
    %v4424 = vmul.f32 1.0, %v4423
    %v4425 = vrcp.pop %v4169
    %v4426 = vmul.f32 %v4169, %v4425
    %v4427 = vsub.f32 1.0, %v4426
    %v4428 = vmul.f32 %v4425, %v4427
    %v4429 = vadd.f32 %v4425, %v4428
    %vm4430 = vweird.f32 %v4169
    %vm4431 = vweird.f32 %v4425
    %vm4432 = vmor %vm4430, %vm4431
    %v4433 = vsel %vm4432, %v4425, %v4429
    %v4434 = vand.u32 2147483647, %v4169
    %vm4435 = vcmp.eq.f32.partialorder %v4434, 8.507059e+37
    %v4436 = vand.u32 %v4169, 2147483648
    %v4437 = vor.u32 1.1754944e-38, %v4436
    %v4438 = vsel %vm4435, %v4437, %v4433
    %v4439 = vmul.f32 1.0, %v4438
    %v4440 = vrcp.pop %v4170
    %v4441 = vmul.f32 %v4170, %v4440
    %v4442 = vsub.f32 1.0, %v4441
    %v4443 = vmul.f32 %v4440, %v4442
    %v4444 = vadd.f32 %v4440, %v4443
    %vm4445 = vweird.f32 %v4170
    %vm4446 = vweird.f32 %v4440
    %vm4447 = vmor %vm4445, %vm4446
    %v4448 = vsel %vm4447, %v4440, %v4444
    %v4449 = vand.u32 2147483647, %v4170
    %vm4450 = vcmp.eq.f32.partialorder %v4449, 8.507059e+37
    %v4451 = vand.u32 %v4170, 2147483648
    %v4452 = vor.u32 1.1754944e-38, %v4451
    %v4453 = vsel %vm4450, %v4452, %v4448
    %v4454 = vmul.f32 1.0, %v4453
    %v4455 = vrcp.pop %v4171
    %v4456 = vmul.f32 %v4171, %v4455
    %v4457 = vsub.f32 1.0, %v4456
    %v4458 = vmul.f32 %v4455, %v4457
    %v4459 = vadd.f32 %v4455, %v4458
    %vm4460 = vweird.f32 %v4171
    %vm4461 = vweird.f32 %v4455
    %vm4462 = vmor %vm4460, %vm4461
    %v4463 = vsel %vm4462, %v4455, %v4459
    %v4464 = vand.u32 2147483647, %v4171
    %vm4465 = vcmp.eq.f32.partialorder %v4464, 8.507059e+37
    %v4466 = vand.u32 %v4171, 2147483648
    %v4467 = vor.u32 1.1754944e-38, %v4466
    %v4468 = vsel %vm4465, %v4467, %v4463
    %v4469 = vmul.f32 1.0, %v4468
    %v4470 = vrcp.pop %v4172
    %v4471 = vmul.f32 %v4172, %v4470
    %v4472 = vsub.f32 1.0, %v4471
    %v4473 = vmul.f32 %v4470, %v4472
    %v4474 = vadd.f32 %v4470, %v4473
    %vm4475 = vweird.f32 %v4172
    %vm4476 = vweird.f32 %v4470
    %vm4477 = vmor %vm4475, %vm4476
    %v4478 = vsel %vm4477, %v4470, %v4474
    %v4479 = vand.u32 2147483647, %v4172
    %vm4480 = vcmp.eq.f32.partialorder %v4479, 8.507059e+37
    %v4481 = vand.u32 %v4172, 2147483648
    %v4482 = vor.u32 1.1754944e-38, %v4481
    %v4483 = vsel %vm4480, %v4482, %v4478
    %v4484 = vmul.f32 1.0, %v4483
    %v4485 = vrcp.pop %v4173
    %v4486 = vmul.f32 %v4173, %v4485
    %v4487 = vsub.f32 1.0, %v4486
    %v4488 = vmul.f32 %v4485, %v4487
    %v4489 = vadd.f32 %v4485, %v4488
    %vm4490 = vweird.f32 %v4173
    %vm4491 = vweird.f32 %v4485
    %vm4492 = vmor %vm4490, %vm4491
    %v4493 = vsel %vm4492, %v4485, %v4489
    %v4494 = vand.u32 2147483647, %v4173
    %vm4495 = vcmp.eq.f32.partialorder %v4494, 8.507059e+37
    %v4496 = vand.u32 %v4173, 2147483648
    %v4497 = vor.u32 1.1754944e-38, %v4496
    %v4498 = vsel %vm4495, %v4497, %v4493
    %v4499 = vmul.f32 1.0, %v4498
    %v4500 = vrcp.pop %v4174
    %v4501 = vmul.f32 %v4174, %v4500
    %v4502 = vsub.f32 1.0, %v4501
    %v4503 = vmul.f32 %v4500, %v4502
    %v4504 = vadd.f32 %v4500, %v4503
    %vm4505 = vweird.f32 %v4174
    %vm4506 = vweird.f32 %v4500
    %vm4507 = vmor %vm4505, %vm4506
    %v4508 = vsel %vm4507, %v4500, %v4504
    %v4509 = vand.u32 2147483647, %v4174
    %vm4510 = vcmp.eq.f32.partialorder %v4509, 8.507059e+37
    %v4511 = vand.u32 %v4174, 2147483648
    %v4512 = vor.u32 1.1754944e-38, %v4511
    %v4513 = vsel %vm4510, %v4512, %v4508
    %v4514 = vmul.f32 1.0, %v4513
    %v4515 = vrcp.pop %v4175
    %v4516 = vmul.f32 %v4175, %v4515
    %v4517 = vsub.f32 1.0, %v4516
    %v4518 = vmul.f32 %v4515, %v4517
    %v4519 = vadd.f32 %v4515, %v4518
    %vm4520 = vweird.f32 %v4175
    %vm4521 = vweird.f32 %v4515
    %vm4522 = vmor %vm4520, %vm4521
    %v4523 = vsel %vm4522, %v4515, %v4519
    %v4524 = vand.u32 2147483647, %v4175
    %vm4525 = vcmp.eq.f32.partialorder %v4524, 8.507059e+37
    %v4526 = vand.u32 %v4175, 2147483648
    %v4527 = vor.u32 1.1754944e-38, %v4526
    %v4528 = vsel %vm4525, %v4527, %v4523
    %v4529 = vmul.f32 1.0, %v4528
    %v4530 = vrcp.pop %v4176
    %v4531 = vmul.f32 %v4176, %v4530
    %v4532 = vsub.f32 1.0, %v4531
    %v4533 = vmul.f32 %v4530, %v4532
    %v4534 = vadd.f32 %v4530, %v4533
    %vm4535 = vweird.f32 %v4176
    %vm4536 = vweird.f32 %v4530
    %vm4537 = vmor %vm4535, %vm4536
    %v4538 = vsel %vm4537, %v4530, %v4534
    %v4539 = vand.u32 2147483647, %v4176
    %vm4540 = vcmp.eq.f32.partialorder %v4539, 8.507059e+37
    %v4541 = vand.u32 %v4176, 2147483648
    %v4542 = vor.u32 1.1754944e-38, %v4541
    %v4543 = vsel %vm4540, %v4542, %v4538
    %v4544 = vmul.f32 1.0, %v4543
    %v4545 = vrcp.pop %v4177
    %v4546 = vmul.f32 %v4177, %v4545
    %v4547 = vsub.f32 1.0, %v4546
    %v4548 = vmul.f32 %v4545, %v4547
    %v4549 = vadd.f32 %v4545, %v4548
    %vm4550 = vweird.f32 %v4177
    %vm4551 = vweird.f32 %v4545
    %vm4552 = vmor %vm4550, %vm4551
    %v4553 = vsel %vm4552, %v4545, %v4549
    %v4554 = vand.u32 2147483647, %v4177
    %vm4555 = vcmp.eq.f32.partialorder %v4554, 8.507059e+37
    %v4556 = vand.u32 %v4177, 2147483648
    %v4557 = vor.u32 1.1754944e-38, %v4556
    %v4558 = vsel %vm4555, %v4557, %v4553
    %v4559 = vmul.f32 1.0, %v4558
    %v4560 = vrcp.pop %v4178
    %v4561 = vmul.f32 %v4178, %v4560
    %v4562 = vsub.f32 1.0, %v4561
    %v4563 = vmul.f32 %v4560, %v4562
    %v4564 = vadd.f32 %v4560, %v4563
    %vm4565 = vweird.f32 %v4178
    %vm4566 = vweird.f32 %v4560
    %vm4567 = vmor %vm4565, %vm4566
    %v4568 = vsel %vm4567, %v4560, %v4564
    %v4569 = vand.u32 2147483647, %v4178
    %vm4570 = vcmp.eq.f32.partialorder %v4569, 8.507059e+37
    %v4571 = vand.u32 %v4178, 2147483648
    %v4572 = vor.u32 1.1754944e-38, %v4571
    %v4573 = vsel %vm4570, %v4572, %v4568
    %v4574 = vmul.f32 1.0, %v4573
    %v4575 = vrcp.pop %v4179
    %v4576 = vmul.f32 %v4179, %v4575
    %v4577 = vsub.f32 1.0, %v4576
    %v4578 = vmul.f32 %v4575, %v4577
    %v4579 = vadd.f32 %v4575, %v4578
    %vm4580 = vweird.f32 %v4179
    %vm4581 = vweird.f32 %v4575
    %vm4582 = vmor %vm4580, %vm4581
    %v4583 = vsel %vm4582, %v4575, %v4579
    %v4584 = vand.u32 2147483647, %v4179
    %vm4585 = vcmp.eq.f32.partialorder %v4584, 8.507059e+37
    %v4586 = vand.u32 %v4179, 2147483648
    %v4587 = vor.u32 1.1754944e-38, %v4586
    %v4588 = vsel %vm4585, %v4587, %v4583
    %v4589 = vmul.f32 1.0, %v4588
    %v4590 = vrcp.pop %v4180
    %v4591 = vmul.f32 %v4180, %v4590
    %v4592 = vsub.f32 1.0, %v4591
    %v4593 = vmul.f32 %v4590, %v4592
    %v4594 = vadd.f32 %v4590, %v4593
    %vm4595 = vweird.f32 %v4180
    %vm4596 = vweird.f32 %v4590
    %vm4597 = vmor %vm4595, %vm4596
    %v4598 = vsel %vm4597, %v4590, %v4594
    %v4599 = vand.u32 2147483647, %v4180
    %vm4600 = vcmp.eq.f32.partialorder %v4599, 8.507059e+37
    %v4601 = vand.u32 %v4180, 2147483648
    %v4602 = vor.u32 1.1754944e-38, %v4601
    %v4603 = vsel %vm4600, %v4602, %v4598
    %v4604 = vmul.f32 1.0, %v4603
    %v4605 = vrcp.pop %v4181
    %v4606 = vmul.f32 %v4181, %v4605
    %v4607 = vsub.f32 1.0, %v4606
    %v4608 = vmul.f32 %v4605, %v4607
    %v4609 = vadd.f32 %v4605, %v4608
    %vm4610 = vweird.f32 %v4181
    %vm4611 = vweird.f32 %v4605
    %vm4612 = vmor %vm4610, %vm4611
    %v4613 = vsel %vm4612, %v4605, %v4609
    %v4614 = vand.u32 2147483647, %v4181
    %vm4615 = vcmp.eq.f32.partialorder %v4614, 8.507059e+37
    %v4616 = vand.u32 %v4181, 2147483648
    %v4617 = vor.u32 1.1754944e-38, %v4616
    %v4618 = vsel %vm4615, %v4617, %v4613
    %v4619 = vmul.f32 1.0, %v4618
    %v4620 = vrcp.pop %v4182
    %v4621 = vmul.f32 %v4182, %v4620
    %v4622 = vsub.f32 1.0, %v4621
    %v4623 = vmul.f32 %v4620, %v4622
    %v4624 = vadd.f32 %v4620, %v4623
    %vm4625 = vweird.f32 %v4182
    %vm4626 = vweird.f32 %v4620
    %vm4627 = vmor %vm4625, %vm4626
    %v4628 = vsel %vm4627, %v4620, %v4624
    %v4629 = vand.u32 2147483647, %v4182
    %vm4630 = vcmp.eq.f32.partialorder %v4629, 8.507059e+37
    %v4631 = vand.u32 %v4182, 2147483648
    %v4632 = vor.u32 1.1754944e-38, %v4631
    %v4633 = vsel %vm4630, %v4632, %v4628
    %v4634 = vmul.f32 1.0, %v4633
    %v4635 = vrcp.pop %v4183
    %v4636 = vmul.f32 %v4183, %v4635
    %v4637 = vsub.f32 1.0, %v4636
    %v4638 = vmul.f32 %v4635, %v4637
    %v4639 = vadd.f32 %v4635, %v4638
    %vm4640 = vweird.f32 %v4183
    %vm4641 = vweird.f32 %v4635
    %vm4642 = vmor %vm4640, %vm4641
    %v4643 = vsel %vm4642, %v4635, %v4639
    %v4644 = vand.u32 2147483647, %v4183
    %vm4645 = vcmp.eq.f32.partialorder %v4644, 8.507059e+37
    %v4646 = vand.u32 %v4183, 2147483648
    %v4647 = vor.u32 1.1754944e-38, %v4646
    %v4648 = vsel %vm4645, %v4647, %v4643
    %v4649 = vmul.f32 1.0, %v4648
    %v4650 = vrcp.pop %v4184
    %v4651 = vmul.f32 %v4184, %v4650
    %v4652 = vsub.f32 1.0, %v4651
    %v4653 = vmul.f32 %v4650, %v4652
    %v4654 = vadd.f32 %v4650, %v4653
    %vm4655 = vweird.f32 %v4184
    %vm4656 = vweird.f32 %v4650
    %vm4657 = vmor %vm4655, %vm4656
    %v4658 = vsel %vm4657, %v4650, %v4654
    %v4659 = vand.u32 2147483647, %v4184
    %vm4660 = vcmp.eq.f32.partialorder %v4659, 8.507059e+37
    %v4661 = vand.u32 %v4184, 2147483648
    %v4662 = vor.u32 1.1754944e-38, %v4661
    %v4663 = vsel %vm4660, %v4662, %v4658
    %v4664 = vmul.f32 1.0, %v4663
    %v4665 = vmul.f32 %v3937, %v4199
    %v4666 = vmul.f32 %v3986, %v4214
    %v4667 = vmul.f32 %v3939, %v4229
    %v4668 = vmul.f32 %v3988, %v4244
    %v4669 = vmul.f32 %v3942, %v4259
    %v4670 = vmul.f32 %v3991, %v4274
    %v4671 = vmul.f32 %v3944, %v4289
    %v4672 = vmul.f32 %v3993, %v4304
    %v4673 = vmul.f32 %v3947, %v4319
    %v4674 = vmul.f32 %v3996, %v4334
    %v4675 = vmul.f32 %v3949, %v4349
    %v4676 = vmul.f32 %v3998, %v4364
    %v4677 = vmul.f32 %v3952, %v4379
    %v4678 = vmul.f32 %v4001, %v4394
    %v4679 = vmul.f32 %v3954, %v4409
    %v4680 = vmul.f32 %v4003, %v4424
    %v4681 = vmul.f32 %v3957, %v4439
    %v4682 = vmul.f32 %v4006, %v4454
    %v4683 = vmul.f32 %v3959, %v4469
    %v4684 = vmul.f32 %v4008, %v4484
    %v4685 = vmul.f32 %v3962, %v4499
    %v4686 = vmul.f32 %v4011, %v4514
    %v4687 = vmul.f32 %v3964, %v4529
    %v4688 = vmul.f32 %v4013, %v4544
    %v4689 = vmul.f32 %v3967, %v4559
    %v4690 = vmul.f32 %v4016, %v4574
    %v4691 = vmul.f32 %v3969, %v4589
    %v4692 = vmul.f32 %v4018, %v4604
    %v4693 = vmul.f32 %v3972, %v4619
    %v4694 = vmul.f32 %v4021, %v4634
    %v4695 = vmul.f32 %v3974, %v4649
    %v4696 = vmul.f32 %v4023, %v4664
    %v4697 = vpack.c.bf16 %v4667, %v4665
    %v4698 = vpack.c.bf16 %v4668, %v4666
    %v4699 = vpack.c.bf16 %v4671, %v4669
    %v4700 = vpack.c.bf16 %v4672, %v4670
    %v4701 = vpack.c.bf16 %v4675, %v4673
    %v4702 = vpack.c.bf16 %v4676, %v4674
    %v4703 = vpack.c.bf16 %v4679, %v4677
    %v4704 = vpack.c.bf16 %v4680, %v4678
    %v4705 = vpack.c.bf16 %v4683, %v4681
    %v4706 = vpack.c.bf16 %v4684, %v4682
    %v4707 = vpack.c.bf16 %v4687, %v4685
    %v4708 = vpack.c.bf16 %v4688, %v4686
    %v4709 = vpack.c.bf16 %v4691, %v4689
    %v4710 = vpack.c.bf16 %v4692, %v4690
    %v4711 = vpack.c.bf16 %v4695, %v4693
    %v4712 = vpack.c.bf16 %v4696, %v4694
    %v4713 = vld [vmem:[#allocation15] sm:$0xf]
    %v4714 = vld [vmem:[#allocation15 + $0x4] sm:$0xf]
    %v4715 = vld [vmem:[#allocation15 + $0x8] sm:$0xf]
    %v4716 = vld [vmem:[#allocation15 + $0xc] sm:$0xf]
    %v4717 = vld [vmem:[#allocation15 + $0x10] sm:$0xf]
    %v4718 = vld [vmem:[#allocation15 + $0x14] sm:$0xf]
    %v4719 = vld [vmem:[#allocation15 + $0x18] sm:$0xf]
    %v4720 = vld [vmem:[#allocation15 + $0x1c] sm:$0xf]
    %v4721 = vld [vmem:[#allocation15 + $0x20] sm:$0xf]
    %v4722 = vld [vmem:[#allocation15 + $0x24] sm:$0xf]
    %v4723 = vld [vmem:[#allocation15 + $0x28] sm:$0xf]
    %v4724 = vld [vmem:[#allocation15 + $0x2c] sm:$0xf]
    %v4725 = vld [vmem:[#allocation15 + $0x30] sm:$0xf]
    %v4726 = vld [vmem:[#allocation15 + $0x34] sm:$0xf]
    %v4727 = vld [vmem:[#allocation15 + $0x38] sm:$0xf]
    %v4728 = vld [vmem:[#allocation15 + $0x3c] sm:$0xf]
    %v4729 = vld [vmem:[#allocation15 + $0x40] sm:$0xf]
    %v4730 = vld [vmem:[#allocation15 + $0x44] sm:$0xf]
    %v4731 = vld [vmem:[#allocation15 + $0x48] sm:$0xf]
    %v4732 = vld [vmem:[#allocation15 + $0x4c] sm:$0xf]
    %v4733 = vld [vmem:[#allocation15 + $0x50] sm:$0xf]
    %v4734 = vld [vmem:[#allocation15 + $0x54] sm:$0xf]
    %v4735 = vld [vmem:[#allocation15 + $0x58] sm:$0xf]
    %v4736 = vld [vmem:[#allocation15 + $0x5c] sm:$0xf]
    %v4737 = vld [vmem:[#allocation15 + $0x60] sm:$0xf]
    %v4738 = vld [vmem:[#allocation15 + $0x64] sm:$0xf]
    %v4739 = vld [vmem:[#allocation15 + $0x68] sm:$0xf]
    %v4740 = vld [vmem:[#allocation15 + $0x6c] sm:$0xf]
    %v4741 = vld [vmem:[#allocation15 + $0x70] sm:$0xf]
    %v4742 = vld [vmem:[#allocation15 + $0x74] sm:$0xf]
    %v4743 = vld [vmem:[#allocation15 + $0x78] sm:$0xf]
    %v4744 = vld [vmem:[#allocation15 + $0x7c] sm:$0xf]
    %v4777 = vunpack.c.l.b16 %v4713
    %v4778 = vunpack.c.l.b16 %v4714
    %v4779 = vunpack.c.l.b16 %v4715
    %v4780 = vunpack.c.l.b16 %v4716
    %v4781 = vunpack.c.l.b16 %v4717
    %v4782 = vunpack.c.l.b16 %v4718
    %v4783 = vunpack.c.l.b16 %v4719
    %v4784 = vunpack.c.l.b16 %v4720
    %v4785 = vunpack.c.l.b16 %v4721
    %v4786 = vunpack.c.l.b16 %v4722
    %v4787 = vunpack.c.l.b16 %v4723
    %v4788 = vunpack.c.l.b16 %v4724
    %v4789 = vunpack.c.l.b16 %v4725
    %v4790 = vunpack.c.l.b16 %v4726
    %v4791 = vunpack.c.l.b16 %v4727
    %v4792 = vunpack.c.l.b16 %v4728
    %v4793 = vunpack.c.l.b16 %v4729
    %v4794 = vunpack.c.l.b16 %v4730
    %v4795 = vunpack.c.l.b16 %v4731
    %v4796 = vunpack.c.l.b16 %v4732
    %v4797 = vunpack.c.l.b16 %v4733
    %v4798 = vunpack.c.l.b16 %v4734
    %v4799 = vunpack.c.l.b16 %v4735
    %v4800 = vunpack.c.l.b16 %v4736
    %v4801 = vunpack.c.l.b16 %v4737
    %v4802 = vunpack.c.l.b16 %v4738
    %v4803 = vunpack.c.l.b16 %v4739
    %v4804 = vunpack.c.l.b16 %v4740
    %v4805 = vunpack.c.l.b16 %v4741
    %v4806 = vunpack.c.l.b16 %v4742
    %v4807 = vunpack.c.l.b16 %v4743
    %v4808 = vunpack.c.l.b16 %v4744
    %v4809 = vpack.c.b16 %v4778, %v4777
    %v4810 = vpack.c.b16 %v4780, %v4779
    %v4811 = vpack.c.b16 %v4782, %v4781
    %v4812 = vpack.c.b16 %v4784, %v4783
    %v4813 = vpack.c.b16 %v4786, %v4785
    %v4814 = vpack.c.b16 %v4788, %v4787
    %v4815 = vpack.c.b16 %v4790, %v4789
    %v4816 = vpack.c.b16 %v4792, %v4791
    %v4817 = vpack.c.b16 %v4794, %v4793
    %v4818 = vpack.c.b16 %v4796, %v4795
    %v4819 = vpack.c.b16 %v4798, %v4797
    %v4820 = vpack.c.b16 %v4800, %v4799
    %v4821 = vpack.c.b16 %v4802, %v4801
    %v4822 = vpack.c.b16 %v4804, %v4803
    %v4823 = vpack.c.b16 %v4806, %v4805
    %v4824 = vpack.c.b16 %v4808, %v4807
    %4841 = vmatpush.bf16.msra.mxu0 %v4816
    %4842 = vmatpush.bf16.msra.mxu0 %v4815
    %4843 = vmatpush.bf16.msra.mxu0 %v4814
    %4844 = vmatpush.bf16.msra.mxu0 %v4813
    %4845 = vmatpush.bf16.msra.mxu0 %v4812
    %4846 = vmatpush.bf16.msra.mxu0 %v4811
    %4847 = vmatpush.bf16.msra.mxu0 %v4810
    %4848 = vmatpush.bf16.msra.mxu0 %v4809
    %4849 = vmatmul.bf16.gmra.mxu0 %v4697
    %v4850 = vpop.f32.mrf.mxu0
    %v4851 = vadd.f32 0.0, %v4850
    %v4852 = vpop.f32.mrf.mxu0
    %v4853 = vadd.f32 0.0, %v4852
    %4854 = vmatmul.bf16.gmra.mxu0 %v4699
    %v4855 = vpop.f32.mrf.mxu0
    %v4856 = vadd.f32 0.0, %v4855
    %v4857 = vpop.f32.mrf.mxu0
    %v4858 = vadd.f32 0.0, %v4857
    %4859 = vmatmul.bf16.gmra.mxu0 %v4701
    %v4860 = vpop.f32.mrf.mxu0
    %v4861 = vadd.f32 0.0, %v4860
    %v4862 = vpop.f32.mrf.mxu0
    %v4863 = vadd.f32 0.0, %v4862
    %4864 = vmatmul.bf16.gmra.mxu0 %v4703
    %v4865 = vpop.f32.mrf.mxu0
    %v4866 = vadd.f32 0.0, %v4865
    %v4867 = vpop.f32.mrf.mxu0
    %v4868 = vadd.f32 0.0, %v4867
    %4869 = vmatmul.bf16.gmra.mxu0 %v4705
    %v4870 = vpop.f32.mrf.mxu0
    %v4871 = vadd.f32 0.0, %v4870
    %v4872 = vpop.f32.mrf.mxu0
    %v4873 = vadd.f32 0.0, %v4872
    %4874 = vmatmul.bf16.gmra.mxu0 %v4707
    %v4875 = vpop.f32.mrf.mxu0
    %v4876 = vadd.f32 0.0, %v4875
    %v4877 = vpop.f32.mrf.mxu0
    %v4878 = vadd.f32 0.0, %v4877
    %4879 = vmatmul.bf16.gmra.mxu0 %v4709
    %v4880 = vpop.f32.mrf.mxu0
    %v4881 = vadd.f32 0.0, %v4880
    %v4882 = vpop.f32.mrf.mxu0
    %v4883 = vadd.f32 0.0, %v4882
    %4884 = vmatmul.bf16.gmra.mxu0 %v4711
    %v4885 = vpop.f32.mrf.mxu0
    %v4886 = vadd.f32 0.0, %v4885
    %v4887 = vpop.f32.mrf.mxu0
    %v4888 = vadd.f32 0.0, %v4887
    %4889 = vdwg.mxu0
    %4890 = vmatpush.bf16.msra.mxu0 %v4824
    %4891 = vmatpush.bf16.msra.mxu0 %v4823
    %4892 = vmatpush.bf16.msra.mxu0 %v4822
    %4893 = vmatpush.bf16.msra.mxu0 %v4821
    %4894 = vmatpush.bf16.msra.mxu0 %v4820
    %4895 = vmatpush.bf16.msra.mxu0 %v4819
    %4896 = vmatpush.bf16.msra.mxu0 %v4818
    %4897 = vmatpush.bf16.msra.mxu0 %v4817
    %4898 = vmatmul.bf16.gmra.mxu0 %v4698
    %v4899 = vpop.f32.mrf.mxu0
    %v4900 = vadd.f32 %v4851, %v4899
    %v4901 = vpop.f32.mrf.mxu0
    %v4902 = vadd.f32 %v4853, %v4901
    %4903 = vmatmul.bf16.gmra.mxu0 %v4700
    %v4904 = vpop.f32.mrf.mxu0
    %v4905 = vadd.f32 %v4856, %v4904
    %v4906 = vpop.f32.mrf.mxu0
    %v4907 = vadd.f32 %v4858, %v4906
    %4908 = vmatmul.bf16.gmra.mxu0 %v4702
    %v4909 = vpop.f32.mrf.mxu0
    %v4910 = vadd.f32 %v4861, %v4909
    %v4911 = vpop.f32.mrf.mxu0
    %v4912 = vadd.f32 %v4863, %v4911
    %4913 = vmatmul.bf16.gmra.mxu0 %v4704
    %v4914 = vpop.f32.mrf.mxu0
    %v4915 = vadd.f32 %v4866, %v4914
    %v4916 = vpop.f32.mrf.mxu0
    %v4917 = vadd.f32 %v4868, %v4916
    %4918 = vmatmul.bf16.gmra.mxu0 %v4706
    %v4919 = vpop.f32.mrf.mxu0
    %v4920 = vadd.f32 %v4871, %v4919
    %v4921 = vpop.f32.mrf.mxu0
    %v4922 = vadd.f32 %v4873, %v4921
    %4923 = vmatmul.bf16.gmra.mxu0 %v4708
    %v4924 = vpop.f32.mrf.mxu0
    %v4925 = vadd.f32 %v4876, %v4924
    %v4926 = vpop.f32.mrf.mxu0
    %v4927 = vadd.f32 %v4878, %v4926
    %4928 = vmatmul.bf16.gmra.mxu0 %v4710
    %v4929 = vpop.f32.mrf.mxu0
    %v4930 = vadd.f32 %v4881, %v4929
    %v4931 = vpop.f32.mrf.mxu0
    %v4932 = vadd.f32 %v4883, %v4931
    %4933 = vmatmul.bf16.gmra.mxu0 %v4712
    %v4934 = vpop.f32.mrf.mxu0
    %v4935 = vadd.f32 %v4886, %v4934
    %v4936 = vpop.f32.mrf.mxu0
    %v4937 = vadd.f32 %v4888, %v4936
    %4938 = vdwg.mxu0
    %v4939 = vstv %s3411
    %v4940 = vmul.f32 %v4939, %v3447
    %v4941 = vmul.f32 %v4939, %v3448
    %v4942 = vmul.f32 %v4939, %v3449
    %v4943 = vmul.f32 %v4939, %v3450
    %v4944 = vmul.f32 %v4939, %v3451
    %v4945 = vmul.f32 %v4939, %v3452
    %v4946 = vmul.f32 %v4939, %v3453
    %v4947 = vmul.f32 %v4939, %v3454
    %v4948 = vmul.f32 %v4939, %v3455
    %v4949 = vmul.f32 %v4939, %v3456
    %v4950 = vmul.f32 %v4939, %v3457
    %v4951 = vmul.f32 %v4939, %v3458
    %v4952 = vmul.f32 %v4939, %v3459
    %v4953 = vmul.f32 %v4939, %v3460
    %v4954 = vmul.f32 %v4939, %v3461
    %v4955 = vmul.f32 %v4939, %v3462
    %s4956 = ssub.f32 1.0, %s3411
    %v4957 = vstv %s4956
    %v4958 = vmul.f32 %v4957, %v4900
    %v4959 = vmul.f32 %v4957, %v4902
    %v4960 = vmul.f32 %v4957, %v4905
    %v4961 = vmul.f32 %v4957, %v4907
    %v4962 = vmul.f32 %v4957, %v4910
    %v4963 = vmul.f32 %v4957, %v4912
    %v4964 = vmul.f32 %v4957, %v4915
    %v4965 = vmul.f32 %v4957, %v4917
    %v4966 = vmul.f32 %v4957, %v4920
    %v4967 = vmul.f32 %v4957, %v4922
    %v4968 = vmul.f32 %v4957, %v4925
    %v4969 = vmul.f32 %v4957, %v4927
    %v4970 = vmul.f32 %v4957, %v4930
    %v4971 = vmul.f32 %v4957, %v4932
    %v4972 = vmul.f32 %v4957, %v4935
    %v4973 = vmul.f32 %v4957, %v4937
    %v4974 = vadd.f32 %v4940, %v4958
    %v4975 = vadd.f32 %v4941, %v4959
    %v4976 = vadd.f32 %v4942, %v4960
    %v4977 = vadd.f32 %v4943, %v4961
    %v4978 = vadd.f32 %v4944, %v4962
    %v4979 = vadd.f32 %v4945, %v4963
    %v4980 = vadd.f32 %v4946, %v4964
    %v4981 = vadd.f32 %v4947, %v4965
    %v4982 = vadd.f32 %v4948, %v4966
    %v4983 = vadd.f32 %v4949, %v4967
    %v4984 = vadd.f32 %v4950, %v4968
    %v4985 = vadd.f32 %v4951, %v4969
    %v4986 = vadd.f32 %v4952, %v4970
    %v4987 = vadd.f32 %v4953, %v4971
    %v4988 = vadd.f32 %v4954, %v4972
    %v4989 = vadd.f32 %v4955, %v4973
    %4990 = vst [vmem:[#allocation18] sm:$0xff] %v4974
    %4991 = vst [vmem:[#allocation18 + $0x8] sm:$0xff] %v4975
    %4992 = vst [vmem:[#allocation18 + $0x10] sm:$0xff] %v4976
    %4993 = vst [vmem:[#allocation18 + $0x18] sm:$0xff] %v4977
    %4994 = vst [vmem:[#allocation18 + $0x20] sm:$0xff] %v4978
    %4995 = vst [vmem:[#allocation18 + $0x28] sm:$0xff] %v4979
    %4996 = vst [vmem:[#allocation18 + $0x30] sm:$0xff] %v4980
    %4997 = vst [vmem:[#allocation18 + $0x38] sm:$0xff] %v4981
    %4998 = vst [vmem:[#allocation18 + $0x40] sm:$0xff] %v4982
    %4999 = vst [vmem:[#allocation18 + $0x48] sm:$0xff] %v4983
    %5000 = vst [vmem:[#allocation18 + $0x50] sm:$0xff] %v4984
    %5001 = vst [vmem:[#allocation18 + $0x58] sm:$0xff] %v4985
    %5002 = vst [vmem:[#allocation18 + $0x60] sm:$0xff] %v4986
    %5003 = vst [vmem:[#allocation18 + $0x68] sm:$0xff] %v4987
    %5004 = vst [vmem:[#allocation18 + $0x70] sm:$0xff] %v4988
    %5005 = vst [vmem:[#allocation18 + $0x78] sm:$0xff] %v4989
    // Predicated region
    $region106: #{tpu_custom_call.1} parent=1 // pred_check
      _
    $region107: #{tpu_custom_call.1} parent=1 // pred_check_branch
      %5007 = sbr.rel (0) target = $region109
    $region108: #{tpu_custom_call.1} parent=1 // pred_region
      %5009 = vsyncadd [#allocation4], 0
      %s5010 = sshll.u32 [#allocation18], 4
      %s5011 = int_to_ptr.vmem [resolvable:$true] %s5010
      %s5012 = sshll.u32 %s17, 4
      %s5013 = int_to_ptr.hbm [resolvable:$true] %s5012
      %5018 = dma.vmem_to_hbm [thread:$0]  %s5011, 2048, %s5013, [#allocation4], 128, 128, 8
    $region109: #{tpu_custom_call.1} parent=1 // pred_fallthru
      _
    // Predicated region
    $region110: #{tpu_custom_call.1} parent=1 // pred_check
      _
    $region111: #{tpu_custom_call.1} parent=1 // pred_check_branch
      %5020 = sbr.rel (0) target = $region113
    $region112: #{tpu_custom_call.1} parent=1 // pred_region
      %5022 = dma.done [#allocation4], 2048
    $region113: #{tpu_custom_call.1} parent=1 // pred_fallthru
      _
    %5023 = vsyncpa [#allocation3], 1
    %5024 = vsyncpa [#allocation7], 1
    %5025 = vsyncpa [#allocation10], 1
    %5026 = vsyncpa [#allocation13], 1
    %5027 = vsyncpa [#allocation16], 1
    %5028 = vsyncpa [#allocation4], 1
    %5029 = vsyncpa [#allocation5], 1

</llo_original>
